<compile_context>
chip_gen: v5e
topology: v5e:2x2
jax: 0.10.0
libtpu: 0.0.40
codegen_flags: <defaults>
</compile_context>

<pallas_src>
import numpy as np
import jax
import jax.numpy as jnp
from jax import lax
from jax.experimental import pallas as pl
from jax.experimental.pallas import tpu as pltpu


# ----------------------------- in-kernel helpers -----------------------------

def _dot_bf16(a, b):
    """a @ b with bf16 operands, f32 accumulation (MXU-native)."""
    return jnp.dot(a.astype(jnp.bfloat16), b.astype(jnp.bfloat16),
                   preferred_element_type=jnp.float32)


def _dot_t_bf16(a, b):
    """a @ b.T with bf16 operands, f32 accumulation."""
    return lax.dot_general(a.astype(jnp.bfloat16), b.astype(jnp.bfloat16),
                           (((1,), (1,)), ((), ())),
                           preferred_element_type=jnp.float32)


# ------------------------------- Pallas kernels -------------------------------

def _gru_kernel(xw_ref, whh_ref, bhh_ref, out_ref):
    """Whole GRU sequence in ONE kernel invocation.

    xw_ref : (T, B, 3H)  precomputed x_t @ [W_ir|W_iz|W_in] + b_i*  (hoisted)
    whh_ref: (H, 3H)     fused hidden weights [W_hr|W_hz|W_hn]
    bhh_ref: (1, 3H)     fused hidden biases
    out_ref: (T, B, H)   hidden states for every timestep (single slab store)
    """
    T, B, H = out_ref.shape
    w_hh = whh_ref[...].astype(jnp.bfloat16)          # resident for the whole loop
    b_hh = bhh_ref[...]

    def step(t, h):
        xw_t = xw_ref[t]                              # (B, 3H)
        hw = jnp.dot(h.astype(jnp.bfloat16), w_hh,
                     preferred_element_type=jnp.float32) + b_hh
        r = jax.nn.sigmoid(xw_t[:, :H] + hw[:, :H])
        z = jax.nn.sigmoid(xw_t[:, H:2 * H] + hw[:, H:2 * H])
        # b_in lives in xw_t (outside r*), b_hn lives in hw (inside r*): exact PyTorch GRU.
        n = jnp.tanh(xw_t[:, 2 * H:] + r * hw[:, 2 * H:])
        h_new = (1.0 - z) * n + z * h
        out_ref[t] = h_new
        return h_new

    lax.fori_loop(0, T, step, jnp.zeros((B, H), jnp.float32), unroll=True)


def _graph_two_block_kernel(pg_ref, ph_ref, x_ref,
                            wg1, bg1, wh1, bh1,
                            wg2, bg2, wh2, bh2, o_ref):
    """Both (GraphConv -> HypergraphConv -> relu -> +residual) blocks fused.

    pg_ref: (B, N, N)     per-graph D^-1/2 A D^-1/2 (block-diagonal structure exploited)
    ph_ref: (B, B, N, N)  D^-1 H B H^T of the batched hypergraph, block-partitioned
    x_ref : (B, N, E)     node features (also the residual for both blocks)
    o_ref : (B, N, E)
    """
    B = x_ref.shape[0]
    x0 = [x_ref[b] for b in range(B)]                 # per-graph (N, E) residuals
    h = list(x0)
    for wg, bg, wh, bh in ((wg1, bg1, wh1, bh1), (wg2, bg2, wh2, bh2)):
        wgv, bgv, whv, bhv = wg[...], bg[...], wh[...], bh[...]
        # GraphConv (norm='both'): one (N,N)x(N,E) matmul per graph instead of
        # a dense (B*N)^2 propagation.
        g = [_dot_bf16(pg_ref[b], _dot_bf16(h[b], wgv)) + bgv for b in range(B)]
        # HypergraphConv couples graphs across the batch: out_b = sum_b' Ph[b,b'] (g_b' Wh)
        gw = [_dot_bf16(g[b], whv) for b in range(B)]
        new_h = []
        for bo in range(B):
            acc = bhv
            for bi in range(B):
                acc = acc + _dot_bf16(ph_ref[bo, bi], gw[bi])
            new_h.append(jnp.maximum(acc, 0.0) + x0[bo])
        h = new_h
    for b in range(B):
        o_ref[b] = h[b]


def _attn_readout_kernel(x_ref, gf_ref,
                         wm, bm, wm2, bm2,
                         wsx, wsh, bs, wtx, wth, bt,
                         u1, u2, fw1, fw2, fb, y_ref):
    """Clause_Hypergraph tail + OutputLayer_Clause fused, one batch element per
    grid step.  G = [g1, g2] never leaves VMEM; the label-attention / read-out
    weights arrive pre-split into their g1/g2 halves (preserving concat order).
    Output is written lane-major as a (1, Y) row."""
    x = x_ref[0]                                      # (T, Denc)
    gf = gf_ref[0]                                    # (N, E)

    # Cross attention: C = relu(x Wm) relu(gf Wm2)^T, H_att = softmax(C) gf
    a = jnp.maximum(_dot_bf16(x, wm[...]) + bm[...], 0.0)        # (T, E)
    b = jnp.maximum(_dot_bf16(gf, wm2[...]) + bm2[...], 0.0)     # (N, E)
    c = _dot_t_bf16(a, b)                                        # (T, N)
    c = c - jnp.max(c, axis=-1, keepdims=True)
    e = jnp.exp(c)
    s = e / jnp.sum(e, axis=-1, keepdims=True)
    hatt = _dot_bf16(s, gf)                                      # (T, E)

    # Gates: G = [g1, g2]
    g1 = jax.nn.sigmoid(_dot_bf16(x, wsx[...]) + _dot_bf16(hatt, wsh[...]) + bs[...])
    g2 = jnp.tanh(_dot_bf16(x, wtx[...]) + _dot_bf16(hatt, wth[...]) + bt[...])

    # Label attention, computed transposed so the (1, Y) result is lane-major:
    # att[t, l] = <U_l, G_t>,  alpha = softmax over t,  y_l = sum_t alpha * <fw_l, G_t> + fb_l
    att = _dot_t_bf16(g1, u1[...]) + _dot_t_bf16(g2, u2[...])    # (T, Y)
    att = att - jnp.max(att, axis=0, keepdims=True)
    ea = jnp.exp(att)
    alpha = ea / jnp.sum(ea, axis=0, keepdims=True)              # (T, Y)
    r = _dot_t_bf16(g1, fw1[...]) + _dot_t_bf16(g2, fw2[...])    # (T, Y)
    y_ref[0] = jnp.sum(alpha * r, axis=0, keepdims=True) + fb[...]   # (1, Y)


# ------------------------------ kernel wrappers ------------------------------

def gru_forward(doc_emb, p):
    B, T, E = doc_emb.shape
    H = p["gru_whh"].shape[0]
    # Hoisted, time-independent input projection: ONE (B*T, E) x (E, 3H) matmul.
    xw = jnp.dot(doc_emb.reshape(B * T, E).astype(jnp.bfloat16),
                 p["gru_wih"].astype(jnp.bfloat16),
                 preferred_element_type=jnp.float32) + p["gru_bih"]
    xw_tm = jnp.transpose(xw.reshape(B, T, 3 * H), (1, 0, 2))     # (T, B, 3H)

    out = pl.pallas_call(
        _gru_kernel,
        out_shape=jax.ShapeDtypeStruct((T, B, H), jnp.float32),
    )(xw_tm, p["gru_whh"], p["gru_bhh"])                          # no grid: 1 launch
    return jnp.transpose(out, (1, 0, 2))                          # (B, T, H)


def graph_two_blocks(P_graph, P_hyper4, node_feats, p):
    B, N, E = node_feats.shape
    return pl.pallas_call(
        _graph_two_block_kernel,
        out_shape=jax.ShapeDtypeStruct((B, N, E), jnp.float32),
    )(P_graph, P_hyper4, node_feats,
      p["gc1_w"], p["gc1_b"], p["hc1_w"], p["hc1_b"],
      p["gc2_w"], p["gc2_b"], p["hc2_w"], p["hc2_b"])


def attn_readout(x, gf, p):
    B, T, D = x.shape
    _, N, E = gf.shape
    half = p["ws_b"].shape[1]
    Y = p["u_w"].shape[0]
    # Split along the feature axis in [g1 | g2] order (preserves concat order).
    u1, u2 = p["u_w"][:, :half], p["u_w"][:, half:]
    fw1, fw2 = p["final_w"][:, :half], p["final_w"][:, half:]

    def cspec(shape):
        # Constant index_map -> the same block every grid step (no re-DMA).
        return pl.BlockSpec(shape, lambda i: (0,) * len(shape))

    y = pl.pallas_call(
        _attn_readout_kernel,
        out_shape=jax.ShapeDtypeStruct((B, 1, Y), jnp.float32),
        grid_spec=pltpu.PrefetchScalarGridSpec(
            num_scalar_prefetch=0,
            grid=(B,),
            in_specs=[pl.BlockSpec((1, T, D), lambda i: (i, 0, 0)),
                      pl.BlockSpec((1, N, E), lambda i: (i, 0, 0)),
                      cspec((D, E)), cspec((1, E)),
                      cspec((E, E)), cspec((1, E)),
                      cspec((D, half)), cspec((E, half)), cspec((1, half)),
                      cspec((D, half)), cspec((E, half)), cspec((1, half)),
                      cspec((Y, half)), cspec((Y, half)),
                      cspec((Y, half)), cspec((Y, half)),
                      cspec((1, Y))],
            out_specs=pl.BlockSpec((1, 1, Y), lambda i: (i, 0, 0))),
        compiler_params=pltpu.CompilerParams(
            dimension_semantics=("parallel",)),          # per-batch -> both v7x cores
    )(x, gf, p["wm_w_t"], p["wm_b"], p["wm2_w_t"], p["wm2_b"],
      p["ws_wx_t"], p["ws_wh_t"], p["ws_b"],
      p["wt_wx_t"], p["wt_wh_t"], p["wt_b"],
      u1, u2, fw1, fw2, p["final_b"])
    return y[:, 0, :]                                             # (B, Y)


# --------------------------------- JAX glue ----------------------------------

def build_graph_propagation(B, N):
    """Per-graph D^-1/2 A D^-1/2 for a ring+self-loop graph, batched as (B, N, N)
    (DGL GraphConv norm='both', degrees clamped at 1)."""
    A = np.zeros((N, N), np.float32)
    for i in range(N):
        A[i, i] = 1.0
        j = (i + 1) % N
        A[i, j] = 1.0
        A[j, i] = 1.0
    deg = np.maximum(A.sum(1), 1.0)
    d = deg ** -0.5
    P = d[:, None] * A * d[None, :]
    return jnp.asarray(np.broadcast_to(P, (B, N, N)).copy())


def build_hyper_propagation(hyperedge_index, num_nodes, num_edges):
    """PyG HypergraphConv propagation D^-1 H B H^T (hyperedge weights = 1)."""
    hi = hyperedge_index.T                        # module does transpose(0, 1)
    Hm = jnp.zeros((num_nodes, num_edges), jnp.float32).at[hi[0], hi[1]].set(1.0)
    Dn = Hm.sum(axis=1)
    Be = Hm.sum(axis=0)
    Dinv = jnp.where(Dn > 0, 1.0 / Dn, 0.0)
    Binv = jnp.where(Be > 0, 1.0 / Be, 0.0)
    return (Dinv[:, None] * Hm) @ (Hm * Binv[None, :]).T


def build_segment_mean_matrix(segs, T):
    """(num_segs, T) averaging matrix so segment means become one einsum."""
    M = np.zeros((len(segs), T), np.float32)
    for i, (s, e) in enumerate(segs):
        M[i, s:e] = 1.0 / float(e - s)
    return jnp.asarray(M)


def rnn_model_clause_forward(params, inputs_id, labels, code_descriptions,
                             seg_mean_mat, hyperedge_index, P_graph,
                             num_hyperedges):
    B, T = inputs_id.shape
    E = params["embed"].shape[1]

    # WordRep (eval: embed dropout is identity).
    # TODO(synk): ELMo branch of WordRep (use_elmo=True) not implemented.
    doc_emb = params["embed"][inputs_id]                          # (B, T, E)

    # GRU encoder (single Pallas call).
    x = gru_forward(doc_emb, params)                              # (B, T, H)

    # Clause_Hypergraph node features: code embeddings + segment means via one einsum.
    code_emb = params["embed"][code_descriptions].mean(axis=1)    # (num_codes, E)
    seg_feats = jnp.einsum('st,bte->bse', seg_mean_mat, doc_emb)  # (B, S, E)
    node_feats = jnp.concatenate(
        [jnp.broadcast_to(code_emb[None], (B,) + code_emb.shape), seg_feats],
        axis=1)                                                   # (B, N, E)
    _, N, _ = node_feats.shape

    # TODO(synk): sparse DGL/PyG message passing is realized via precomputed dense
    # normalized propagation matrices; dropout layers are identity (eval mode).
    P_hyper = build_hyper_propagation(hyperedge_index, B * N, num_hyperedges)
    P_hyper4 = P_hyper.reshape(B, N, B, N).transpose(0, 2, 1, 3)  # (B, B, N, N)

    graph_feature = graph_two_blocks(P_graph, P_hyper4, node_feats, params)  # (B, N, E)

    # Cross attention + gating + label attention read-out (one fused Pallas call).
    y = attn_readout(x, graph_feature, params)                    # (B, Y)

    # BCEWithLogits loss (stable form).
    loss = jnp.mean(jnp.maximum(y, 0.0) - y * labels
                    + jnp.log1p(jnp.exp(-jnp.abs(y))))
    return y, loss


# ------------------------------ parameter init ------------------------------

def init_params(key, vocab, E, H, Y, out_half):
    keys = jax.random.split(key, 32)
    it = iter(keys)

    def xavier(shape):
        a = (6.0 / (shape[0] + shape[1])) ** 0.5
        return jax.random.uniform(next(it), shape, jnp.float32, -a, a)

    def uni(shape, scale):
        return jax.random.uniform(next(it), shape, jnp.float32, -scale, scale)

    p = {}
    p["embed"] = uni((vocab, E), 0.1).at[0].set(0.0)              # padding_idx=0

    s = 1.0 / (H ** 0.5)
    # GRU weights fused along the gate axis [r | z | n]; b_ih/b_hh kept separate
    # so b_hn stays inside the r*( ) term (exact PyTorch GRU semantics).
    p["gru_wih"] = uni((E, 3 * H), s)
    p["gru_whh"] = uni((H, 3 * H), s)
    p["gru_bih"] = uni((1, 3 * H), s)
    p["gru_bhh"] = uni((1, 3 * H), s)

    # GraphConv / HypergraphConv weights (in, out), zero bias (defaults).
    p["gc1_w"] = xavier((E, E)); p["gc1_b"] = jnp.zeros((1, E), jnp.float32)
    p["hc1_w"] = xavier((E, E)); p["hc1_b"] = jnp.zeros((1, E), jnp.float32)
    p["gc2_w"] = xavier((E, E)); p["gc2_b"] = jnp.zeros((1, E), jnp.float32)
    p["hc2_w"] = xavier((E, E)); p["hc2_b"] = jnp.zeros((1, E), jnp.float32)

    Denc = H
    p["wm_w_t"] = xavier((Denc, E)); p["wm_b"] = uni((1, E), s)
    p["wm2_w_t"] = xavier((E, E));   p["wm2_b"] = uni((1, E), s)
    p["ws_wx_t"] = xavier((Denc, out_half)); p["ws_wh_t"] = xavier((E, out_half))
    p["ws_b"] = uni((1, out_half), s)
    p["wt_wx_t"] = xavier((Denc, out_half)); p["wt_wh_t"] = xavier((E, out_half))
    p["wt_b"] = uni((1, out_half), s)

    p["u_w"] = xavier((Y, 2 * out_half))
    p["final_w"] = xavier((Y, 2 * out_half))
    p["final_b"] = uni((1, Y), s)
    return p


# ----------------------------------- main -----------------------------------

if __name__ == "__main__":
    key = jax.random.PRNGKey(0)
    B, T, E, H, Y = 2, 16, 32, 32, 8            # nhid = embed_size = 32, bidirectional=False
    vocab = 50
    out_half = H // 2                           # int(output_size / 2) = 16
    num_codes, code_len = Y, 5
    sent_segs = [(0, 6), (6, 11), (11, 16)]
    clause_segs = [(0, 4), (4, 8), (8, 12), (12, 16)]
    N_nodes = num_codes + len(sent_segs) + len(clause_segs)       # 15 per graph
    num_hyperedges = 5

    k_param, k_in, k_code, k_lab = jax.random.split(key, 4)
    params = init_params(k_param, vocab, E, H, Y, out_half)

    inputs_id = jax.random.randint(k_in, (B, T), 1, vocab, dtype=jnp.int32)
    code_descriptions = jax.random.randint(k_code, (num_codes, code_len), 1, vocab,
                                           dtype=jnp.int32)
    labels = jax.random.bernoulli(k_lab, 0.3, (B, Y)).astype(jnp.float32)

    # hyperedge_index passed as (nnz, 2) [node, hyperedge]; module transposes it.
    hyperedge_index = jnp.stack(
        [jnp.arange(B * N_nodes, dtype=jnp.int32),
         jnp.arange(B * N_nodes, dtype=jnp.int32) % num_hyperedges], axis=1)

    P_graph = build_graph_propagation(B, N_nodes)                 # (B, N, N)
    seg_mean_mat = build_segment_mean_matrix(sent_segs + clause_segs, T)

    fwd = jax.jit(rnn_model_clause_forward, static_argnums=(7,))
    logits, loss = fwd(params, inputs_id, labels, code_descriptions,
                       seg_mean_mat, hyperedge_index, P_graph, num_hyperedges)

    jax.block_until_ready((logits, loss))
    assert logits.shape == (B, Y)
    assert jnp.isfinite(loss)
    print("KERNEL_OK")
</pallas_src>

<mosaic_0001>
module attributes {stable_mosaic.version = 11 : i64} {
  func.func @_graph_two_block_kernel(%arg0: memref<2x15x15xf32, #tpu.memory_space<vmem>>, %arg1: memref<2x2x15x15xf32, #tpu.memory_space<vmem>>, %arg2: memref<2x15x32xf32, #tpu.memory_space<vmem>>, %arg3: memref<32x32xf32, #tpu.memory_space<vmem>>, %arg4: memref<1x32xf32, #tpu.memory_space<vmem>>, %arg5: memref<32x32xf32, #tpu.memory_space<vmem>>, %arg6: memref<1x32xf32, #tpu.memory_space<vmem>>, %arg7: memref<32x32xf32, #tpu.memory_space<vmem>>, %arg8: memref<1x32xf32, #tpu.memory_space<vmem>>, %arg9: memref<32x32xf32, #tpu.memory_space<vmem>>, %arg10: memref<1x32xf32, #tpu.memory_space<vmem>>, %arg11: memref<2x15x32xf32, #tpu.memory_space<vmem>>) attributes {dimension_semantics = [], scalar_prefetch = 0 : i64, scratch_operands = 0 : i64, tpu.core_type = #tpu.core_type<tc>} {
    %c0 = arith.constant 0 : index
    %c0_0 = arith.constant 0 : index
    %c0_1 = arith.constant 0 : index
    %0 = vector.load %arg2[%c0, %c0_0, %c0_1] : memref<2x15x32xf32, #tpu.memory_space<vmem>>, vector<1x15x32xf32>
    %1 = vector.shape_cast %0 : vector<1x15x32xf32> to vector<15x32xf32>
    %c1 = arith.constant 1 : index
    %c0_2 = arith.constant 0 : index
    %c0_3 = arith.constant 0 : index
    %2 = vector.load %arg2[%c1, %c0_2, %c0_3] : memref<2x15x32xf32, #tpu.memory_space<vmem>>, vector<1x15x32xf32>
    %3 = vector.shape_cast %2 : vector<1x15x32xf32> to vector<15x32xf32>
    %c0_4 = arith.constant 0 : index
    %c0_5 = arith.constant 0 : index
    %4 = vector.load %arg3[%c0_4, %c0_5] : memref<32x32xf32, #tpu.memory_space<vmem>>, vector<32x32xf32>
    %c0_6 = arith.constant 0 : index
    %c0_7 = arith.constant 0 : index
    %5 = vector.load %arg4[%c0_6, %c0_7] : memref<1x32xf32, #tpu.memory_space<vmem>>, vector<1x32xf32>
    %c0_8 = arith.constant 0 : index
    %c0_9 = arith.constant 0 : index
    %6 = vector.load %arg5[%c0_8, %c0_9] : memref<32x32xf32, #tpu.memory_space<vmem>>, vector<32x32xf32>
    %c0_10 = arith.constant 0 : index
    %c0_11 = arith.constant 0 : index
    %7 = vector.load %arg6[%c0_10, %c0_11] : memref<1x32xf32, #tpu.memory_space<vmem>>, vector<1x32xf32>
    %c0_12 = arith.constant 0 : index
    %c0_13 = arith.constant 0 : index
    %c0_14 = arith.constant 0 : index
    %8 = vector.load %arg0[%c0_12, %c0_13, %c0_14] : memref<2x15x15xf32, #tpu.memory_space<vmem>>, vector<1x15x15xf32>
    %9 = vector.shape_cast %8 : vector<1x15x15xf32> to vector<15x15xf32>
    %10 = arith.truncf %1 : vector<15x32xf32> to vector<15x32xbf16>
    %11 = arith.truncf %4 : vector<32x32xf32> to vector<32x32xbf16>
    %cst = arith.constant dense<0.000000e+00> : vector<15x32xf32>
    %12 = tpu.matmul %10, %11, %cst {dimension_numbers = #tpu.dot_dimension_numbers<[1], [0], [0], [1], [0, 0, 1, 1], [], []>} : vector<15x32xbf16>, vector<32x32xbf16>, vector<15x32xf32> -> vector<15x32xf32>
    %13 = arith.truncf %9 : vector<15x15xf32> to vector<15x15xbf16>
    %14 = arith.truncf %12 : vector<15x32xf32> to vector<15x32xbf16>
    %cst_15 = arith.constant dense<0.000000e+00> : vector<15x32xf32>
    %15 = tpu.matmul %13, %14, %cst_15 {dimension_numbers = #tpu.dot_dimension_numbers<[1], [0], [0], [1], [0, 0, 1, 1], [], []>} : vector<15x15xbf16>, vector<15x32xbf16>, vector<15x32xf32> -> vector<15x32xf32>
    %16 = vector.broadcast %5 : vector<1x32xf32> to vector<15x32xf32>
    %17 = arith.addf %15, %16 : vector<15x32xf32>
    %c1_16 = arith.constant 1 : index
    %c0_17 = arith.constant 0 : index
    %c0_18 = arith.constant 0 : index
    %18 = vector.load %arg0[%c1_16, %c0_17, %c0_18] : memref<2x15x15xf32, #tpu.memory_space<vmem>>, vector<1x15x15xf32>
    %19 = vector.shape_cast %18 : vector<1x15x15xf32> to vector<15x15xf32>
    %20 = arith.truncf %3 : vector<15x32xf32> to vector<15x32xbf16>
    %21 = arith.truncf %4 : vector<32x32xf32> to vector<32x32xbf16>
    %cst_19 = arith.constant dense<0.000000e+00> : vector<15x32xf32>
    %22 = tpu.matmul %20, %21, %cst_19 {dimension_numbers = #tpu.dot_dimension_numbers<[1], [0], [0], [1], [0, 0, 1, 1], [], []>} : vector<15x32xbf16>, vector<32x32xbf16>, vector<15x32xf32> -> vector<15x32xf32>
    %23 = arith.truncf %19 : vector<15x15xf32> to vector<15x15xbf16>
    %24 = arith.truncf %22 : vector<15x32xf32> to vector<15x32xbf16>
    %cst_20 = arith.constant dense<0.000000e+00> : vector<15x32xf32>
    %25 = tpu.matmul %23, %24, %cst_20 {dimension_numbers = #tpu.dot_dimension_numbers<[1], [0], [0], [1], [0, 0, 1, 1], [], []>} : vector<15x15xbf16>, vector<15x32xbf16>, vector<15x32xf32> -> vector<15x32xf32>
    %26 = vector.broadcast %5 : vector<1x32xf32> to vector<15x32xf32>
    %27 = arith.addf %25, %26 : vector<15x32xf32>
    %28 = arith.truncf %17 : vector<15x32xf32> to vector<15x32xbf16>
    %29 = arith.truncf %6 : vector<32x32xf32> to vector<32x32xbf16>
    %cst_21 = arith.constant dense<0.000000e+00> : vector<15x32xf32>
    %30 = tpu.matmul %28, %29, %cst_21 {dimension_numbers = #tpu.dot_dimension_numbers<[1], [0], [0], [1], [0, 0, 1, 1], [], []>} : vector<15x32xbf16>, vector<32x32xbf16>, vector<15x32xf32> -> vector<15x32xf32>
    %31 = arith.truncf %27 : vector<15x32xf32> to vector<15x32xbf16>
    %32 = arith.truncf %6 : vector<32x32xf32> to vector<32x32xbf16>
    %cst_22 = arith.constant dense<0.000000e+00> : vector<15x32xf32>
    %33 = tpu.matmul %31, %32, %cst_22 {dimension_numbers = #tpu.dot_dimension_numbers<[1], [0], [0], [1], [0, 0, 1, 1], [], []>} : vector<15x32xbf16>, vector<32x32xbf16>, vector<15x32xf32> -> vector<15x32xf32>
    %c0_23 = arith.constant 0 : index
    %c0_24 = arith.constant 0 : index
    %c0_25 = arith.constant 0 : index
    %c0_26 = arith.constant 0 : index
    %34 = vector.load %arg1[%c0_23, %c0_24, %c0_25, %c0_26] : memref<2x2x15x15xf32, #tpu.memory_space<vmem>>, vector<1x1x15x15xf32>
    %35 = vector.shape_cast %34 : vector<1x1x15x15xf32> to vector<15x15xf32>
    %36 = arith.truncf %35 : vector<15x15xf32> to vector<15x15xbf16>
    %37 = arith.truncf %30 : vector<15x32xf32> to vector<15x32xbf16>
    %cst_27 = arith.constant dense<0.000000e+00> : vector<15x32xf32>
    %38 = tpu.matmul %36, %37, %cst_27 {dimension_numbers = #tpu.dot_dimension_numbers<[1], [0], [0], [1], [0, 0, 1, 1], [], []>} : vector<15x15xbf16>, vector<15x32xbf16>, vector<15x32xf32> -> vector<15x32xf32>
    %39 = vector.broadcast %7 : vector<1x32xf32> to vector<15x32xf32>
    %40 = arith.addf %39, %38 : vector<15x32xf32>
    %c0_28 = arith.constant 0 : index
    %c1_29 = arith.constant 1 : index
    %c0_30 = arith.constant 0 : index
    %c0_31 = arith.constant 0 : index
    %41 = vector.load %arg1[%c0_28, %c1_29, %c0_30, %c0_31] : memref<2x2x15x15xf32, #tpu.memory_space<vmem>>, vector<1x1x15x15xf32>
    %42 = vector.shape_cast %41 : vector<1x1x15x15xf32> to vector<15x15xf32>
    %43 = arith.truncf %42 : vector<15x15xf32> to vector<15x15xbf16>
    %44 = arith.truncf %33 : vector<15x32xf32> to vector<15x32xbf16>
    %cst_32 = arith.constant dense<0.000000e+00> : vector<15x32xf32>
    %45 = tpu.matmul %43, %44, %cst_32 {dimension_numbers = #tpu.dot_dimension_numbers<[1], [0], [0], [1], [0, 0, 1, 1], [], []>} : vector<15x15xbf16>, vector<15x32xbf16>, vector<15x32xf32> -> vector<15x32xf32>
    %46 = arith.addf %40, %45 : vector<15x32xf32>
    %cst_33 = arith.constant 0.000000e+00 : f32
    %47 = vector.broadcast %cst_33 : f32 to vector<15x32xf32>
    %48 = arith.maximumf %46, %47 : vector<15x32xf32>
    %49 = arith.addf %48, %1 : vector<15x32xf32>
    %c1_34 = arith.constant 1 : index
    %c0_35 = arith.constant 0 : index
    %c0_36 = arith.constant 0 : index
    %c0_37 = arith.constant 0 : index
    %50 = vector.load %arg1[%c1_34, %c0_35, %c0_36, %c0_37] : memref<2x2x15x15xf32, #tpu.memory_space<vmem>>, vector<1x1x15x15xf32>
    %51 = vector.shape_cast %50 : vector<1x1x15x15xf32> to vector<15x15xf32>
    %52 = arith.truncf %51 : vector<15x15xf32> to vector<15x15xbf16>
    %53 = arith.truncf %30 : vector<15x32xf32> to vector<15x32xbf16>
    %cst_38 = arith.constant dense<0.000000e+00> : vector<15x32xf32>
    %54 = tpu.matmul %52, %53, %cst_38 {dimension_numbers = #tpu.dot_dimension_numbers<[1], [0], [0], [1], [0, 0, 1, 1], [], []>} : vector<15x15xbf16>, vector<15x32xbf16>, vector<15x32xf32> -> vector<15x32xf32>
    %55 = vector.broadcast %7 : vector<1x32xf32> to vector<15x32xf32>
    %56 = arith.addf %55, %54 : vector<15x32xf32>
    %c1_39 = arith.constant 1 : index
    %c1_40 = arith.constant 1 : index
    %c0_41 = arith.constant 0 : index
    %c0_42 = arith.constant 0 : index
    %57 = vector.load %arg1[%c1_39, %c1_40, %c0_41, %c0_42] : memref<2x2x15x15xf32, #tpu.memory_space<vmem>>, vector<1x1x15x15xf32>
    %58 = vector.shape_cast %57 : vector<1x1x15x15xf32> to vector<15x15xf32>
    %59 = arith.truncf %58 : vector<15x15xf32> to vector<15x15xbf16>
    %60 = arith.truncf %33 : vector<15x32xf32> to vector<15x32xbf16>
    %cst_43 = arith.constant dense<0.000000e+00> : vector<15x32xf32>
    %61 = tpu.matmul %59, %60, %cst_43 {dimension_numbers = #tpu.dot_dimension_numbers<[1], [0], [0], [1], [0, 0, 1, 1], [], []>} : vector<15x15xbf16>, vector<15x32xbf16>, vector<15x32xf32> -> vector<15x32xf32>
    %62 = arith.addf %56, %61 : vector<15x32xf32>
    %cst_44 = arith.constant 0.000000e+00 : f32
    %63 = vector.broadcast %cst_44 : f32 to vector<15x32xf32>
    %64 = arith.maximumf %62, %63 : vector<15x32xf32>
    %65 = arith.addf %64, %3 : vector<15x32xf32>
    %c0_45 = arith.constant 0 : index
    %c0_46 = arith.constant 0 : index
    %66 = vector.load %arg7[%c0_45, %c0_46] : memref<32x32xf32, #tpu.memory_space<vmem>>, vector<32x32xf32>
    %c0_47 = arith.constant 0 : index
    %c0_48 = arith.constant 0 : index
    %67 = vector.load %arg8[%c0_47, %c0_48] : memref<1x32xf32, #tpu.memory_space<vmem>>, vector<1x32xf32>
    %c0_49 = arith.constant 0 : index
    %c0_50 = arith.constant 0 : index
    %68 = vector.load %arg9[%c0_49, %c0_50] : memref<32x32xf32, #tpu.memory_space<vmem>>, vector<32x32xf32>
    %c0_51 = arith.constant 0 : index
    %c0_52 = arith.constant 0 : index
    %69 = vector.load %arg10[%c0_51, %c0_52] : memref<1x32xf32, #tpu.memory_space<vmem>>, vector<1x32xf32>
    %c0_53 = arith.constant 0 : index
    %c0_54 = arith.constant 0 : index
    %c0_55 = arith.constant 0 : index
    %70 = vector.load %arg0[%c0_53, %c0_54, %c0_55] : memref<2x15x15xf32, #tpu.memory_space<vmem>>, vector<1x15x15xf32>
    %71 = vector.shape_cast %70 : vector<1x15x15xf32> to vector<15x15xf32>
    %72 = arith.truncf %49 : vector<15x32xf32> to vector<15x32xbf16>
    %73 = arith.truncf %66 : vector<32x32xf32> to vector<32x32xbf16>
    %cst_56 = arith.constant dense<0.000000e+00> : vector<15x32xf32>
    %74 = tpu.matmul %72, %73, %cst_56 {dimension_numbers = #tpu.dot_dimension_numbers<[1], [0], [0], [1], [0, 0, 1, 1], [], []>} : vector<15x32xbf16>, vector<32x32xbf16>, vector<15x32xf32> -> vector<15x32xf32>
    %75 = arith.truncf %71 : vector<15x15xf32> to vector<15x15xbf16>
    %76 = arith.truncf %74 : vector<15x32xf32> to vector<15x32xbf16>
    %cst_57 = arith.constant dense<0.000000e+00> : vector<15x32xf32>
    %77 = tpu.matmul %75, %76, %cst_57 {dimension_numbers = #tpu.dot_dimension_numbers<[1], [0], [0], [1], [0, 0, 1, 1], [], []>} : vector<15x15xbf16>, vector<15x32xbf16>, vector<15x32xf32> -> vector<15x32xf32>
    %78 = vector.broadcast %67 : vector<1x32xf32> to vector<15x32xf32>
    %79 = arith.addf %77, %78 : vector<15x32xf32>
    %c1_58 = arith.constant 1 : index
    %c0_59 = arith.constant 0 : index
    %c0_60 = arith.constant 0 : index
    %80 = vector.load %arg0[%c1_58, %c0_59, %c0_60] : memref<2x15x15xf32, #tpu.memory_space<vmem>>, vector<1x15x15xf32>
    %81 = vector.shape_cast %80 : vector<1x15x15xf32> to vector<15x15xf32>
    %82 = arith.truncf %65 : vector<15x32xf32> to vector<15x32xbf16>
    %83 = arith.truncf %66 : vector<32x32xf32> to vector<32x32xbf16>
    %cst_61 = arith.constant dense<0.000000e+00> : vector<15x32xf32>
    %84 = tpu.matmul %82, %83, %cst_61 {dimension_numbers = #tpu.dot_dimension_numbers<[1], [0], [0], [1], [0, 0, 1, 1], [], []>} : vector<15x32xbf16>, vector<32x32xbf16>, vector<15x32xf32> -> vector<15x32xf32>
    %85 = arith.truncf %81 : vector<15x15xf32> to vector<15x15xbf16>
    %86 = arith.truncf %84 : vector<15x32xf32> to vector<15x32xbf16>
    %cst_62 = arith.constant dense<0.000000e+00> : vector<15x32xf32>
    %87 = tpu.matmul %85, %86, %cst_62 {dimension_numbers = #tpu.dot_dimension_numbers<[1], [0], [0], [1], [0, 0, 1, 1], [], []>} : vector<15x15xbf16>, vector<15x32xbf16>, vector<15x32xf32> -> vector<15x32xf32>
    %88 = vector.broadcast %67 : vector<1x32xf32> to vector<15x32xf32>
    %89 = arith.addf %87, %88 : vector<15x32xf32>
    %90 = arith.truncf %79 : vector<15x32xf32> to vector<15x32xbf16>
    %91 = arith.truncf %68 : vector<32x32xf32> to vector<32x32xbf16>
    %cst_63 = arith.constant dense<0.000000e+00> : vector<15x32xf32>
    %92 = tpu.matmul %90, %91, %cst_63 {dimension_numbers = #tpu.dot_dimension_numbers<[1], [0], [0], [1], [0, 0, 1, 1], [], []>} : vector<15x32xbf16>, vector<32x32xbf16>, vector<15x32xf32> -> vector<15x32xf32>
    %93 = arith.truncf %89 : vector<15x32xf32> to vector<15x32xbf16>
    %94 = arith.truncf %68 : vector<32x32xf32> to vector<32x32xbf16>
    %cst_64 = arith.constant dense<0.000000e+00> : vector<15x32xf32>
    %95 = tpu.matmul %93, %94, %cst_64 {dimension_numbers = #tpu.dot_dimension_numbers<[1], [0], [0], [1], [0, 0, 1, 1], [], []>} : vector<15x32xbf16>, vector<32x32xbf16>, vector<15x32xf32> -> vector<15x32xf32>
    %c0_65 = arith.constant 0 : index
    %c0_66 = arith.constant 0 : index
    %c0_67 = arith.constant 0 : index
    %c0_68 = arith.constant 0 : index
    %96 = vector.load %arg1[%c0_65, %c0_66, %c0_67, %c0_68] : memref<2x2x15x15xf32, #tpu.memory_space<vmem>>, vector<1x1x15x15xf32>
    %97 = vector.shape_cast %96 : vector<1x1x15x15xf32> to vector<15x15xf32>
    %98 = arith.truncf %97 : vector<15x15xf32> to vector<15x15xbf16>
    %99 = arith.truncf %92 : vector<15x32xf32> to vector<15x32xbf16>
    %cst_69 = arith.constant dense<0.000000e+00> : vector<15x32xf32>
    %100 = tpu.matmul %98, %99, %cst_69 {dimension_numbers = #tpu.dot_dimension_numbers<[1], [0], [0], [1], [0, 0, 1, 1], [], []>} : vector<15x15xbf16>, vector<15x32xbf16>, vector<15x32xf32> -> vector<15x32xf32>
    %101 = vector.broadcast %69 : vector<1x32xf32> to vector<15x32xf32>
    %102 = arith.addf %101, %100 : vector<15x32xf32>
    %c0_70 = arith.constant 0 : index
    %c1_71 = arith.constant 1 : index
    %c0_72 = arith.constant 0 : index
    %c0_73 = arith.constant 0 : index
    %103 = vector.load %arg1[%c0_70, %c1_71, %c0_72, %c0_73] : memref<2x2x15x15xf32, #tpu.memory_space<vmem>>, vector<1x1x15x15xf32>
    %104 = vector.shape_cast %103 : vector<1x1x15x15xf32> to vector<15x15xf32>
    %105 = arith.truncf %104 : vector<15x15xf32> to vector<15x15xbf16>
    %106 = arith.truncf %95 : vector<15x32xf32> to vector<15x32xbf16>
    %cst_74 = arith.constant dense<0.000000e+00> : vector<15x32xf32>
    %107 = tpu.matmul %105, %106, %cst_74 {dimension_numbers = #tpu.dot_dimension_numbers<[1], [0], [0], [1], [0, 0, 1, 1], [], []>} : vector<15x15xbf16>, vector<15x32xbf16>, vector<15x32xf32> -> vector<15x32xf32>
    %108 = arith.addf %102, %107 : vector<15x32xf32>
    %cst_75 = arith.constant 0.000000e+00 : f32
    %109 = vector.broadcast %cst_75 : f32 to vector<15x32xf32>
    %110 = arith.maximumf %108, %109 : vector<15x32xf32>
    %111 = arith.addf %110, %1 : vector<15x32xf32>
    %c1_76 = arith.constant 1 : index
    %c0_77 = arith.constant 0 : index
    %c0_78 = arith.constant 0 : index
    %c0_79 = arith.constant 0 : index
    %112 = vector.load %arg1[%c1_76, %c0_77, %c0_78, %c0_79] : memref<2x2x15x15xf32, #tpu.memory_space<vmem>>, vector<1x1x15x15xf32>
    %113 = vector.shape_cast %112 : vector<1x1x15x15xf32> to vector<15x15xf32>
    %114 = arith.truncf %113 : vector<15x15xf32> to vector<15x15xbf16>
    %115 = arith.truncf %92 : vector<15x32xf32> to vector<15x32xbf16>
    %cst_80 = arith.constant dense<0.000000e+00> : vector<15x32xf32>
    %116 = tpu.matmul %114, %115, %cst_80 {dimension_numbers = #tpu.dot_dimension_numbers<[1], [0], [0], [1], [0, 0, 1, 1], [], []>} : vector<15x15xbf16>, vector<15x32xbf16>, vector<15x32xf32> -> vector<15x32xf32>
    %117 = vector.broadcast %69 : vector<1x32xf32> to vector<15x32xf32>
    %118 = arith.addf %117, %116 : vector<15x32xf32>
    %c1_81 = arith.constant 1 : index
    %c1_82 = arith.constant 1 : index
    %c0_83 = arith.constant 0 : index
    %c0_84 = arith.constant 0 : index
    %119 = vector.load %arg1[%c1_81, %c1_82, %c0_83, %c0_84] : memref<2x2x15x15xf32, #tpu.memory_space<vmem>>, vector<1x1x15x15xf32>
    %120 = vector.shape_cast %119 : vector<1x1x15x15xf32> to vector<15x15xf32>
    %121 = arith.truncf %120 : vector<15x15xf32> to vector<15x15xbf16>
    %122 = arith.truncf %95 : vector<15x32xf32> to vector<15x32xbf16>
    %cst_85 = arith.constant dense<0.000000e+00> : vector<15x32xf32>
    %123 = tpu.matmul %121, %122, %cst_85 {dimension_numbers = #tpu.dot_dimension_numbers<[1], [0], [0], [1], [0, 0, 1, 1], [], []>} : vector<15x15xbf16>, vector<15x32xbf16>, vector<15x32xf32> -> vector<15x32xf32>
    %124 = arith.addf %118, %123 : vector<15x32xf32>
    %cst_86 = arith.constant 0.000000e+00 : f32
    %125 = vector.broadcast %cst_86 : f32 to vector<15x32xf32>
    %126 = arith.maximumf %124, %125 : vector<15x32xf32>
    %127 = arith.addf %126, %3 : vector<15x32xf32>
    %c0_87 = arith.constant 0 : index
    %c0_88 = arith.constant 0 : index
    %c0_89 = arith.constant 0 : index
    %128 = vector.load %arg11[%c0_87, %c0_88, %c0_89] : memref<2x15x32xf32, #tpu.memory_space<vmem>>, vector<1x15x32xf32>
    %129 = vector.shape_cast %128 : vector<1x15x32xf32> to vector<15x32xf32>
    %130 = vector.shape_cast %111 : vector<15x32xf32> to vector<1x15x32xf32>
    tpu.vector_store %arg11[%c0_87, %c0_88, %c0_89], %130 {strides = array<i32>} : memref<2x15x32xf32, #tpu.memory_space<vmem>>, vector<1x15x32xf32>,
    %c1_90 = arith.constant 1 : index
    %c0_91 = arith.constant 0 : index
    %c0_92 = arith.constant 0 : index
    %131 = vector.load %arg11[%c1_90, %c0_91, %c0_92] : memref<2x15x32xf32, #tpu.memory_space<vmem>>, vector<1x15x32xf32>
    %132 = vector.shape_cast %131 : vector<1x15x32xf32> to vector<15x32xf32>
    %133 = vector.shape_cast %127 : vector<15x32xf32> to vector<1x15x32xf32>
    tpu.vector_store %arg11[%c1_90, %c0_91, %c0_92], %133 {strides = array<i32>} : memref<2x15x32xf32, #tpu.memory_space<vmem>>, vector<1x15x32xf32>,
    return
  }
}

module attributes {stable_mosaic.version = 11 : i64} {
  func.func @_gru_kernel(%arg0: memref<16x2x96xf32, #tpu.memory_space<vmem>>, %arg1: memref<32x96xf32, #tpu.memory_space<vmem>>, %arg2: memref<1x96xf32, #tpu.memory_space<vmem>>, %arg3: memref<16x2x32xf32, #tpu.memory_space<vmem>>) attributes {dimension_semantics = [], scalar_prefetch = 0 : i64, scratch_operands = 0 : i64, tpu.core_type = #tpu.core_type<tc>} {
    %c0 = arith.constant 0 : index
    %c0_0 = arith.constant 0 : index
    %0 = vector.load %arg1[%c0, %c0_0] : memref<32x96xf32, #tpu.memory_space<vmem>>, vector<32x96xf32>
    %1 = arith.truncf %0 : vector<32x96xf32> to vector<32x96xbf16>
    %c0_1 = arith.constant 0 : index
    %c0_2 = arith.constant 0 : index
    %2 = vector.load %arg2[%c0_1, %c0_2] : memref<1x96xf32, #tpu.memory_space<vmem>>, vector<1x96xf32>
    %cst = arith.constant 0.000000e+00 : f32
    %3 = vector.broadcast %cst : f32 to vector<2x32xf32>
    %c0_i32 = arith.constant 0 : i32
    %4 = arith.index_cast %c0_i32 : i32 to index
    %c0_3 = arith.constant 0 : index
    %c0_4 = arith.constant 0 : index
    %5 = vector.load %arg0[%4, %c0_3, %c0_4] : memref<16x2x96xf32, #tpu.memory_space<vmem>>, vector<1x2x96xf32>
    %6 = vector.shape_cast %5 : vector<1x2x96xf32> to vector<2x96xf32>
    %7 = arith.truncf %3 : vector<2x32xf32> to vector<2x32xbf16>
    %cst_5 = arith.constant dense<0.000000e+00> : vector<2x96xf32>
    %8 = tpu.matmul %7, %1, %cst_5 {dimension_numbers = #tpu.dot_dimension_numbers<[1], [0], [0], [1], [0, 0, 1, 1], [], []>} : vector<2x32xbf16>, vector<32x96xbf16>, vector<2x96xf32> -> vector<2x96xf32>
    %9 = vector.broadcast %2 : vector<1x96xf32> to vector<2x96xf32>
    %10 = arith.addf %8, %9 : vector<2x96xf32>
    %11 = vector.extract_strided_slice %6 {offsets = [0, 0], sizes = [2, 32], strides = [1, 1]} : vector<2x96xf32> to vector<2x32xf32>
    %12 = vector.extract_strided_slice %10 {offsets = [0, 0], sizes = [2, 32], strides = [1, 1]} : vector<2x96xf32> to vector<2x32xf32>
    %13 = arith.addf %11, %12 : vector<2x32xf32>
    %14 = arith.negf %13 : vector<2x32xf32>
    %15 = math.exp %14 : vector<2x32xf32>
    %cst_6 = arith.constant 1.000000e+00 : f32
    %16 = vector.broadcast %cst_6 : f32 to vector<2x32xf32>
    %17 = arith.addf %16, %15 : vector<2x32xf32>
    %18 = arith.divf %16, %17 : vector<2x32xf32>
    %19 = vector.extract_strided_slice %6 {offsets = [0, 32], sizes = [2, 32], strides = [1, 1]} : vector<2x96xf32> to vector<2x32xf32>
    %20 = vector.extract_strided_slice %10 {offsets = [0, 32], sizes = [2, 32], strides = [1, 1]} : vector<2x96xf32> to vector<2x32xf32>
    %21 = arith.addf %19, %20 : vector<2x32xf32>
    %22 = arith.negf %21 : vector<2x32xf32>
    %23 = math.exp %22 : vector<2x32xf32>
    %cst_7 = arith.constant 1.000000e+00 : f32
    %24 = vector.broadcast %cst_7 : f32 to vector<2x32xf32>
    %25 = arith.addf %24, %23 : vector<2x32xf32>
    %26 = arith.divf %24, %25 : vector<2x32xf32>
    %27 = vector.extract_strided_slice %6 {offsets = [0, 64], sizes = [2, 32], strides = [1, 1]} : vector<2x96xf32> to vector<2x32xf32>
    %28 = vector.extract_strided_slice %10 {offsets = [0, 64], sizes = [2, 32], strides = [1, 1]} : vector<2x96xf32> to vector<2x32xf32>
    %29 = arith.mulf %18, %28 : vector<2x32xf32>
    %30 = arith.addf %27, %29 : vector<2x32xf32>
    %31 = math.tanh %30 : vector<2x32xf32>
    %cst_8 = arith.constant 1.000000e+00 : f32
    %32 = vector.broadcast %cst_8 : f32 to vector<2x32xf32>
    %33 = arith.subf %32, %26 : vector<2x32xf32>
    %34 = arith.mulf %33, %31 : vector<2x32xf32>
    %35 = arith.mulf %26, %3 : vector<2x32xf32>
    %36 = arith.addf %34, %35 : vector<2x32xf32>
    %37 = arith.index_cast %c0_i32 : i32 to index
    %c0_9 = arith.constant 0 : index
    %c0_10 = arith.constant 0 : index
    %38 = vector.load %arg3[%37, %c0_9, %c0_10] : memref<16x2x32xf32, #tpu.memory_space<vmem>>, vector<1x2x32xf32>
    %39 = vector.shape_cast %38 : vector<1x2x32xf32> to vector<2x32xf32>
    %40 = vector.shape_cast %36 : vector<2x32xf32> to vector<1x2x32xf32>
    tpu.vector_store %arg3[%37, %c0_9, %c0_10], %40 {strides = array<i32>} : memref<16x2x32xf32, #tpu.memory_space<vmem>>, vector<1x2x32xf32>,
    %c1_i32 = arith.constant 1 : i32
    %41 = arith.index_cast %c1_i32 : i32 to index
    %c0_11 = arith.constant 0 : index
    %c0_12 = arith.constant 0 : index
    %42 = vector.load %arg0[%41, %c0_11, %c0_12] : memref<16x2x96xf32, #tpu.memory_space<vmem>>, vector<1x2x96xf32>
    %43 = vector.shape_cast %42 : vector<1x2x96xf32> to vector<2x96xf32>
    %44 = arith.truncf %36 : vector<2x32xf32> to vector<2x32xbf16>
    %cst_13 = arith.constant dense<0.000000e+00> : vector<2x96xf32>
    %45 = tpu.matmul %44, %1, %cst_13 {dimension_numbers = #tpu.dot_dimension_numbers<[1], [0], [0], [1], [0, 0, 1, 1], [], []>} : vector<2x32xbf16>, vector<32x96xbf16>, vector<2x96xf32> -> vector<2x96xf32>
    %46 = vector.broadcast %2 : vector<1x96xf32> to vector<2x96xf32>
    %47 = arith.addf %45, %46 : vector<2x96xf32>
    %48 = vector.extract_strided_slice %43 {offsets = [0, 0], sizes = [2, 32], strides = [1, 1]} : vector<2x96xf32> to vector<2x32xf32>
    %49 = vector.extract_strided_slice %47 {offsets = [0, 0], sizes = [2, 32], strides = [1, 1]} : vector<2x96xf32> to vector<2x32xf32>
    %50 = arith.addf %48, %49 : vector<2x32xf32>
    %51 = arith.negf %50 : vector<2x32xf32>
    %52 = math.exp %51 : vector<2x32xf32>
    %cst_14 = arith.constant 1.000000e+00 : f32
    %53 = vector.broadcast %cst_14 : f32 to vector<2x32xf32>
    %54 = arith.addf %53, %52 : vector<2x32xf32>
    %55 = arith.divf %53, %54 : vector<2x32xf32>
    %56 = vector.extract_strided_slice %43 {offsets = [0, 32], sizes = [2, 32], strides = [1, 1]} : vector<2x96xf32> to vector<2x32xf32>
    %57 = vector.extract_strided_slice %47 {offsets = [0, 32], sizes = [2, 32], strides = [1, 1]} : vector<2x96xf32> to vector<2x32xf32>
    %58 = arith.addf %56, %57 : vector<2x32xf32>
    %59 = arith.negf %58 : vector<2x32xf32>
    %60 = math.exp %59 : vector<2x32xf32>
    %cst_15 = arith.constant 1.000000e+00 : f32
    %61 = vector.broadcast %cst_15 : f32 to vector<2x32xf32>
    %62 = arith.addf %61, %60 : vector<2x32xf32>
    %63 = arith.divf %61, %62 : vector<2x32xf32>
    %64 = vector.extract_strided_slice %43 {offsets = [0, 64], sizes = [2, 32], strides = [1, 1]} : vector<2x96xf32> to vector<2x32xf32>
    %65 = vector.extract_strided_slice %47 {offsets = [0, 64], sizes = [2, 32], strides = [1, 1]} : vector<2x96xf32> to vector<2x32xf32>
    %66 = arith.mulf %55, %65 : vector<2x32xf32>
    %67 = arith.addf %64, %66 : vector<2x32xf32>
    %68 = math.tanh %67 : vector<2x32xf32>
    %cst_16 = arith.constant 1.000000e+00 : f32
    %69 = vector.broadcast %cst_16 : f32 to vector<2x32xf32>
    %70 = arith.subf %69, %63 : vector<2x32xf32>
    %71 = arith.mulf %70, %68 : vector<2x32xf32>
    %72 = arith.mulf %63, %36 : vector<2x32xf32>
    %73 = arith.addf %71, %72 : vector<2x32xf32>
    %74 = arith.index_cast %c1_i32 : i32 to index
    %c0_17 = arith.constant 0 : index
    %c0_18 = arith.constant 0 : index
    %75 = vector.load %arg3[%74, %c0_17, %c0_18] : memref<16x2x32xf32, #tpu.memory_space<vmem>>, vector<1x2x32xf32>
    %76 = vector.shape_cast %75 : vector<1x2x32xf32> to vector<2x32xf32>
    %77 = vector.shape_cast %73 : vector<2x32xf32> to vector<1x2x32xf32>
    tpu.vector_store %arg3[%74, %c0_17, %c0_18], %77 {strides = array<i32>} : memref<16x2x32xf32, #tpu.memory_space<vmem>>, vector<1x2x32xf32>,
    %c2_i32 = arith.constant 2 : i32
    %78 = arith.index_cast %c2_i32 : i32 to index
    %c0_19 = arith.constant 0 : index
    %c0_20 = arith.constant 0 : index
    %79 = vector.load %arg0[%78, %c0_19, %c0_20] : memref<16x2x96xf32, #tpu.memory_space<vmem>>, vector<1x2x96xf32>
    %80 = vector.shape_cast %79 : vector<1x2x96xf32> to vector<2x96xf32>
    %81 = arith.truncf %73 : vector<2x32xf32> to vector<2x32xbf16>
    %cst_21 = arith.constant dense<0.000000e+00> : vector<2x96xf32>
    %82 = tpu.matmul %81, %1, %cst_21 {dimension_numbers = #tpu.dot_dimension_numbers<[1], [0], [0], [1], [0, 0, 1, 1], [], []>} : vector<2x32xbf16>, vector<32x96xbf16>, vector<2x96xf32> -> vector<2x96xf32>
    %83 = vector.broadcast %2 : vector<1x96xf32> to vector<2x96xf32>
    %84 = arith.addf %82, %83 : vector<2x96xf32>
    %85 = vector.extract_strided_slice %80 {offsets = [0, 0], sizes = [2, 32], strides = [1, 1]} : vector<2x96xf32> to vector<2x32xf32>
    %86 = vector.extract_strided_slice %84 {offsets = [0, 0], sizes = [2, 32], strides = [1, 1]} : vector<2x96xf32> to vector<2x32xf32>
    %87 = arith.addf %85, %86 : vector<2x32xf32>
    %88 = arith.negf %87 : vector<2x32xf32>
    %89 = math.exp %88 : vector<2x32xf32>
    %cst_22 = arith.constant 1.000000e+00 : f32
    %90 = vector.broadcast %cst_22 : f32 to vector<2x32xf32>
    %91 = arith.addf %90, %89 : vector<2x32xf32>
    %92 = arith.divf %90, %91 : vector<2x32xf32>
    %93 = vector.extract_strided_slice %80 {offsets = [0, 32], sizes = [2, 32], strides = [1, 1]} : vector<2x96xf32> to vector<2x32xf32>
    %94 = vector.extract_strided_slice %84 {offsets = [0, 32], sizes = [2, 32], strides = [1, 1]} : vector<2x96xf32> to vector<2x32xf32>
    %95 = arith.addf %93, %94 : vector<2x32xf32>
    %96 = arith.negf %95 : vector<2x32xf32>
    %97 = math.exp %96 : vector<2x32xf32>
    %cst_23 = arith.constant 1.000000e+00 : f32
    %98 = vector.broadcast %cst_23 : f32 to vector<2x32xf32>
    %99 = arith.addf %98, %97 : vector<2x32xf32>
    %100 = arith.divf %98, %99 : vector<2x32xf32>
    %101 = vector.extract_strided_slice %80 {offsets = [0, 64], sizes = [2, 32], strides = [1, 1]} : vector<2x96xf32> to vector<2x32xf32>
    %102 = vector.extract_strided_slice %84 {offsets = [0, 64], sizes = [2, 32], strides = [1, 1]} : vector<2x96xf32> to vector<2x32xf32>
    %103 = arith.mulf %92, %102 : vector<2x32xf32>
    %104 = arith.addf %101, %103 : vector<2x32xf32>
    %105 = math.tanh %104 : vector<2x32xf32>
    %cst_24 = arith.constant 1.000000e+00 : f32
    %106 = vector.broadcast %cst_24 : f32 to vector<2x32xf32>
    %107 = arith.subf %106, %100 : vector<2x32xf32>
    %108 = arith.mulf %107, %105 : vector<2x32xf32>
    %109 = arith.mulf %100, %73 : vector<2x32xf32>
    %110 = arith.addf %108, %109 : vector<2x32xf32>
    %111 = arith.index_cast %c2_i32 : i32 to index
    %c0_25 = arith.constant 0 : index
    %c0_26 = arith.constant 0 : index
    %112 = vector.load %arg3[%111, %c0_25, %c0_26] : memref<16x2x32xf32, #tpu.memory_space<vmem>>, vector<1x2x32xf32>
    %113 = vector.shape_cast %112 : vector<1x2x32xf32> to vector<2x32xf32>
    %114 = vector.shape_cast %110 : vector<2x32xf32> to vector<1x2x32xf32>
    tpu.vector_store %arg3[%111, %c0_25, %c0_26], %114 {strides = array<i32>} : memref<16x2x32xf32, #tpu.memory_space<vmem>>, vector<1x2x32xf32>,
    %c3_i32 = arith.constant 3 : i32
    %115 = arith.index_cast %c3_i32 : i32 to index
    %c0_27 = arith.constant 0 : index
    %c0_28 = arith.constant 0 : index
    %116 = vector.load %arg0[%115, %c0_27, %c0_28] : memref<16x2x96xf32, #tpu.memory_space<vmem>>, vector<1x2x96xf32>
    %117 = vector.shape_cast %116 : vector<1x2x96xf32> to vector<2x96xf32>
    %118 = arith.truncf %110 : vector<2x32xf32> to vector<2x32xbf16>
    %cst_29 = arith.constant dense<0.000000e+00> : vector<2x96xf32>
    %119 = tpu.matmul %118, %1, %cst_29 {dimension_numbers = #tpu.dot_dimension_numbers<[1], [0], [0], [1], [0, 0, 1, 1], [], []>} : vector<2x32xbf16>, vector<32x96xbf16>, vector<2x96xf32> -> vector<2x96xf32>
    %120 = vector.broadcast %2 : vector<1x96xf32> to vector<2x96xf32>
    %121 = arith.addf %119, %120 : vector<2x96xf32>
    %122 = vector.extract_strided_slice %117 {offsets = [0, 0], sizes = [2, 32], strides = [1, 1]} : vector<2x96xf32> to vector<2x32xf32>
    %123 = vector.extract_strided_slice %121 {offsets = [0, 0], sizes = [2, 32], strides = [1, 1]} : vector<2x96xf32> to vector<2x32xf32>
    %124 = arith.addf %122, %123 : vector<2x32xf32>
    %125 = arith.negf %124 : vector<2x32xf32>
    %126 = math.exp %125 : vector<2x32xf32>
    %cst_30 = arith.constant 1.000000e+00 : f32
    %127 = vector.broadcast %cst_30 : f32 to vector<2x32xf32>
    %128 = arith.addf %127, %126 : vector<2x32xf32>
    %129 = arith.divf %127, %128 : vector<2x32xf32>
    %130 = vector.extract_strided_slice %117 {offsets = [0, 32], sizes = [2, 32], strides = [1, 1]} : vector<2x96xf32> to vector<2x32xf32>
    %131 = vector.extract_strided_slice %121 {offsets = [0, 32], sizes = [2, 32], strides = [1, 1]} : vector<2x96xf32> to vector<2x32xf32>
    %132 = arith.addf %130, %131 : vector<2x32xf32>
    %133 = arith.negf %132 : vector<2x32xf32>
    %134 = math.exp %133 : vector<2x32xf32>
    %cst_31 = arith.constant 1.000000e+00 : f32
    %135 = vector.broadcast %cst_31 : f32 to vector<2x32xf32>
    %136 = arith.addf %135, %134 : vector<2x32xf32>
    %137 = arith.divf %135, %136 : vector<2x32xf32>
    %138 = vector.extract_strided_slice %117 {offsets = [0, 64], sizes = [2, 32], strides = [1, 1]} : vector<2x96xf32> to vector<2x32xf32>
    %139 = vector.extract_strided_slice %121 {offsets = [0, 64], sizes = [2, 32], strides = [1, 1]} : vector<2x96xf32> to vector<2x32xf32>
    %140 = arith.mulf %129, %139 : vector<2x32xf32>
    %141 = arith.addf %138, %140 : vector<2x32xf32>
    %142 = math.tanh %141 : vector<2x32xf32>
    %cst_32 = arith.constant 1.000000e+00 : f32
    %143 = vector.broadcast %cst_32 : f32 to vector<2x32xf32>
    %144 = arith.subf %143, %137 : vector<2x32xf32>
    %145 = arith.mulf %144, %142 : vector<2x32xf32>
    %146 = arith.mulf %137, %110 : vector<2x32xf32>
    %147 = arith.addf %145, %146 : vector<2x32xf32>
    %148 = arith.index_cast %c3_i32 : i32 to index
    %c0_33 = arith.constant 0 : index
    %c0_34 = arith.constant 0 : index
    %149 = vector.load %arg3[%148, %c0_33, %c0_34] : memref<16x2x32xf32, #tpu.memory_space<vmem>>, vector<1x2x32xf32>
    %150 = vector.shape_cast %149 : vector<1x2x32xf32> to vector<2x32xf32>
    %151 = vector.shape_cast %147 : vector<2x32xf32> to vector<1x2x32xf32>
    tpu.vector_store %arg3[%148, %c0_33, %c0_34], %151 {strides = array<i32>} : memref<16x2x32xf32, #tpu.memory_space<vmem>>, vector<1x2x32xf32>,
    %c4_i32 = arith.constant 4 : i32
    %152 = arith.index_cast %c4_i32 : i32 to index
    %c0_35 = arith.constant 0 : index
    %c0_36 = arith.constant 0 : index
    %153 = vector.load %arg0[%152, %c0_35, %c0_36] : memref<16x2x96xf32, #tpu.memory_space<vmem>>, vector<1x2x96xf32>
    %154 = vector.shape_cast %153 : vector<1x2x96xf32> to vector<2x96xf32>
    %155 = arith.truncf %147 : vector<2x32xf32> to vector<2x32xbf16>
    %cst_37 = arith.constant dense<0.000000e+00> : vector<2x96xf32>
    %156 = tpu.matmul %155, %1, %cst_37 {dimension_numbers = #tpu.dot_dimension_numbers<[1], [0], [0], [1], [0, 0, 1, 1], [], []>} : vector<2x32xbf16>, vector<32x96xbf16>, vector<2x96xf32> -> vector<2x96xf32>
    %157 = vector.broadcast %2 : vector<1x96xf32> to vector<2x96xf32>
    %158 = arith.addf %156, %157 : vector<2x96xf32>
    %159 = vector.extract_strided_slice %154 {offsets = [0, 0], sizes = [2, 32], strides = [1, 1]} : vector<2x96xf32> to vector<2x32xf32>
    %160 = vector.extract_strided_slice %158 {offsets = [0, 0], sizes = [2, 32], strides = [1, 1]} : vector<2x96xf32> to vector<2x32xf32>
    %161 = arith.addf %159, %160 : vector<2x32xf32>
    %162 = arith.negf %161 : vector<2x32xf32>
    %163 = math.exp %162 : vector<2x32xf32>
    %cst_38 = arith.constant 1.000000e+00 : f32
    %164 = vector.broadcast %cst_38 : f32 to vector<2x32xf32>
    %165 = arith.addf %164, %163 : vector<2x32xf32>
    %166 = arith.divf %164, %165 : vector<2x32xf32>
    %167 = vector.extract_strided_slice %154 {offsets = [0, 32], sizes = [2, 32], strides = [1, 1]} : vector<2x96xf32> to vector<2x32xf32>
    %168 = vector.extract_strided_slice %158 {offsets = [0, 32], sizes = [2, 32], strides = [1, 1]} : vector<2x96xf32> to vector<2x32xf32>
    %169 = arith.addf %167, %168 : vector<2x32xf32>
    %170 = arith.negf %169 : vector<2x32xf32>
    %171 = math.exp %170 : vector<2x32xf32>
    %cst_39 = arith.constant 1.000000e+00 : f32
    %172 = vector.broadcast %cst_39 : f32 to vector<2x32xf32>
    %173 = arith.addf %172, %171 : vector<2x32xf32>
    %174 = arith.divf %172, %173 : vector<2x32xf32>
    %175 = vector.extract_strided_slice %154 {offsets = [0, 64], sizes = [2, 32], strides = [1, 1]} : vector<2x96xf32> to vector<2x32xf32>
    %176 = vector.extract_strided_slice %158 {offsets = [0, 64], sizes = [2, 32], strides = [1, 1]} : vector<2x96xf32> to vector<2x32xf32>
    %177 = arith.mulf %166, %176 : vector<2x32xf32>
    %178 = arith.addf %175, %177 : vector<2x32xf32>
    %179 = math.tanh %178 : vector<2x32xf32>
    %cst_40 = arith.constant 1.000000e+00 : f32
    %180 = vector.broadcast %cst_40 : f32 to vector<2x32xf32>
    %181 = arith.subf %180, %174 : vector<2x32xf32>
    %182 = arith.mulf %181, %179 : vector<2x32xf32>
    %183 = arith.mulf %174, %147 : vector<2x32xf32>
    %184 = arith.addf %182, %183 : vector<2x32xf32>
    %185 = arith.index_cast %c4_i32 : i32 to index
    %c0_41 = arith.constant 0 : index
    %c0_42 = arith.constant 0 : index
    %186 = vector.load %arg3[%185, %c0_41, %c0_42] : memref<16x2x32xf32, #tpu.memory_space<vmem>>, vector<1x2x32xf32>
    %187 = vector.shape_cast %186 : vector<1x2x32xf32> to vector<2x32xf32>
    %188 = vector.shape_cast %184 : vector<2x32xf32> to vector<1x2x32xf32>
    tpu.vector_store %arg3[%185, %c0_41, %c0_42], %188 {strides = array<i32>} : memref<16x2x32xf32, #tpu.memory_space<vmem>>, vector<1x2x32xf32>,
    %c5_i32 = arith.constant 5 : i32
    %189 = arith.index_cast %c5_i32 : i32 to index
    %c0_43 = arith.constant 0 : index
    %c0_44 = arith.constant 0 : index
    %190 = vector.load %arg0[%189, %c0_43, %c0_44] : memref<16x2x96xf32, #tpu.memory_space<vmem>>, vector<1x2x96xf32>
    %191 = vector.shape_cast %190 : vector<1x2x96xf32> to vector<2x96xf32>
    %192 = arith.truncf %184 : vector<2x32xf32> to vector<2x32xbf16>
    %cst_45 = arith.constant dense<0.000000e+00> : vector<2x96xf32>
    %193 = tpu.matmul %192, %1, %cst_45 {dimension_numbers = #tpu.dot_dimension_numbers<[1], [0], [0], [1], [0, 0, 1, 1], [], []>} : vector<2x32xbf16>, vector<32x96xbf16>, vector<2x96xf32> -> vector<2x96xf32>
    %194 = vector.broadcast %2 : vector<1x96xf32> to vector<2x96xf32>
    %195 = arith.addf %193, %194 : vector<2x96xf32>
    %196 = vector.extract_strided_slice %191 {offsets = [0, 0], sizes = [2, 32], strides = [1, 1]} : vector<2x96xf32> to vector<2x32xf32>
    %197 = vector.extract_strided_slice %195 {offsets = [0, 0], sizes = [2, 32], strides = [1, 1]} : vector<2x96xf32> to vector<2x32xf32>
    %198 = arith.addf %196, %197 : vector<2x32xf32>
    %199 = arith.negf %198 : vector<2x32xf32>
    %200 = math.exp %199 : vector<2x32xf32>
    %cst_46 = arith.constant 1.000000e+00 : f32
    %201 = vector.broadcast %cst_46 : f32 to vector<2x32xf32>
    %202 = arith.addf %201, %200 : vector<2x32xf32>
    %203 = arith.divf %201, %202 : vector<2x32xf32>
    %204 = vector.extract_strided_slice %191 {offsets = [0, 32], sizes = [2, 32], strides = [1, 1]} : vector<2x96xf32> to vector<2x32xf32>
    %205 = vector.extract_strided_slice %195 {offsets = [0, 32], sizes = [2, 32], strides = [1, 1]} : vector<2x96xf32> to vector<2x32xf32>
    %206 = arith.addf %204, %205 : vector<2x32xf32>
    %207 = arith.negf %206 : vector<2x32xf32>
    %208 = math.exp %207 : vector<2x32xf32>
    %cst_47 = arith.constant 1.000000e+00 : f32
    %209 = vector.broadcast %cst_47 : f32 to vector<2x32xf32>
    %210 = arith.addf %209, %208 : vector<2x32xf32>
    %211 = arith.divf %209, %210 : vector<2x32xf32>
    %212 = vector.extract_strided_slice %191 {offsets = [0, 64], sizes = [2, 32], strides = [1, 1]} : vector<2x96xf32> to vector<2x32xf32>
    %213 = vector.extract_strided_slice %195 {offsets = [0, 64], sizes = [2, 32], strides = [1, 1]} : vector<2x96xf32> to vector<2x32xf32>
    %214 = arith.mulf %203, %213 : vector<2x32xf32>
    %215 = arith.addf %212, %214 : vector<2x32xf32>
    %216 = math.tanh %215 : vector<2x32xf32>
    %cst_48 = arith.constant 1.000000e+00 : f32
    %217 = vector.broadcast %cst_48 : f32 to vector<2x32xf32>
    %218 = arith.subf %217, %211 : vector<2x32xf32>
    %219 = arith.mulf %218, %216 : vector<2x32xf32>
    %220 = arith.mulf %211, %184 : vector<2x32xf32>
    %221 = arith.addf %219, %220 : vector<2x32xf32>
    %222 = arith.index_cast %c5_i32 : i32 to index
    %c0_49 = arith.constant 0 : index
    %c0_50 = arith.constant 0 : index
    %223 = vector.load %arg3[%222, %c0_49, %c0_50] : memref<16x2x32xf32, #tpu.memory_space<vmem>>, vector<1x2x32xf32>
    %224 = vector.shape_cast %223 : vector<1x2x32xf32> to vector<2x32xf32>
    %225 = vector.shape_cast %221 : vector<2x32xf32> to vector<1x2x32xf32>
    tpu.vector_store %arg3[%222, %c0_49, %c0_50], %225 {strides = array<i32>} : memref<16x2x32xf32, #tpu.memory_space<vmem>>, vector<1x2x32xf32>,
    %c6_i32 = arith.constant 6 : i32
    %226 = arith.index_cast %c6_i32 : i32 to index
    %c0_51 = arith.constant 0 : index
    %c0_52 = arith.constant 0 : index
    %227 = vector.load %arg0[%226, %c0_51, %c0_52] : memref<16x2x96xf32, #tpu.memory_space<vmem>>, vector<1x2x96xf32>
    %228 = vector.shape_cast %227 : vector<1x2x96xf32> to vector<2x96xf32>
    %229 = arith.truncf %221 : vector<2x32xf32> to vector<2x32xbf16>
    %cst_53 = arith.constant dense<0.000000e+00> : vector<2x96xf32>
    %230 = tpu.matmul %229, %1, %cst_53 {dimension_numbers = #tpu.dot_dimension_numbers<[1], [0], [0], [1], [0, 0, 1, 1], [], []>} : vector<2x32xbf16>, vector<32x96xbf16>, vector<2x96xf32> -> vector<2x96xf32>
    %231 = vector.broadcast %2 : vector<1x96xf32> to vector<2x96xf32>
    %232 = arith.addf %230, %231 : vector<2x96xf32>
    %233 = vector.extract_strided_slice %228 {offsets = [0, 0], sizes = [2, 32], strides = [1, 1]} : vector<2x96xf32> to vector<2x32xf32>
    %234 = vector.extract_strided_slice %232 {offsets = [0, 0], sizes = [2, 32], strides = [1, 1]} : vector<2x96xf32> to vector<2x32xf32>
    %235 = arith.addf %233, %234 : vector<2x32xf32>
    %236 = arith.negf %235 : vector<2x32xf32>
    %237 = math.exp %236 : vector<2x32xf32>
    %cst_54 = arith.constant 1.000000e+00 : f32
    %238 = vector.broadcast %cst_54 : f32 to vector<2x32xf32>
    %239 = arith.addf %238, %237 : vector<2x32xf32>
    %240 = arith.divf %238, %239 : vector<2x32xf32>
    %241 = vector.extract_strided_slice %228 {offsets = [0, 32], sizes = [2, 32], strides = [1, 1]} : vector<2x96xf32> to vector<2x32xf32>
    %242 = vector.extract_strided_slice %232 {offsets = [0, 32], sizes = [2, 32], strides = [1, 1]} : vector<2x96xf32> to vector<2x32xf32>
    %243 = arith.addf %241, %242 : vector<2x32xf32>
    %244 = arith.negf %243 : vector<2x32xf32>
    %245 = math.exp %244 : vector<2x32xf32>
    %cst_55 = arith.constant 1.000000e+00 : f32
    %246 = vector.broadcast %cst_55 : f32 to vector<2x32xf32>
    %247 = arith.addf %246, %245 : vector<2x32xf32>
    %248 = arith.divf %246, %247 : vector<2x32xf32>
    %249 = vector.extract_strided_slice %228 {offsets = [0, 64], sizes = [2, 32], strides = [1, 1]} : vector<2x96xf32> to vector<2x32xf32>
    %250 = vector.extract_strided_slice %232 {offsets = [0, 64], sizes = [2, 32], strides = [1, 1]} : vector<2x96xf32> to vector<2x32xf32>
    %251 = arith.mulf %240, %250 : vector<2x32xf32>
    %252 = arith.addf %249, %251 : vector<2x32xf32>
    %253 = math.tanh %252 : vector<2x32xf32>
    %cst_56 = arith.constant 1.000000e+00 : f32
    %254 = vector.broadcast %cst_56 : f32 to vector<2x32xf32>
    %255 = arith.subf %254, %248 : vector<2x32xf32>
    %256 = arith.mulf %255, %253 : vector<2x32xf32>
    %257 = arith.mulf %248, %221 : vector<2x32xf32>
    %258 = arith.addf %256, %257 : vector<2x32xf32>
    %259 = arith.index_cast %c6_i32 : i32 to index
    %c0_57 = arith.constant 0 : index
    %c0_58 = arith.constant 0 : index
    %260 = vector.load %arg3[%259, %c0_57, %c0_58] : memref<16x2x32xf32, #tpu.memory_space<vmem>>, vector<1x2x32xf32>
    %261 = vector.shape_cast %260 : vector<1x2x32xf32> to vector<2x32xf32>
    %262 = vector.shape_cast %258 : vector<2x32xf32> to vector<1x2x32xf32>
    tpu.vector_store %arg3[%259, %c0_57, %c0_58], %262 {strides = array<i32>} : memref<16x2x32xf32, #tpu.memory_space<vmem>>, vector<1x2x32xf32>,
    %c7_i32 = arith.constant 7 : i32
    %263 = arith.index_cast %c7_i32 : i32 to index
    %c0_59 = arith.constant 0 : index
    %c0_60 = arith.constant 0 : index
    %264 = vector.load %arg0[%263, %c0_59, %c0_60] : memref<16x2x96xf32, #tpu.memory_space<vmem>>, vector<1x2x96xf32>
    %265 = vector.shape_cast %264 : vector<1x2x96xf32> to vector<2x96xf32>
    %266 = arith.truncf %258 : vector<2x32xf32> to vector<2x32xbf16>
    %cst_61 = arith.constant dense<0.000000e+00> : vector<2x96xf32>
    %267 = tpu.matmul %266, %1, %cst_61 {dimension_numbers = #tpu.dot_dimension_numbers<[1], [0], [0], [1], [0, 0, 1, 1], [], []>} : vector<2x32xbf16>, vector<32x96xbf16>, vector<2x96xf32> -> vector<2x96xf32>
    %268 = vector.broadcast %2 : vector<1x96xf32> to vector<2x96xf32>
    %269 = arith.addf %267, %268 : vector<2x96xf32>
    %270 = vector.extract_strided_slice %265 {offsets = [0, 0], sizes = [2, 32], strides = [1, 1]} : vector<2x96xf32> to vector<2x32xf32>
    %271 = vector.extract_strided_slice %269 {offsets = [0, 0], sizes = [2, 32], strides = [1, 1]} : vector<2x96xf32> to vector<2x32xf32>
    %272 = arith.addf %270, %271 : vector<2x32xf32>
    %273 = arith.negf %272 : vector<2x32xf32>
    %274 = math.exp %273 : vector<2x32xf32>
    %cst_62 = arith.constant 1.000000e+00 : f32
    %275 = vector.broadcast %cst_62 : f32 to vector<2x32xf32>
    %276 = arith.addf %275, %274 : vector<2x32xf32>
    %277 = arith.divf %275, %276 : vector<2x32xf32>
    %278 = vector.extract_strided_slice %265 {offsets = [0, 32], sizes = [2, 32], strides = [1, 1]} : vector<2x96xf32> to vector<2x32xf32>
    %279 = vector.extract_strided_slice %269 {offsets = [0, 32], sizes = [2, 32], strides = [1, 1]} : vector<2x96xf32> to vector<2x32xf32>
    %280 = arith.addf %278, %279 : vector<2x32xf32>
    %281 = arith.negf %280 : vector<2x32xf32>
    %282 = math.exp %281 : vector<2x32xf32>
    %cst_63 = arith.constant 1.000000e+00 : f32
    %283 = vector.broadcast %cst_63 : f32 to vector<2x32xf32>
    %284 = arith.addf %283, %282 : vector<2x32xf32>
    %285 = arith.divf %283, %284 : vector<2x32xf32>
    %286 = vector.extract_strided_slice %265 {offsets = [0, 64], sizes = [2, 32], strides = [1, 1]} : vector<2x96xf32> to vector<2x32xf32>
    %287 = vector.extract_strided_slice %269 {offsets = [0, 64], sizes = [2, 32], strides = [1, 1]} : vector<2x96xf32> to vector<2x32xf32>
    %288 = arith.mulf %277, %287 : vector<2x32xf32>
    %289 = arith.addf %286, %288 : vector<2x32xf32>
    %290 = math.tanh %289 : vector<2x32xf32>
    %cst_64 = arith.constant 1.000000e+00 : f32
    %291 = vector.broadcast %cst_64 : f32 to vector<2x32xf32>
    %292 = arith.subf %291, %285 : vector<2x32xf32>
    %293 = arith.mulf %292, %290 : vector<2x32xf32>
    %294 = arith.mulf %285, %258 : vector<2x32xf32>
    %295 = arith.addf %293, %294 : vector<2x32xf32>
    %296 = arith.index_cast %c7_i32 : i32 to index
    %c0_65 = arith.constant 0 : index
    %c0_66 = arith.constant 0 : index
    %297 = vector.load %arg3[%296, %c0_65, %c0_66] : memref<16x2x32xf32, #tpu.memory_space<vmem>>, vector<1x2x32xf32>
    %298 = vector.shape_cast %297 : vector<1x2x32xf32> to vector<2x32xf32>
    %299 = vector.shape_cast %295 : vector<2x32xf32> to vector<1x2x32xf32>
    tpu.vector_store %arg3[%296, %c0_65, %c0_66], %299 {strides = array<i32>} : memref<16x2x32xf32, #tpu.memory_space<vmem>>, vector<1x2x32xf32>,
    %c8_i32 = arith.constant 8 : i32
    %300 = arith.index_cast %c8_i32 : i32 to index
    %c0_67 = arith.constant 0 : index
    %c0_68 = arith.constant 0 : index
    %301 = vector.load %arg0[%300, %c0_67, %c0_68] : memref<16x2x96xf32, #tpu.memory_space<vmem>>, vector<1x2x96xf32>
    %302 = vector.shape_cast %301 : vector<1x2x96xf32> to vector<2x96xf32>
    %303 = arith.truncf %295 : vector<2x32xf32> to vector<2x32xbf16>
    %cst_69 = arith.constant dense<0.000000e+00> : vector<2x96xf32>
    %304 = tpu.matmul %303, %1, %cst_69 {dimension_numbers = #tpu.dot_dimension_numbers<[1], [0], [0], [1], [0, 0, 1, 1], [], []>} : vector<2x32xbf16>, vector<32x96xbf16>, vector<2x96xf32> -> vector<2x96xf32>
    %305 = vector.broadcast %2 : vector<1x96xf32> to vector<2x96xf32>
    %306 = arith.addf %304, %305 : vector<2x96xf32>
    %307 = vector.extract_strided_slice %302 {offsets = [0, 0], sizes = [2, 32], strides = [1, 1]} : vector<2x96xf32> to vector<2x32xf32>
    %308 = vector.extract_strided_slice %306 {offsets = [0, 0], sizes = [2, 32], strides = [1, 1]} : vector<2x96xf32> to vector<2x32xf32>
    %309 = arith.addf %307, %308 : vector<2x32xf32>
    %310 = arith.negf %309 : vector<2x32xf32>
    %311 = math.exp %310 : vector<2x32xf32>
    %cst_70 = arith.constant 1.000000e+00 : f32
    %312 = vector.broadcast %cst_70 : f32 to vector<2x32xf32>
    %313 = arith.addf %312, %311 : vector<2x32xf32>
    %314 = arith.divf %312, %313 : vector<2x32xf32>
    %315 = vector.extract_strided_slice %302 {offsets = [0, 32], sizes = [2, 32], strides = [1, 1]} : vector<2x96xf32> to vector<2x32xf32>
    %316 = vector.extract_strided_slice %306 {offsets = [0, 32], sizes = [2, 32], strides = [1, 1]} : vector<2x96xf32> to vector<2x32xf32>
    %317 = arith.addf %315, %316 : vector<2x32xf32>
    %318 = arith.negf %317 : vector<2x32xf32>
    %319 = math.exp %318 : vector<2x32xf32>
    %cst_71 = arith.constant 1.000000e+00 : f32
    %320 = vector.broadcast %cst_71 : f32 to vector<2x32xf32>
    %321 = arith.addf %320, %319 : vector<2x32xf32>
    %322 = arith.divf %320, %321 : vector<2x32xf32>
    %323 = vector.extract_strided_slice %302 {offsets = [0, 64], sizes = [2, 32], strides = [1, 1]} : vector<2x96xf32> to vector<2x32xf32>
    %324 = vector.extract_strided_slice %306 {offsets = [0, 64], sizes = [2, 32], strides = [1, 1]} : vector<2x96xf32> to vector<2x32xf32>
    %325 = arith.mulf %314, %324 : vector<2x32xf32>
    %326 = arith.addf %323, %325 : vector<2x32xf32>
    %327 = math.tanh %326 : vector<2x32xf32>
    %cst_72 = arith.constant 1.000000e+00 : f32
    %328 = vector.broadcast %cst_72 : f32 to vector<2x32xf32>
    %329 = arith.subf %328, %322 : vector<2x32xf32>
    %330 = arith.mulf %329, %327 : vector<2x32xf32>
    %331 = arith.mulf %322, %295 : vector<2x32xf32>
    %332 = arith.addf %330, %331 : vector<2x32xf32>
    %333 = arith.index_cast %c8_i32 : i32 to index
    %c0_73 = arith.constant 0 : index
    %c0_74 = arith.constant 0 : index
    %334 = vector.load %arg3[%333, %c0_73, %c0_74] : memref<16x2x32xf32, #tpu.memory_space<vmem>>, vector<1x2x32xf32>
    %335 = vector.shape_cast %334 : vector<1x2x32xf32> to vector<2x32xf32>
    %336 = vector.shape_cast %332 : vector<2x32xf32> to vector<1x2x32xf32>
    tpu.vector_store %arg3[%333, %c0_73, %c0_74], %336 {strides = array<i32>} : memref<16x2x32xf32, #tpu.memory_space<vmem>>, vector<1x2x32xf32>,
    %c9_i32 = arith.constant 9 : i32
    %337 = arith.index_cast %c9_i32 : i32 to index
    %c0_75 = arith.constant 0 : index
    %c0_76 = arith.constant 0 : index
    %338 = vector.load %arg0[%337, %c0_75, %c0_76] : memref<16x2x96xf32, #tpu.memory_space<vmem>>, vector<1x2x96xf32>
    %339 = vector.shape_cast %338 : vector<1x2x96xf32> to vector<2x96xf32>
    %340 = arith.truncf %332 : vector<2x32xf32> to vector<2x32xbf16>
    %cst_77 = arith.constant dense<0.000000e+00> : vector<2x96xf32>
    %341 = tpu.matmul %340, %1, %cst_77 {dimension_numbers = #tpu.dot_dimension_numbers<[1], [0], [0], [1], [0, 0, 1, 1], [], []>} : vector<2x32xbf16>, vector<32x96xbf16>, vector<2x96xf32> -> vector<2x96xf32>
    %342 = vector.broadcast %2 : vector<1x96xf32> to vector<2x96xf32>
    %343 = arith.addf %341, %342 : vector<2x96xf32>
    %344 = vector.extract_strided_slice %339 {offsets = [0, 0], sizes = [2, 32], strides = [1, 1]} : vector<2x96xf32> to vector<2x32xf32>
    %345 = vector.extract_strided_slice %343 {offsets = [0, 0], sizes = [2, 32], strides = [1, 1]} : vector<2x96xf32> to vector<2x32xf32>
    %346 = arith.addf %344, %345 : vector<2x32xf32>
    %347 = arith.negf %346 : vector<2x32xf32>
    %348 = math.exp %347 : vector<2x32xf32>
    %cst_78 = arith.constant 1.000000e+00 : f32
    %349 = vector.broadcast %cst_78 : f32 to vector<2x32xf32>
    %350 = arith.addf %349, %348 : vector<2x32xf32>
    %351 = arith.divf %349, %350 : vector<2x32xf32>
    %352 = vector.extract_strided_slice %339 {offsets = [0, 32], sizes = [2, 32], strides = [1, 1]} : vector<2x96xf32> to vector<2x32xf32>
    %353 = vector.extract_strided_slice %343 {offsets = [0, 32], sizes = [2, 32], strides = [1, 1]} : vector<2x96xf32> to vector<2x32xf32>
    %354 = arith.addf %352, %353 : vector<2x32xf32>
    %355 = arith.negf %354 : vector<2x32xf32>
    %356 = math.exp %355 : vector<2x32xf32>
    %cst_79 = arith.constant 1.000000e+00 : f32
    %357 = vector.broadcast %cst_79 : f32 to vector<2x32xf32>
    %358 = arith.addf %357, %356 : vector<2x32xf32>
    %359 = arith.divf %357, %358 : vector<2x32xf32>
    %360 = vector.extract_strided_slice %339 {offsets = [0, 64], sizes = [2, 32], strides = [1, 1]} : vector<2x96xf32> to vector<2x32xf32>
    %361 = vector.extract_strided_slice %343 {offsets = [0, 64], sizes = [2, 32], strides = [1, 1]} : vector<2x96xf32> to vector<2x32xf32>
    %362 = arith.mulf %351, %361 : vector<2x32xf32>
    %363 = arith.addf %360, %362 : vector<2x32xf32>
    %364 = math.tanh %363 : vector<2x32xf32>
    %cst_80 = arith.constant 1.000000e+00 : f32
    %365 = vector.broadcast %cst_80 : f32 to vector<2x32xf32>
    %366 = arith.subf %365, %359 : vector<2x32xf32>
    %367 = arith.mulf %366, %364 : vector<2x32xf32>
    %368 = arith.mulf %359, %332 : vector<2x32xf32>
    %369 = arith.addf %367, %368 : vector<2x32xf32>
    %370 = arith.index_cast %c9_i32 : i32 to index
    %c0_81 = arith.constant 0 : index
    %c0_82 = arith.constant 0 : index
    %371 = vector.load %arg3[%370, %c0_81, %c0_82] : memref<16x2x32xf32, #tpu.memory_space<vmem>>, vector<1x2x32xf32>
    %372 = vector.shape_cast %371 : vector<1x2x32xf32> to vector<2x32xf32>
    %373 = vector.shape_cast %369 : vector<2x32xf32> to vector<1x2x32xf32>
    tpu.vector_store %arg3[%370, %c0_81, %c0_82], %373 {strides = array<i32>} : memref<16x2x32xf32, #tpu.memory_space<vmem>>, vector<1x2x32xf32>,
    %c10_i32 = arith.constant 10 : i32
    %374 = arith.index_cast %c10_i32 : i32 to index
    %c0_83 = arith.constant 0 : index
    %c0_84 = arith.constant 0 : index
    %375 = vector.load %arg0[%374, %c0_83, %c0_84] : memref<16x2x96xf32, #tpu.memory_space<vmem>>, vector<1x2x96xf32>
    %376 = vector.shape_cast %375 : vector<1x2x96xf32> to vector<2x96xf32>
    %377 = arith.truncf %369 : vector<2x32xf32> to vector<2x32xbf16>
    %cst_85 = arith.constant dense<0.000000e+00> : vector<2x96xf32>
    %378 = tpu.matmul %377, %1, %cst_85 {dimension_numbers = #tpu.dot_dimension_numbers<[1], [0], [0], [1], [0, 0, 1, 1], [], []>} : vector<2x32xbf16>, vector<32x96xbf16>, vector<2x96xf32> -> vector<2x96xf32>
    %379 = vector.broadcast %2 : vector<1x96xf32> to vector<2x96xf32>
    %380 = arith.addf %378, %379 : vector<2x96xf32>
    %381 = vector.extract_strided_slice %376 {offsets = [0, 0], sizes = [2, 32], strides = [1, 1]} : vector<2x96xf32> to vector<2x32xf32>
    %382 = vector.extract_strided_slice %380 {offsets = [0, 0], sizes = [2, 32], strides = [1, 1]} : vector<2x96xf32> to vector<2x32xf32>
    %383 = arith.addf %381, %382 : vector<2x32xf32>
    %384 = arith.negf %383 : vector<2x32xf32>
    %385 = math.exp %384 : vector<2x32xf32>
    %cst_86 = arith.constant 1.000000e+00 : f32
    %386 = vector.broadcast %cst_86 : f32 to vector<2x32xf32>
    %387 = arith.addf %386, %385 : vector<2x32xf32>
    %388 = arith.divf %386, %387 : vector<2x32xf32>
    %389 = vector.extract_strided_slice %376 {offsets = [0, 32], sizes = [2, 32], strides = [1, 1]} : vector<2x96xf32> to vector<2x32xf32>
    %390 = vector.extract_strided_slice %380 {offsets = [0, 32], sizes = [2, 32], strides = [1, 1]} : vector<2x96xf32> to vector<2x32xf32>
    %391 = arith.addf %389, %390 : vector<2x32xf32>
    %392 = arith.negf %391 : vector<2x32xf32>
    %393 = math.exp %392 : vector<2x32xf32>
    %cst_87 = arith.constant 1.000000e+00 : f32
    %394 = vector.broadcast %cst_87 : f32 to vector<2x32xf32>
    %395 = arith.addf %394, %393 : vector<2x32xf32>
    %396 = arith.divf %394, %395 : vector<2x32xf32>
    %397 = vector.extract_strided_slice %376 {offsets = [0, 64], sizes = [2, 32], strides = [1, 1]} : vector<2x96xf32> to vector<2x32xf32>
    %398 = vector.extract_strided_slice %380 {offsets = [0, 64], sizes = [2, 32], strides = [1, 1]} : vector<2x96xf32> to vector<2x32xf32>
    %399 = arith.mulf %388, %398 : vector<2x32xf32>
    %400 = arith.addf %397, %399 : vector<2x32xf32>
    %401 = math.tanh %400 : vector<2x32xf32>
    %cst_88 = arith.constant 1.000000e+00 : f32
    %402 = vector.broadcast %cst_88 : f32 to vector<2x32xf32>
    %403 = arith.subf %402, %396 : vector<2x32xf32>
    %404 = arith.mulf %403, %401 : vector<2x32xf32>
    %405 = arith.mulf %396, %369 : vector<2x32xf32>
    %406 = arith.addf %404, %405 : vector<2x32xf32>
    %407 = arith.index_cast %c10_i32 : i32 to index
    %c0_89 = arith.constant 0 : index
    %c0_90 = arith.constant 0 : index
    %408 = vector.load %arg3[%407, %c0_89, %c0_90] : memref<16x2x32xf32, #tpu.memory_space<vmem>>, vector<1x2x32xf32>
    %409 = vector.shape_cast %408 : vector<1x2x32xf32> to vector<2x32xf32>
    %410 = vector.shape_cast %406 : vector<2x32xf32> to vector<1x2x32xf32>
    tpu.vector_store %arg3[%407, %c0_89, %c0_90], %410 {strides = array<i32>} : memref<16x2x32xf32, #tpu.memory_space<vmem>>, vector<1x2x32xf32>,
    %c11_i32 = arith.constant 11 : i32
    %411 = arith.index_cast %c11_i32 : i32 to index
    %c0_91 = arith.constant 0 : index
    %c0_92 = arith.constant 0 : index
    %412 = vector.load %arg0[%411, %c0_91, %c0_92] : memref<16x2x96xf32, #tpu.memory_space<vmem>>, vector<1x2x96xf32>
    %413 = vector.shape_cast %412 : vector<1x2x96xf32> to vector<2x96xf32>
    %414 = arith.truncf %406 : vector<2x32xf32> to vector<2x32xbf16>
    %cst_93 = arith.constant dense<0.000000e+00> : vector<2x96xf32>
    %415 = tpu.matmul %414, %1, %cst_93 {dimension_numbers = #tpu.dot_dimension_numbers<[1], [0], [0], [1], [0, 0, 1, 1], [], []>} : vector<2x32xbf16>, vector<32x96xbf16>, vector<2x96xf32> -> vector<2x96xf32>
    %416 = vector.broadcast %2 : vector<1x96xf32> to vector<2x96xf32>
    %417 = arith.addf %415, %416 : vector<2x96xf32>
    %418 = vector.extract_strided_slice %413 {offsets = [0, 0], sizes = [2, 32], strides = [1, 1]} : vector<2x96xf32> to vector<2x32xf32>
    %419 = vector.extract_strided_slice %417 {offsets = [0, 0], sizes = [2, 32], strides = [1, 1]} : vector<2x96xf32> to vector<2x32xf32>
    %420 = arith.addf %418, %419 : vector<2x32xf32>
    %421 = arith.negf %420 : vector<2x32xf32>
    %422 = math.exp %421 : vector<2x32xf32>
    %cst_94 = arith.constant 1.000000e+00 : f32
    %423 = vector.broadcast %cst_94 : f32 to vector<2x32xf32>
    %424 = arith.addf %423, %422 : vector<2x32xf32>
    %425 = arith.divf %423, %424 : vector<2x32xf32>
    %426 = vector.extract_strided_slice %413 {offsets = [0, 32], sizes = [2, 32], strides = [1, 1]} : vector<2x96xf32> to vector<2x32xf32>
    %427 = vector.extract_strided_slice %417 {offsets = [0, 32], sizes = [2, 32], strides = [1, 1]} : vector<2x96xf32> to vector<2x32xf32>
    %428 = arith.addf %426, %427 : vector<2x32xf32>
    %429 = arith.negf %428 : vector<2x32xf32>
    %430 = math.exp %429 : vector<2x32xf32>
    %cst_95 = arith.constant 1.000000e+00 : f32
    %431 = vector.broadcast %cst_95 : f32 to vector<2x32xf32>
    %432 = arith.addf %431, %430 : vector<2x32xf32>
    %433 = arith.divf %431, %432 : vector<2x32xf32>
    %434 = vector.extract_strided_slice %413 {offsets = [0, 64], sizes = [2, 32], strides = [1, 1]} : vector<2x96xf32> to vector<2x32xf32>
    %435 = vector.extract_strided_slice %417 {offsets = [0, 64], sizes = [2, 32], strides = [1, 1]} : vector<2x96xf32> to vector<2x32xf32>
    %436 = arith.mulf %425, %435 : vector<2x32xf32>
    %437 = arith.addf %434, %436 : vector<2x32xf32>
    %438 = math.tanh %437 : vector<2x32xf32>
    %cst_96 = arith.constant 1.000000e+00 : f32
    %439 = vector.broadcast %cst_96 : f32 to vector<2x32xf32>
    %440 = arith.subf %439, %433 : vector<2x32xf32>
    %441 = arith.mulf %440, %438 : vector<2x32xf32>
    %442 = arith.mulf %433, %406 : vector<2x32xf32>
    %443 = arith.addf %441, %442 : vector<2x32xf32>
    %444 = arith.index_cast %c11_i32 : i32 to index
    %c0_97 = arith.constant 0 : index
    %c0_98 = arith.constant 0 : index
    %445 = vector.load %arg3[%444, %c0_97, %c0_98] : memref<16x2x32xf32, #tpu.memory_space<vmem>>, vector<1x2x32xf32>
    %446 = vector.shape_cast %445 : vector<1x2x32xf32> to vector<2x32xf32>
    %447 = vector.shape_cast %443 : vector<2x32xf32> to vector<1x2x32xf32>
    tpu.vector_store %arg3[%444, %c0_97, %c0_98], %447 {strides = array<i32>} : memref<16x2x32xf32, #tpu.memory_space<vmem>>, vector<1x2x32xf32>,
    %c12_i32 = arith.constant 12 : i32
    %448 = arith.index_cast %c12_i32 : i32 to index
    %c0_99 = arith.constant 0 : index
    %c0_100 = arith.constant 0 : index
    %449 = vector.load %arg0[%448, %c0_99, %c0_100] : memref<16x2x96xf32, #tpu.memory_space<vmem>>, vector<1x2x96xf32>
    %450 = vector.shape_cast %449 : vector<1x2x96xf32> to vector<2x96xf32>
    %451 = arith.truncf %443 : vector<2x32xf32> to vector<2x32xbf16>
    %cst_101 = arith.constant dense<0.000000e+00> : vector<2x96xf32>
    %452 = tpu.matmul %451, %1, %cst_101 {dimension_numbers = #tpu.dot_dimension_numbers<[1], [0], [0], [1], [0, 0, 1, 1], [], []>} : vector<2x32xbf16>, vector<32x96xbf16>, vector<2x96xf32> -> vector<2x96xf32>
    %453 = vector.broadcast %2 : vector<1x96xf32> to vector<2x96xf32>
    %454 = arith.addf %452, %453 : vector<2x96xf32>
    %455 = vector.extract_strided_slice %450 {offsets = [0, 0], sizes = [2, 32], strides = [1, 1]} : vector<2x96xf32> to vector<2x32xf32>
    %456 = vector.extract_strided_slice %454 {offsets = [0, 0], sizes = [2, 32], strides = [1, 1]} : vector<2x96xf32> to vector<2x32xf32>
    %457 = arith.addf %455, %456 : vector<2x32xf32>
    %458 = arith.negf %457 : vector<2x32xf32>
    %459 = math.exp %458 : vector<2x32xf32>
    %cst_102 = arith.constant 1.000000e+00 : f32
    %460 = vector.broadcast %cst_102 : f32 to vector<2x32xf32>
    %461 = arith.addf %460, %459 : vector<2x32xf32>
    %462 = arith.divf %460, %461 : vector<2x32xf32>
    %463 = vector.extract_strided_slice %450 {offsets = [0, 32], sizes = [2, 32], strides = [1, 1]} : vector<2x96xf32> to vector<2x32xf32>
    %464 = vector.extract_strided_slice %454 {offsets = [0, 32], sizes = [2, 32], strides = [1, 1]} : vector<2x96xf32> to vector<2x32xf32>
    %465 = arith.addf %463, %464 : vector<2x32xf32>
    %466 = arith.negf %465 : vector<2x32xf32>
    %467 = math.exp %466 : vector<2x32xf32>
    %cst_103 = arith.constant 1.000000e+00 : f32
    %468 = vector.broadcast %cst_103 : f32 to vector<2x32xf32>
    %469 = arith.addf %468, %467 : vector<2x32xf32>
    %470 = arith.divf %468, %469 : vector<2x32xf32>
    %471 = vector.extract_strided_slice %450 {offsets = [0, 64], sizes = [2, 32], strides = [1, 1]} : vector<2x96xf32> to vector<2x32xf32>
    %472 = vector.extract_strided_slice %454 {offsets = [0, 64], sizes = [2, 32], strides = [1, 1]} : vector<2x96xf32> to vector<2x32xf32>
    %473 = arith.mulf %462, %472 : vector<2x32xf32>
    %474 = arith.addf %471, %473 : vector<2x32xf32>
    %475 = math.tanh %474 : vector<2x32xf32>
    %cst_104 = arith.constant 1.000000e+00 : f32
    %476 = vector.broadcast %cst_104 : f32 to vector<2x32xf32>
    %477 = arith.subf %476, %470 : vector<2x32xf32>
    %478 = arith.mulf %477, %475 : vector<2x32xf32>
    %479 = arith.mulf %470, %443 : vector<2x32xf32>
    %480 = arith.addf %478, %479 : vector<2x32xf32>
    %481 = arith.index_cast %c12_i32 : i32 to index
    %c0_105 = arith.constant 0 : index
    %c0_106 = arith.constant 0 : index
    %482 = vector.load %arg3[%481, %c0_105, %c0_106] : memref<16x2x32xf32, #tpu.memory_space<vmem>>, vector<1x2x32xf32>
    %483 = vector.shape_cast %482 : vector<1x2x32xf32> to vector<2x32xf32>
    %484 = vector.shape_cast %480 : vector<2x32xf32> to vector<1x2x32xf32>
    tpu.vector_store %arg3[%481, %c0_105, %c0_106], %484 {strides = array<i32>} : memref<16x2x32xf32, #tpu.memory_space<vmem>>, vector<1x2x32xf32>,
    %c13_i32 = arith.constant 13 : i32
    %485 = arith.index_cast %c13_i32 : i32 to index
    %c0_107 = arith.constant 0 : index
    %c0_108 = arith.constant 0 : index
    %486 = vector.load %arg0[%485, %c0_107, %c0_108] : memref<16x2x96xf32, #tpu.memory_space<vmem>>, vector<1x2x96xf32>
    %487 = vector.shape_cast %486 : vector<1x2x96xf32> to vector<2x96xf32>
    %488 = arith.truncf %480 : vector<2x32xf32> to vector<2x32xbf16>
    %cst_109 = arith.constant dense<0.000000e+00> : vector<2x96xf32>
    %489 = tpu.matmul %488, %1, %cst_109 {dimension_numbers = #tpu.dot_dimension_numbers<[1], [0], [0], [1], [0, 0, 1, 1], [], []>} : vector<2x32xbf16>, vector<32x96xbf16>, vector<2x96xf32> -> vector<2x96xf32>
    %490 = vector.broadcast %2 : vector<1x96xf32> to vector<2x96xf32>
    %491 = arith.addf %489, %490 : vector<2x96xf32>
    %492 = vector.extract_strided_slice %487 {offsets = [0, 0], sizes = [2, 32], strides = [1, 1]} : vector<2x96xf32> to vector<2x32xf32>
    %493 = vector.extract_strided_slice %491 {offsets = [0, 0], sizes = [2, 32], strides = [1, 1]} : vector<2x96xf32> to vector<2x32xf32>
    %494 = arith.addf %492, %493 : vector<2x32xf32>
    %495 = arith.negf %494 : vector<2x32xf32>
    %496 = math.exp %495 : vector<2x32xf32>
    %cst_110 = arith.constant 1.000000e+00 : f32
    %497 = vector.broadcast %cst_110 : f32 to vector<2x32xf32>
    %498 = arith.addf %497, %496 : vector<2x32xf32>
    %499 = arith.divf %497, %498 : vector<2x32xf32>
    %500 = vector.extract_strided_slice %487 {offsets = [0, 32], sizes = [2, 32], strides = [1, 1]} : vector<2x96xf32> to vector<2x32xf32>
    %501 = vector.extract_strided_slice %491 {offsets = [0, 32], sizes = [2, 32], strides = [1, 1]} : vector<2x96xf32> to vector<2x32xf32>
    %502 = arith.addf %500, %501 : vector<2x32xf32>
    %503 = arith.negf %502 : vector<2x32xf32>
    %504 = math.exp %503 : vector<2x32xf32>
    %cst_111 = arith.constant 1.000000e+00 : f32
    %505 = vector.broadcast %cst_111 : f32 to vector<2x32xf32>
    %506 = arith.addf %505, %504 : vector<2x32xf32>
    %507 = arith.divf %505, %506 : vector<2x32xf32>
    %508 = vector.extract_strided_slice %487 {offsets = [0, 64], sizes = [2, 32], strides = [1, 1]} : vector<2x96xf32> to vector<2x32xf32>
    %509 = vector.extract_strided_slice %491 {offsets = [0, 64], sizes = [2, 32], strides = [1, 1]} : vector<2x96xf32> to vector<2x32xf32>
    %510 = arith.mulf %499, %509 : vector<2x32xf32>
    %511 = arith.addf %508, %510 : vector<2x32xf32>
    %512 = math.tanh %511 : vector<2x32xf32>
    %cst_112 = arith.constant 1.000000e+00 : f32
    %513 = vector.broadcast %cst_112 : f32 to vector<2x32xf32>
    %514 = arith.subf %513, %507 : vector<2x32xf32>
    %515 = arith.mulf %514, %512 : vector<2x32xf32>
    %516 = arith.mulf %507, %480 : vector<2x32xf32>
    %517 = arith.addf %515, %516 : vector<2x32xf32>
    %518 = arith.index_cast %c13_i32 : i32 to index
    %c0_113 = arith.constant 0 : index
    %c0_114 = arith.constant 0 : index
    %519 = vector.load %arg3[%518, %c0_113, %c0_114] : memref<16x2x32xf32, #tpu.memory_space<vmem>>, vector<1x2x32xf32>
    %520 = vector.shape_cast %519 : vector<1x2x32xf32> to vector<2x32xf32>
    %521 = vector.shape_cast %517 : vector<2x32xf32> to vector<1x2x32xf32>
    tpu.vector_store %arg3[%518, %c0_113, %c0_114], %521 {strides = array<i32>} : memref<16x2x32xf32, #tpu.memory_space<vmem>>, vector<1x2x32xf32>,
    %c14_i32 = arith.constant 14 : i32
    %522 = arith.index_cast %c14_i32 : i32 to index
    %c0_115 = arith.constant 0 : index
    %c0_116 = arith.constant 0 : index
    %523 = vector.load %arg0[%522, %c0_115, %c0_116] : memref<16x2x96xf32, #tpu.memory_space<vmem>>, vector<1x2x96xf32>
    %524 = vector.shape_cast %523 : vector<1x2x96xf32> to vector<2x96xf32>
    %525 = arith.truncf %517 : vector<2x32xf32> to vector<2x32xbf16>
    %cst_117 = arith.constant dense<0.000000e+00> : vector<2x96xf32>
    %526 = tpu.matmul %525, %1, %cst_117 {dimension_numbers = #tpu.dot_dimension_numbers<[1], [0], [0], [1], [0, 0, 1, 1], [], []>} : vector<2x32xbf16>, vector<32x96xbf16>, vector<2x96xf32> -> vector<2x96xf32>
    %527 = vector.broadcast %2 : vector<1x96xf32> to vector<2x96xf32>
    %528 = arith.addf %526, %527 : vector<2x96xf32>
    %529 = vector.extract_strided_slice %524 {offsets = [0, 0], sizes = [2, 32], strides = [1, 1]} : vector<2x96xf32> to vector<2x32xf32>
    %530 = vector.extract_strided_slice %528 {offsets = [0, 0], sizes = [2, 32], strides = [1, 1]} : vector<2x96xf32> to vector<2x32xf32>
    %531 = arith.addf %529, %530 : vector<2x32xf32>
    %532 = arith.negf %531 : vector<2x32xf32>
    %533 = math.exp %532 : vector<2x32xf32>
    %cst_118 = arith.constant 1.000000e+00 : f32
    %534 = vector.broadcast %cst_118 : f32 to vector<2x32xf32>
    %535 = arith.addf %534, %533 : vector<2x32xf32>
    %536 = arith.divf %534, %535 : vector<2x32xf32>
    %537 = vector.extract_strided_slice %524 {offsets = [0, 32], sizes = [2, 32], strides = [1, 1]} : vector<2x96xf32> to vector<2x32xf32>
    %538 = vector.extract_strided_slice %528 {offsets = [0, 32], sizes = [2, 32], strides = [1, 1]} : vector<2x96xf32> to vector<2x32xf32>
    %539 = arith.addf %537, %538 : vector<2x32xf32>
    %540 = arith.negf %539 : vector<2x32xf32>
    %541 = math.exp %540 : vector<2x32xf32>
    %cst_119 = arith.constant 1.000000e+00 : f32
    %542 = vector.broadcast %cst_119 : f32 to vector<2x32xf32>
    %543 = arith.addf %542, %541 : vector<2x32xf32>
    %544 = arith.divf %542, %543 : vector<2x32xf32>
    %545 = vector.extract_strided_slice %524 {offsets = [0, 64], sizes = [2, 32], strides = [1, 1]} : vector<2x96xf32> to vector<2x32xf32>
    %546 = vector.extract_strided_slice %528 {offsets = [0, 64], sizes = [2, 32], strides = [1, 1]} : vector<2x96xf32> to vector<2x32xf32>
    %547 = arith.mulf %536, %546 : vector<2x32xf32>
    %548 = arith.addf %545, %547 : vector<2x32xf32>
    %549 = math.tanh %548 : vector<2x32xf32>
    %cst_120 = arith.constant 1.000000e+00 : f32
    %550 = vector.broadcast %cst_120 : f32 to vector<2x32xf32>
    %551 = arith.subf %550, %544 : vector<2x32xf32>
    %552 = arith.mulf %551, %549 : vector<2x32xf32>
    %553 = arith.mulf %544, %517 : vector<2x32xf32>
    %554 = arith.addf %552, %553 : vector<2x32xf32>
    %555 = arith.index_cast %c14_i32 : i32 to index
    %c0_121 = arith.constant 0 : index
    %c0_122 = arith.constant 0 : index
    %556 = vector.load %arg3[%555, %c0_121, %c0_122] : memref<16x2x32xf32, #tpu.memory_space<vmem>>, vector<1x2x32xf32>
    %557 = vector.shape_cast %556 : vector<1x2x32xf32> to vector<2x32xf32>
    %558 = vector.shape_cast %554 : vector<2x32xf32> to vector<1x2x32xf32>
    tpu.vector_store %arg3[%555, %c0_121, %c0_122], %558 {strides = array<i32>} : memref<16x2x32xf32, #tpu.memory_space<vmem>>, vector<1x2x32xf32>,
    %c15_i32 = arith.constant 15 : i32
    %559 = arith.index_cast %c15_i32 : i32 to index
    %c0_123 = arith.constant 0 : index
    %c0_124 = arith.constant 0 : index
    %560 = vector.load %arg0[%559, %c0_123, %c0_124] : memref<16x2x96xf32, #tpu.memory_space<vmem>>, vector<1x2x96xf32>
    %561 = vector.shape_cast %560 : vector<1x2x96xf32> to vector<2x96xf32>
    %562 = arith.truncf %554 : vector<2x32xf32> to vector<2x32xbf16>
    %cst_125 = arith.constant dense<0.000000e+00> : vector<2x96xf32>
    %563 = tpu.matmul %562, %1, %cst_125 {dimension_numbers = #tpu.dot_dimension_numbers<[1], [0], [0], [1], [0, 0, 1, 1], [], []>} : vector<2x32xbf16>, vector<32x96xbf16>, vector<2x96xf32> -> vector<2x96xf32>
    %564 = vector.broadcast %2 : vector<1x96xf32> to vector<2x96xf32>
    %565 = arith.addf %563, %564 : vector<2x96xf32>
    %566 = vector.extract_strided_slice %561 {offsets = [0, 0], sizes = [2, 32], strides = [1, 1]} : vector<2x96xf32> to vector<2x32xf32>
    %567 = vector.extract_strided_slice %565 {offsets = [0, 0], sizes = [2, 32], strides = [1, 1]} : vector<2x96xf32> to vector<2x32xf32>
    %568 = arith.addf %566, %567 : vector<2x32xf32>
    %569 = arith.negf %568 : vector<2x32xf32>
    %570 = math.exp %569 : vector<2x32xf32>
    %cst_126 = arith.constant 1.000000e+00 : f32
    %571 = vector.broadcast %cst_126 : f32 to vector<2x32xf32>
    %572 = arith.addf %571, %570 : vector<2x32xf32>
    %573 = arith.divf %571, %572 : vector<2x32xf32>
    %574 = vector.extract_strided_slice %561 {offsets = [0, 32], sizes = [2, 32], strides = [1, 1]} : vector<2x96xf32> to vector<2x32xf32>
    %575 = vector.extract_strided_slice %565 {offsets = [0, 32], sizes = [2, 32], strides = [1, 1]} : vector<2x96xf32> to vector<2x32xf32>
    %576 = arith.addf %574, %575 : vector<2x32xf32>
    %577 = arith.negf %576 : vector<2x32xf32>
    %578 = math.exp %577 : vector<2x32xf32>
    %cst_127 = arith.constant 1.000000e+00 : f32
    %579 = vector.broadcast %cst_127 : f32 to vector<2x32xf32>
    %580 = arith.addf %579, %578 : vector<2x32xf32>
    %581 = arith.divf %579, %580 : vector<2x32xf32>
    %582 = vector.extract_strided_slice %561 {offsets = [0, 64], sizes = [2, 32], strides = [1, 1]} : vector<2x96xf32> to vector<2x32xf32>
    %583 = vector.extract_strided_slice %565 {offsets = [0, 64], sizes = [2, 32], strides = [1, 1]} : vector<2x96xf32> to vector<2x32xf32>
    %584 = arith.mulf %573, %583 : vector<2x32xf32>
    %585 = arith.addf %582, %584 : vector<2x32xf32>
    %586 = math.tanh %585 : vector<2x32xf32>
    %cst_128 = arith.constant 1.000000e+00 : f32
    %587 = vector.broadcast %cst_128 : f32 to vector<2x32xf32>
    %588 = arith.subf %587, %581 : vector<2x32xf32>
    %589 = arith.mulf %588, %586 : vector<2x32xf32>
    %590 = arith.mulf %581, %554 : vector<2x32xf32>
    %591 = arith.addf %589, %590 : vector<2x32xf32>
    %592 = arith.index_cast %c15_i32 : i32 to index
    %c0_129 = arith.constant 0 : index
    %c0_130 = arith.constant 0 : index
    %593 = vector.load %arg3[%592, %c0_129, %c0_130] : memref<16x2x32xf32, #tpu.memory_space<vmem>>, vector<1x2x32xf32>
    %594 = vector.shape_cast %593 : vector<1x2x32xf32> to vector<2x32xf32>
    %595 = vector.shape_cast %591 : vector<2x32xf32> to vector<1x2x32xf32>
    tpu.vector_store %arg3[%592, %c0_129, %c0_130], %595 {strides = array<i32>} : memref<16x2x32xf32, #tpu.memory_space<vmem>>, vector<1x2x32xf32>,
    %c16_i32 = arith.constant 16 : i32
    return
  }
}

module attributes {stable_mosaic.version = 11 : i64} {
  func.func @_attn_readout_kernel(%arg0: i32, %arg1: memref<1x16x32xf32, #tpu.memory_space<vmem>>, %arg2: memref<1x15x32xf32, #tpu.memory_space<vmem>>, %arg3: memref<32x32xf32, #tpu.memory_space<vmem>>, %arg4: memref<1x32xf32, #tpu.memory_space<vmem>>, %arg5: memref<32x32xf32, #tpu.memory_space<vmem>>, %arg6: memref<1x32xf32, #tpu.memory_space<vmem>>, %arg7: memref<32x16xf32, #tpu.memory_space<vmem>>, %arg8: memref<32x16xf32, #tpu.memory_space<vmem>>, %arg9: memref<1x16xf32, #tpu.memory_space<vmem>>, %arg10: memref<32x16xf32, #tpu.memory_space<vmem>>, %arg11: memref<32x16xf32, #tpu.memory_space<vmem>>, %arg12: memref<1x16xf32, #tpu.memory_space<vmem>>, %arg13: memref<8x16xf32, #tpu.memory_space<vmem>>, %arg14: memref<8x16xf32, #tpu.memory_space<vmem>>, %arg15: memref<8x16xf32, #tpu.memory_space<vmem>>, %arg16: memref<8x16xf32, #tpu.memory_space<vmem>>, %arg17: memref<1x8xf32, #tpu.memory_space<vmem>>, %arg18: memref<1x1x8xf32, #tpu.memory_space<vmem>>) attributes {dimension_semantics = [#tpu.dimension_semantics<parallel>], iteration_bounds = array<i64: 2>, scalar_prefetch = 0 : i64, scratch_operands = 0 : i64, tpu.core_type = #tpu.core_type<tc>, window_params = [{transform_indices = @transform_0, window_bounds = array<i64: 1, 16, 32>}, {transform_indices = @transform_1, window_bounds = array<i64: 1, 15, 32>}, {pipeline_mode = #tpu.pipeline_mode<synchronous>, transform_indices = @transform_2, window_bounds = array<i64: 32, 32>}, {pipeline_mode = #tpu.pipeline_mode<synchronous>, transform_indices = @transform_3, window_bounds = array<i64: 1, 32>}, {pipeline_mode = #tpu.pipeline_mode<synchronous>, transform_indices = @transform_4, window_bounds = array<i64: 32, 32>}, {pipeline_mode = #tpu.pipeline_mode<synchronous>, transform_indices = @transform_5, window_bounds = array<i64: 1, 32>}, {pipeline_mode = #tpu.pipeline_mode<synchronous>, transform_indices = @transform_6, window_bounds = array<i64: 32, 16>}, {pipeline_mode = #tpu.pipeline_mode<synchronous>, transform_indices = @transform_7, window_bounds = array<i64: 32, 16>}, {pipeline_mode = #tpu.pipeline_mode<synchronous>, transform_indices = @transform_8, window_bounds = array<i64: 1, 16>}, {pipeline_mode = #tpu.pipeline_mode<synchronous>, transform_indices = @transform_9, window_bounds = array<i64: 32, 16>}, {pipeline_mode = #tpu.pipeline_mode<synchronous>, transform_indices = @transform_10, window_bounds = array<i64: 32, 16>}, {pipeline_mode = #tpu.pipeline_mode<synchronous>, transform_indices = @transform_11, window_bounds = array<i64: 1, 16>}, {pipeline_mode = #tpu.pipeline_mode<synchronous>, transform_indices = @transform_12, window_bounds = array<i64: 8, 16>}, {pipeline_mode = #tpu.pipeline_mode<synchronous>, transform_indices = @transform_13, window_bounds = array<i64: 8, 16>}, {pipeline_mode = #tpu.pipeline_mode<synchronous>, transform_indices = @transform_14, window_bounds = array<i64: 8, 16>}, {pipeline_mode = #tpu.pipeline_mode<synchronous>, transform_indices = @transform_15, window_bounds = array<i64: 8, 16>}, {pipeline_mode = #tpu.pipeline_mode<synchronous>, transform_indices = @transform_16, window_bounds = array<i64: 1, 8>}, {transform_indices = @transform_17, window_bounds = array<i64: 1, 1, 8>}]} {
    %c0 = arith.constant 0 : index
    %c0_0 = arith.constant 0 : index
    %c0_1 = arith.constant 0 : index
    %0 = vector.load %arg1[%c0, %c0_0, %c0_1] : memref<1x16x32xf32, #tpu.memory_space<vmem>>, vector<1x16x32xf32>
    %1 = vector.shape_cast %0 : vector<1x16x32xf32> to vector<16x32xf32>
    %c0_2 = arith.constant 0 : index
    %c0_3 = arith.constant 0 : index
    %c0_4 = arith.constant 0 : index
    %2 = vector.load %arg2[%c0_2, %c0_3, %c0_4] : memref<1x15x32xf32, #tpu.memory_space<vmem>>, vector<1x15x32xf32>
    %3 = vector.shape_cast %2 : vector<1x15x32xf32> to vector<15x32xf32>
    %c0_5 = arith.constant 0 : index
    %c0_6 = arith.constant 0 : index
    %4 = vector.load %arg3[%c0_5, %c0_6] : memref<32x32xf32, #tpu.memory_space<vmem>>, vector<32x32xf32>
    %5 = arith.truncf %1 : vector<16x32xf32> to vector<16x32xbf16>
    %6 = arith.truncf %4 : vector<32x32xf32> to vector<32x32xbf16>
    %cst = arith.constant dense<0.000000e+00> : vector<16x32xf32>
    %7 = tpu.matmul %5, %6, %cst {dimension_numbers = #tpu.dot_dimension_numbers<[1], [0], [0], [1], [0, 0, 1, 1], [], []>} : vector<16x32xbf16>, vector<32x32xbf16>, vector<16x32xf32> -> vector<16x32xf32>
    %c0_7 = arith.constant 0 : index
    %c0_8 = arith.constant 0 : index
    %8 = vector.load %arg4[%c0_7, %c0_8] : memref<1x32xf32, #tpu.memory_space<vmem>>, vector<1x32xf32>
    %9 = vector.broadcast %8 : vector<1x32xf32> to vector<16x32xf32>
    %10 = arith.addf %7, %9 : vector<16x32xf32>
    %cst_9 = arith.constant 0.000000e+00 : f32
    %11 = vector.broadcast %cst_9 : f32 to vector<16x32xf32>
    %12 = arith.maximumf %10, %11 : vector<16x32xf32>
    %c0_10 = arith.constant 0 : index
    %c0_11 = arith.constant 0 : index
    %13 = vector.load %arg5[%c0_10, %c0_11] : memref<32x32xf32, #tpu.memory_space<vmem>>, vector<32x32xf32>
    %14 = arith.truncf %3 : vector<15x32xf32> to vector<15x32xbf16>
    %15 = arith.truncf %13 : vector<32x32xf32> to vector<32x32xbf16>
    %cst_12 = arith.constant dense<0.000000e+00> : vector<15x32xf32>
    %16 = tpu.matmul %14, %15, %cst_12 {dimension_numbers = #tpu.dot_dimension_numbers<[1], [0], [0], [1], [0, 0, 1, 1], [], []>} : vector<15x32xbf16>, vector<32x32xbf16>, vector<15x32xf32> -> vector<15x32xf32>
    %c0_13 = arith.constant 0 : index
    %c0_14 = arith.constant 0 : index
    %17 = vector.load %arg6[%c0_13, %c0_14] : memref<1x32xf32, #tpu.memory_space<vmem>>, vector<1x32xf32>
    %18 = vector.broadcast %17 : vector<1x32xf32> to vector<15x32xf32>
    %19 = arith.addf %16, %18 : vector<15x32xf32>
    %cst_15 = arith.constant 0.000000e+00 : f32
    %20 = vector.broadcast %cst_15 : f32 to vector<15x32xf32>
    %21 = arith.maximumf %19, %20 : vector<15x32xf32>
    %22 = arith.truncf %12 : vector<16x32xf32> to vector<16x32xbf16>
    %23 = arith.truncf %21 : vector<15x32xf32> to vector<15x32xbf16>
    %cst_16 = arith.constant dense<0.000000e+00> : vector<16x15xf32>
    %24 = tpu.matmul %22, %23, %cst_16 {dimension_numbers = #tpu.dot_dimension_numbers<[1], [1], [0], [0], [0, 0, 1, 0], [], []>} : vector<16x32xbf16>, vector<15x32xbf16>, vector<16x15xf32> -> vector<16x15xf32>
    %cst_17 = arith.constant dense<0xFF800000> : vector<16xf32>
    %25 = vector.multi_reduction <maximumf>, %24, %cst_17 [1] : vector<16x15xf32> to vector<16xf32>
    %26 = vector.shape_cast %25 : vector<16xf32> to vector<16x1xf32>
    %27 = vector.broadcast %26 : vector<16x1xf32> to vector<16x15xf32>
    %28 = arith.subf %24, %27 : vector<16x15xf32>
    %29 = math.exp %28 : vector<16x15xf32>
    %cst_18 = arith.constant dense<0.000000e+00> : vector<16xf32>
    %30 = vector.multi_reduction <add>, %29, %cst_18 [1] : vector<16x15xf32> to vector<16xf32>
    %31 = vector.shape_cast %30 : vector<16xf32> to vector<16x1xf32>
    %32 = vector.broadcast %31 : vector<16x1xf32> to vector<16x15xf32>
    %33 = arith.divf %29, %32 : vector<16x15xf32>
    %34 = arith.truncf %33 : vector<16x15xf32> to vector<16x15xbf16>
    %35 = arith.truncf %3 : vector<15x32xf32> to vector<15x32xbf16>
    %cst_19 = arith.constant dense<0.000000e+00> : vector<16x32xf32>
    %36 = tpu.matmul %34, %35, %cst_19 {dimension_numbers = #tpu.dot_dimension_numbers<[1], [0], [0], [1], [0, 0, 1, 1], [], []>} : vector<16x15xbf16>, vector<15x32xbf16>, vector<16x32xf32> -> vector<16x32xf32>
    %c0_20 = arith.constant 0 : index
    %c0_21 = arith.constant 0 : index
    %37 = vector.load %arg7[%c0_20, %c0_21] : memref<32x16xf32, #tpu.memory_space<vmem>>, vector<32x16xf32>
    %38 = arith.truncf %1 : vector<16x32xf32> to vector<16x32xbf16>
    %39 = arith.truncf %37 : vector<32x16xf32> to vector<32x16xbf16>
    %cst_22 = arith.constant dense<0.000000e+00> : vector<16x16xf32>
    %40 = tpu.matmul %38, %39, %cst_22 {dimension_numbers = #tpu.dot_dimension_numbers<[1], [0], [0], [1], [0, 0, 1, 1], [], []>} : vector<16x32xbf16>, vector<32x16xbf16>, vector<16x16xf32> -> vector<16x16xf32>
    %c0_23 = arith.constant 0 : index
    %c0_24 = arith.constant 0 : index
    %41 = vector.load %arg8[%c0_23, %c0_24] : memref<32x16xf32, #tpu.memory_space<vmem>>, vector<32x16xf32>
    %42 = arith.truncf %36 : vector<16x32xf32> to vector<16x32xbf16>
    %43 = arith.truncf %41 : vector<32x16xf32> to vector<32x16xbf16>
    %cst_25 = arith.constant dense<0.000000e+00> : vector<16x16xf32>
    %44 = tpu.matmul %42, %43, %cst_25 {dimension_numbers = #tpu.dot_dimension_numbers<[1], [0], [0], [1], [0, 0, 1, 1], [], []>} : vector<16x32xbf16>, vector<32x16xbf16>, vector<16x16xf32> -> vector<16x16xf32>
    %45 = arith.addf %40, %44 : vector<16x16xf32>
    %c0_26 = arith.constant 0 : index
    %c0_27 = arith.constant 0 : index
    %46 = vector.load %arg9[%c0_26, %c0_27] : memref<1x16xf32, #tpu.memory_space<vmem>>, vector<1x16xf32>
    %47 = vector.broadcast %46 : vector<1x16xf32> to vector<16x16xf32>
    %48 = arith.addf %45, %47 : vector<16x16xf32>
    %49 = arith.negf %48 : vector<16x16xf32>
    %50 = math.exp %49 : vector<16x16xf32>
    %cst_28 = arith.constant 1.000000e+00 : f32
    %51 = vector.broadcast %cst_28 : f32 to vector<16x16xf32>
    %52 = arith.addf %51, %50 : vector<16x16xf32>
    %53 = arith.divf %51, %52 : vector<16x16xf32>
    %c0_29 = arith.constant 0 : index
    %c0_30 = arith.constant 0 : index
    %54 = vector.load %arg10[%c0_29, %c0_30] : memref<32x16xf32, #tpu.memory_space<vmem>>, vector<32x16xf32>
    %55 = arith.truncf %1 : vector<16x32xf32> to vector<16x32xbf16>
    %56 = arith.truncf %54 : vector<32x16xf32> to vector<32x16xbf16>
    %cst_31 = arith.constant dense<0.000000e+00> : vector<16x16xf32>
    %57 = tpu.matmul %55, %56, %cst_31 {dimension_numbers = #tpu.dot_dimension_numbers<[1], [0], [0], [1], [0, 0, 1, 1], [], []>} : vector<16x32xbf16>, vector<32x16xbf16>, vector<16x16xf32> -> vector<16x16xf32>
    %c0_32 = arith.constant 0 : index
    %c0_33 = arith.constant 0 : index
    %58 = vector.load %arg11[%c0_32, %c0_33] : memref<32x16xf32, #tpu.memory_space<vmem>>, vector<32x16xf32>
    %59 = arith.truncf %36 : vector<16x32xf32> to vector<16x32xbf16>
    %60 = arith.truncf %58 : vector<32x16xf32> to vector<32x16xbf16>
    %cst_34 = arith.constant dense<0.000000e+00> : vector<16x16xf32>
    %61 = tpu.matmul %59, %60, %cst_34 {dimension_numbers = #tpu.dot_dimension_numbers<[1], [0], [0], [1], [0, 0, 1, 1], [], []>} : vector<16x32xbf16>, vector<32x16xbf16>, vector<16x16xf32> -> vector<16x16xf32>
    %62 = arith.addf %57, %61 : vector<16x16xf32>
    %c0_35 = arith.constant 0 : index
    %c0_36 = arith.constant 0 : index
    %63 = vector.load %arg12[%c0_35, %c0_36] : memref<1x16xf32, #tpu.memory_space<vmem>>, vector<1x16xf32>
    %64 = vector.broadcast %63 : vector<1x16xf32> to vector<16x16xf32>
    %65 = arith.addf %62, %64 : vector<16x16xf32>
    %66 = math.tanh %65 : vector<16x16xf32>
    %c0_37 = arith.constant 0 : index
    %c0_38 = arith.constant 0 : index
    %67 = vector.load %arg13[%c0_37, %c0_38] : memref<8x16xf32, #tpu.memory_space<vmem>>, vector<8x16xf32>
    %68 = arith.truncf %53 : vector<16x16xf32> to vector<16x16xbf16>
    %69 = arith.truncf %67 : vector<8x16xf32> to vector<8x16xbf16>
    %cst_39 = arith.constant dense<0.000000e+00> : vector<16x8xf32>
    %70 = tpu.matmul %68, %69, %cst_39 {dimension_numbers = #tpu.dot_dimension_numbers<[1], [1], [0], [0], [0, 0, 1, 0], [], []>} : vector<16x16xbf16>, vector<8x16xbf16>, vector<16x8xf32> -> vector<16x8xf32>
    %c0_40 = arith.constant 0 : index
    %c0_41 = arith.constant 0 : index
    %71 = vector.load %arg14[%c0_40, %c0_41] : memref<8x16xf32, #tpu.memory_space<vmem>>, vector<8x16xf32>
    %72 = arith.truncf %66 : vector<16x16xf32> to vector<16x16xbf16>
    %73 = arith.truncf %71 : vector<8x16xf32> to vector<8x16xbf16>
    %cst_42 = arith.constant dense<0.000000e+00> : vector<16x8xf32>
    %74 = tpu.matmul %72, %73, %cst_42 {dimension_numbers = #tpu.dot_dimension_numbers<[1], [1], [0], [0], [0, 0, 1, 0], [], []>} : vector<16x16xbf16>, vector<8x16xbf16>, vector<16x8xf32> -> vector<16x8xf32>
    %75 = arith.addf %70, %74 : vector<16x8xf32>
    %cst_43 = arith.constant dense<0xFF800000> : vector<8xf32>
    %76 = vector.multi_reduction <maximumf>, %75, %cst_43 [0] : vector<16x8xf32> to vector<8xf32>
    %77 = vector.shape_cast %76 : vector<8xf32> to vector<1x8xf32>
    %78 = vector.broadcast %77 : vector<1x8xf32> to vector<16x8xf32>
    %79 = arith.subf %75, %78 : vector<16x8xf32>
    %80 = math.exp %79 : vector<16x8xf32>
    %cst_44 = arith.constant dense<0.000000e+00> : vector<8xf32>
    %81 = vector.multi_reduction <add>, %80, %cst_44 [0] : vector<16x8xf32> to vector<8xf32>
    %82 = vector.shape_cast %81 : vector<8xf32> to vector<1x8xf32>
    %83 = vector.broadcast %82 : vector<1x8xf32> to vector<16x8xf32>
    %84 = arith.divf %80, %83 : vector<16x8xf32>
    %c0_45 = arith.constant 0 : index
    %c0_46 = arith.constant 0 : index
    %85 = vector.load %arg15[%c0_45, %c0_46] : memref<8x16xf32, #tpu.memory_space<vmem>>, vector<8x16xf32>
    %86 = arith.truncf %53 : vector<16x16xf32> to vector<16x16xbf16>
    %87 = arith.truncf %85 : vector<8x16xf32> to vector<8x16xbf16>
    %cst_47 = arith.constant dense<0.000000e+00> : vector<16x8xf32>
    %88 = tpu.matmul %86, %87, %cst_47 {dimension_numbers = #tpu.dot_dimension_numbers<[1], [1], [0], [0], [0, 0, 1, 0], [], []>} : vector<16x16xbf16>, vector<8x16xbf16>, vector<16x8xf32> -> vector<16x8xf32>
    %c0_48 = arith.constant 0 : index
    %c0_49 = arith.constant 0 : index
    %89 = vector.load %arg16[%c0_48, %c0_49] : memref<8x16xf32, #tpu.memory_space<vmem>>, vector<8x16xf32>
    %90 = arith.truncf %66 : vector<16x16xf32> to vector<16x16xbf16>
    %91 = arith.truncf %89 : vector<8x16xf32> to vector<8x16xbf16>
    %cst_50 = arith.constant dense<0.000000e+00> : vector<16x8xf32>
    %92 = tpu.matmul %90, %91, %cst_50 {dimension_numbers = #tpu.dot_dimension_numbers<[1], [1], [0], [0], [0, 0, 1, 0], [], []>} : vector<16x16xbf16>, vector<8x16xbf16>, vector<16x8xf32> -> vector<16x8xf32>
    %93 = arith.addf %88, %92 : vector<16x8xf32>
    %94 = arith.mulf %84, %93 : vector<16x8xf32>
    %cst_51 = arith.constant dense<0.000000e+00> : vector<8xf32>
    %95 = vector.multi_reduction <add>, %94, %cst_51 [0] : vector<16x8xf32> to vector<8xf32>
    %96 = vector.shape_cast %95 : vector<8xf32> to vector<1x8xf32>
    %c0_52 = arith.constant 0 : index
    %c0_53 = arith.constant 0 : index
    %97 = vector.load %arg17[%c0_52, %c0_53] : memref<1x8xf32, #tpu.memory_space<vmem>>, vector<1x8xf32>
    %98 = arith.addf %96, %97 : vector<1x8xf32>
    %c0_54 = arith.constant 0 : index
    %c0_55 = arith.constant 0 : index
    %c0_56 = arith.constant 0 : index
    %99 = vector.load %arg18[%c0_54, %c0_55, %c0_56] : memref<1x1x8xf32, #tpu.memory_space<vmem>>, vector<1x1x8xf32>
    %100 = vector.shape_cast %99 : vector<1x1x8xf32> to vector<1x8xf32>
    %101 = vector.shape_cast %98 : vector<1x8xf32> to vector<1x1x8xf32>
    tpu.vector_store %arg18[%c0_54, %c0_55, %c0_56], %101 {strides = array<i32>} : memref<1x1x8xf32, #tpu.memory_space<vmem>>, vector<1x1x8xf32>,
    return
  }
  func.func @transform_0(%arg0: i32) -> (i32, i32, i32) {
    %c0_i32 = arith.constant 0 : i32
    %c0_i32_0 = arith.constant 0 : i32
    %c0_i32_1 = arith.constant 0 : i32
    return %arg0, %c0_i32, %c0_i32_0 : i32, i32, i32
  }
  func.func @transform_1(%arg0: i32) -> (i32, i32, i32) {
    %c0_i32 = arith.constant 0 : i32
    %c0_i32_0 = arith.constant 0 : i32
    %c0_i32_1 = arith.constant 0 : i32
    return %arg0, %c0_i32, %c0_i32_0 : i32, i32, i32
  }
  func.func @transform_2(%arg0: i32) -> (i32, i32) {
    %c0_i32 = arith.constant 0 : i32
    %c0_i32_0 = arith.constant 0 : i32
    %c0_i32_1 = arith.constant 0 : i32
    return %c0_i32, %c0_i32_0 : i32, i32
  }
  func.func @transform_3(%arg0: i32) -> (i32, i32) {
    %c0_i32 = arith.constant 0 : i32
    %c0_i32_0 = arith.constant 0 : i32
    %c0_i32_1 = arith.constant 0 : i32
    return %c0_i32, %c0_i32_0 : i32, i32
  }
  func.func @transform_4(%arg0: i32) -> (i32, i32) {
    %c0_i32 = arith.constant 0 : i32
    %c0_i32_0 = arith.constant 0 : i32
    %c0_i32_1 = arith.constant 0 : i32
    return %c0_i32, %c0_i32_0 : i32, i32
  }
  func.func @transform_5(%arg0: i32) -> (i32, i32) {
    %c0_i32 = arith.constant 0 : i32
    %c0_i32_0 = arith.constant 0 : i32
    %c0_i32_1 = arith.constant 0 : i32
    return %c0_i32, %c0_i32_0 : i32, i32
  }
  func.func @transform_6(%arg0: i32) -> (i32, i32) {
    %c0_i32 = arith.constant 0 : i32
    %c0_i32_0 = arith.constant 0 : i32
    %c0_i32_1 = arith.constant 0 : i32
    return %c0_i32, %c0_i32_0 : i32, i32
  }
  func.func @transform_7(%arg0: i32) -> (i32, i32) {
    %c0_i32 = arith.constant 0 : i32
    %c0_i32_0 = arith.constant 0 : i32
    %c0_i32_1 = arith.constant 0 : i32
    return %c0_i32, %c0_i32_0 : i32, i32
  }
  func.func @transform_8(%arg0: i32) -> (i32, i32) {
    %c0_i32 = arith.constant 0 : i32
    %c0_i32_0 = arith.constant 0 : i32
    %c0_i32_1 = arith.constant 0 : i32
    return %c0_i32, %c0_i32_0 : i32, i32
  }
  func.func @transform_9(%arg0: i32) -> (i32, i32) {
    %c0_i32 = arith.constant 0 : i32
    %c0_i32_0 = arith.constant 0 : i32
    %c0_i32_1 = arith.constant 0 : i32
    return %c0_i32, %c0_i32_0 : i32, i32
  }
  func.func @transform_10(%arg0: i32) -> (i32, i32) {
    %c0_i32 = arith.constant 0 : i32
    %c0_i32_0 = arith.constant 0 : i32
    %c0_i32_1 = arith.constant 0 : i32
    return %c0_i32, %c0_i32_0 : i32, i32
  }
  func.func @transform_11(%arg0: i32) -> (i32, i32) {
    %c0_i32 = arith.constant 0 : i32
    %c0_i32_0 = arith.constant 0 : i32
    %c0_i32_1 = arith.constant 0 : i32
    return %c0_i32, %c0_i32_0 : i32, i32
  }
  func.func @transform_12(%arg0: i32) -> (i32, i32) {
    %c0_i32 = arith.constant 0 : i32
    %c0_i32_0 = arith.constant 0 : i32
    %c0_i32_1 = arith.constant 0 : i32
    return %c0_i32, %c0_i32_0 : i32, i32
  }
  func.func @transform_13(%arg0: i32) -> (i32, i32) {
    %c0_i32 = arith.constant 0 : i32
    %c0_i32_0 = arith.constant 0 : i32
    %c0_i32_1 = arith.constant 0 : i32
    return %c0_i32, %c0_i32_0 : i32, i32
  }
  func.func @transform_14(%arg0: i32) -> (i32, i32) {
    %c0_i32 = arith.constant 0 : i32
    %c0_i32_0 = arith.constant 0 : i32
    %c0_i32_1 = arith.constant 0 : i32
    return %c0_i32, %c0_i32_0 : i32, i32
  }
  func.func @transform_15(%arg0: i32) -> (i32, i32) {
    %c0_i32 = arith.constant 0 : i32
    %c0_i32_0 = arith.constant 0 : i32
    %c0_i32_1 = arith.constant 0 : i32
    return %c0_i32, %c0_i32_0 : i32, i32
  }
  func.func @transform_16(%arg0: i32) -> (i32, i32) {
    %c0_i32 = arith.constant 0 : i32
    %c0_i32_0 = arith.constant 0 : i32
    %c0_i32_1 = arith.constant 0 : i32
    return %c0_i32, %c0_i32_0 : i32, i32
  }
  func.func @transform_17(%arg0: i32) -> (i32, i32, i32) {
    %c0_i32 = arith.constant 0 : i32
    %c0_i32_0 = arith.constant 0 : i32
    %c0_i32_1 = arith.constant 0 : i32
    return %arg0, %c0_i32, %c0_i32_0 : i32, i32, i32
  }
}

</mosaic_0001>

<llo_original>
// kernel: rnn_model_clause_forward.4
$region0: #{rnn_model_clause_forward.4}
  #allocation0 [shape = 'u32[]', space=smem, size = 0x4, offset = 0x4, fixed_abs, tag = 'smem constant byte address 0x4 - core index']
  #allocation1 [shape = 'u32[72,128]{1,0:T(1,128)}', space=vmem, size = 0x9000, scoped, tag = 'internal scratch']
  %s0 = inlined_call_operand.vmem [shape: f32[2,15,15], index: 0, kind: input, shape index: {}]
  %s1 = inlined_call_operand.vmem [shape: f32[2,2,15,15], index: 1, kind: input, shape index: {}]
  %s2 = inlined_call_operand.vmem [shape: f32[2,15,32], index: 2, kind: input, shape index: {}]
  %s3 = inlined_call_operand.vmem [shape: f32[32,32], index: 3, kind: input, shape index: {}]
  %s4 = inlined_call_operand.vmem [shape: f32[1,32], index: 4, kind: input, shape index: {}]
  %s5 = inlined_call_operand.vmem [shape: f32[32,32], index: 5, kind: input, shape index: {}]
  %s6 = inlined_call_operand.vmem [shape: f32[1,32], index: 6, kind: input, shape index: {}]
  %s7 = inlined_call_operand.vmem [shape: f32[32,32], index: 7, kind: input, shape index: {}]
  %s8 = inlined_call_operand.vmem [shape: f32[1,32], index: 8, kind: input, shape index: {}]
  %s9 = inlined_call_operand.vmem [shape: f32[32,32], index: 9, kind: input, shape index: {}]
  %s10 = inlined_call_operand.vmem [shape: f32[1,32], index: 10, kind: input, shape index: {}]
  %s11 = inlined_call_operand.vmem [shape: f32[2,15,32], index: 11, kind: output, shape index: {}]
  %s12 = sld [smem:[#allocation0]]
  $region54: #{rnn_model_clause_forward.4} parent=0
    _
  %s14 = ssub.s32 1, %s12
  %s15 = scalar_select 0, %s14, %s12
  // Predicated region
  $region2: #{rnn_model_clause_forward.4} parent=0 // pred_check
    _
  $region3: #{rnn_model_clause_forward.4} parent=0 // pred_check_branch
    %17 = sbr.rel (0) target = $region5
  $region4: #{rnn_model_clause_forward.4} parent=0 // pred_region
    _
  $region5: #{rnn_model_clause_forward.4} parent=0 // pred_fallthru
    _
  // Predicated region
  $region6: #{rnn_model_clause_forward.4} parent=0 // pred_check
    _
  $region7: #{rnn_model_clause_forward.4} parent=0 // pred_check_branch
    %19 = sbr.rel (0) target = $region9
  $region8: #{rnn_model_clause_forward.4} parent=0 // pred_region
    _
  $region9: #{rnn_model_clause_forward.4} parent=0 // pred_fallthru
    _
  // Predicated region
  $region10: #{rnn_model_clause_forward.4} parent=0 // pred_check
    _
  $region11: #{rnn_model_clause_forward.4} parent=0 // pred_check_branch
    %21 = sbr.rel (0) target = $region13
  $region12: #{rnn_model_clause_forward.4} parent=0 // pred_region
    _
  $region13: #{rnn_model_clause_forward.4} parent=0 // pred_fallthru
    _
  // Predicated region
  $region14: #{rnn_model_clause_forward.4} parent=0 // pred_check
    _
  $region15: #{rnn_model_clause_forward.4} parent=0 // pred_check_branch
    %23 = sbr.rel (0) target = $region17
  $region16: #{rnn_model_clause_forward.4} parent=0 // pred_region
    _
  $region17: #{rnn_model_clause_forward.4} parent=0 // pred_fallthru
    _
  // Predicated region
  $region18: #{rnn_model_clause_forward.4} parent=0 // pred_check
    _
  $region19: #{rnn_model_clause_forward.4} parent=0 // pred_check_branch
    %25 = sbr.rel (0) target = $region21
  $region20: #{rnn_model_clause_forward.4} parent=0 // pred_region
    _
  $region21: #{rnn_model_clause_forward.4} parent=0 // pred_fallthru
    _
  // Predicated region
  $region22: #{rnn_model_clause_forward.4} parent=0 // pred_check
    _
  $region23: #{rnn_model_clause_forward.4} parent=0 // pred_check_branch
    %27 = sbr.rel (0) target = $region25
  $region24: #{rnn_model_clause_forward.4} parent=0 // pred_region
    _
  $region25: #{rnn_model_clause_forward.4} parent=0 // pred_fallthru
    _
  // Predicated region
  $region26: #{rnn_model_clause_forward.4} parent=0 // pred_check
    _
  $region27: #{rnn_model_clause_forward.4} parent=0 // pred_check_branch
    %29 = sbr.rel (0) target = $region29
  $region28: #{rnn_model_clause_forward.4} parent=0 // pred_region
    _
  $region29: #{rnn_model_clause_forward.4} parent=0 // pred_fallthru
    _
  // Predicated region
  $region30: #{rnn_model_clause_forward.4} parent=0 // pred_check
    _
  $region31: #{rnn_model_clause_forward.4} parent=0 // pred_check_branch
    %31 = sbr.rel (0) target = $region33
  $region32: #{rnn_model_clause_forward.4} parent=0 // pred_region
    _
  $region33: #{rnn_model_clause_forward.4} parent=0 // pred_fallthru
    _
  // Predicated region
  $region34: #{rnn_model_clause_forward.4} parent=0 // pred_check
    _
  $region35: #{rnn_model_clause_forward.4} parent=0 // pred_check_branch
    %33 = sbr.rel (0) target = $region37
  $region36: #{rnn_model_clause_forward.4} parent=0 // pred_region
    _
  $region37: #{rnn_model_clause_forward.4} parent=0 // pred_fallthru
    _
  // Predicated region
  $region38: #{rnn_model_clause_forward.4} parent=0 // pred_check
    _
  $region39: #{rnn_model_clause_forward.4} parent=0 // pred_check_branch
    %35 = sbr.rel (0) target = $region41
  $region40: #{rnn_model_clause_forward.4} parent=0 // pred_region
    _
  $region41: #{rnn_model_clause_forward.4} parent=0 // pred_fallthru
    _
  // Predicated region
  $region42: #{rnn_model_clause_forward.4} parent=0 // pred_check
    _
  $region43: #{rnn_model_clause_forward.4} parent=0 // pred_check_branch
    %37 = sbr.rel (0) target = $region45
  $region44: #{rnn_model_clause_forward.4} parent=0 // pred_region
    _
  $region45: #{rnn_model_clause_forward.4} parent=0 // pred_fallthru
    _
  %v39 = vld [vmem:[%s2] sm:$0xff]
  %v40 = vld [vmem:[%s2 + $0x8] sm:$0x7f]
  %s41 = scalar_lea.vmem %s2, 16
  %v42 = vld [vmem:[%s41] sm:$0xff]
  %v43 = vld [vmem:[%s41 + $0x8] sm:$0x7f]
  %v44 = vld [vmem:[%s3] sm:$0xff]
  %v45 = vld [vmem:[%s3 + $0x8] sm:$0xff]
  %v46 = vld [vmem:[%s3 + $0x10] sm:$0xff]
  %v47 = vld [vmem:[%s3 + $0x18] sm:$0xff]
  %v48 = vld [vmem:[%s4] sm:$0x1]
  %v49 = vld [vmem:[%s5] sm:$0xff]
  %v50 = vld [vmem:[%s5 + $0x8] sm:$0xff]
  %v51 = vld [vmem:[%s5 + $0x10] sm:$0xff]
  %v52 = vld [vmem:[%s5 + $0x18] sm:$0xff]
  %v53 = vld [vmem:[%s6] sm:$0x1]
  %v54 = vld [vmem:[%s0] sm:$0xff]
  %v55 = vld [vmem:[%s0 + $0x8] sm:$0x7f]
  %v56 = vpack.c.bf16 %v40, %v39
  %v57 = vpack.c.bf16 %v45, %v44
  %v58 = vpack.c.bf16 %v47, %v46
  %vm59 = vcmask 261120
  %v61 = vsel %vm59, %v56, 0
  %63 = vmatpush.bf16.msra.mxu0 0
  %64 = vmatpush.bf16.msra.mxu0 0
  %65 = vmatpush.bf16.msra.mxu0 0
  %66 = vmatpush.bf16.msra.mxu0 0
  %67 = vmatpush.bf16.msra.mxu0 0
  %68 = vmatpush.bf16.msra.mxu0 0
  %69 = vmatpush.bf16.msra.mxu0 %v58
  %70 = vmatpush.bf16.msra.mxu0 %v57
  %71 = vmatmul.bf16.gmra.mxu0 %v61
  %v72 = vpop.f32.mrf.mxu0
  %v73 = vadd.f32 0.0, %v72
  %v74 = vpop.f32.mrf.mxu0
  %v75 = vadd.f32 0.0, %v74
  %76 = vdwg.mxu0
  %v77 = vpack.c.bf16 %v55, %v54
  %v78 = vpack.c.bf16 %v75, %v73
  %v80 = vperm.slane %v48, 0
  %vm82 = vcmask 121856
  %v84 = vsel %vm82, %v77, 0
  %vm86 = vcmask 1046528
  %vm87 = vcmask 1047552
  %v88 = vsel %vm86, 4294967295, 65535
  %v89 = vsel %vm87, %v88, 0
  %v91 = vand.u32 %v78, %v89
  %93 = vmatpush.bf16.msra.mxu0 0
  %94 = vmatpush.bf16.msra.mxu0 0
  %95 = vmatpush.bf16.msra.mxu0 0
  %96 = vmatpush.bf16.msra.mxu0 0
  %97 = vmatpush.bf16.msra.mxu0 0
  %98 = vmatpush.bf16.msra.mxu0 0
  %99 = vmatpush.bf16.msra.mxu0 0
  %100 = vmatpush.bf16.msra.mxu0 %v91
  %101 = vmatmul.bf16.gmra.mxu0 %v84
  %v102 = vpop.f32.mrf.mxu0
  %v103 = vadd.f32 %v80, %v102
  %v104 = vpop.f32.mrf.mxu0
  %v105 = vadd.f32 %v80, %v104
  %106 = vdwg.mxu0
  %s107 = scalar_lea.vmem %s0, 16
  %v108 = vld [vmem:[%s107] sm:$0xff]
  %v109 = vld [vmem:[%s107 + $0x8] sm:$0x7f]
  %v110 = vpack.c.bf16 %v43, %v42
  %v112 = vsel %vm59, %v110, 0
  %114 = vmatpush.bf16.msra.mxu0 0
  %115 = vmatpush.bf16.msra.mxu0 0
  %116 = vmatpush.bf16.msra.mxu0 0
  %117 = vmatpush.bf16.msra.mxu0 0
  %118 = vmatpush.bf16.msra.mxu0 0
  %119 = vmatpush.bf16.msra.mxu0 0
  %120 = vmatpush.bf16.msra.mxu0 %v58
  %121 = vmatpush.bf16.msra.mxu0 %v57
  %122 = vmatmul.bf16.gmra.mxu0 %v112
  %v123 = vpop.f32.mrf.mxu0
  %v124 = vadd.f32 0.0, %v123
  %v125 = vpop.f32.mrf.mxu0
  %v126 = vadd.f32 0.0, %v125
  %127 = vdwg.mxu0
  %v128 = vpack.c.bf16 %v109, %v108
  %v129 = vpack.c.bf16 %v126, %v124
  %v131 = vsel %vm82, %v128, 0
  %v134 = vand.u32 %v129, %v89
  %136 = vmatpush.bf16.msra.mxu0 0
  %137 = vmatpush.bf16.msra.mxu0 0
  %138 = vmatpush.bf16.msra.mxu0 0
  %139 = vmatpush.bf16.msra.mxu0 0
  %140 = vmatpush.bf16.msra.mxu0 0
  %141 = vmatpush.bf16.msra.mxu0 0
  %142 = vmatpush.bf16.msra.mxu0 0
  %143 = vmatpush.bf16.msra.mxu0 %v134
  %144 = vmatmul.bf16.gmra.mxu0 %v131
  %v145 = vpop.f32.mrf.mxu0
  %v146 = vadd.f32 %v80, %v145
  %v147 = vpop.f32.mrf.mxu0
  %v148 = vadd.f32 %v80, %v147
  %149 = vdwg.mxu0
  %v150 = vpack.c.bf16 %v105, %v103
  %v151 = vpack.c.bf16 %v50, %v49
  %v152 = vpack.c.bf16 %v52, %v51
  %v154 = vsel %vm59, %v150, 0
  %156 = vmatpush.bf16.msra.mxu0 0
  %157 = vmatpush.bf16.msra.mxu0 0
  %158 = vmatpush.bf16.msra.mxu0 0
  %159 = vmatpush.bf16.msra.mxu0 0
  %160 = vmatpush.bf16.msra.mxu0 0
  %161 = vmatpush.bf16.msra.mxu0 0
  %162 = vmatpush.bf16.msra.mxu0 %v152
  %163 = vmatpush.bf16.msra.mxu0 %v151
  %164 = vmatmul.bf16.gmra.mxu0 %v154
  %v165 = vpop.f32.mrf.mxu0
  %v166 = vadd.f32 0.0, %v165
  %v167 = vpop.f32.mrf.mxu0
  %v168 = vadd.f32 0.0, %v167
  %169 = vdwg.mxu0
  %v170 = vpack.c.bf16 %v148, %v146
  %v172 = vsel %vm59, %v170, 0
  %174 = vmatpush.bf16.msra.mxu0 0
  %175 = vmatpush.bf16.msra.mxu0 0
  %176 = vmatpush.bf16.msra.mxu0 0
  %177 = vmatpush.bf16.msra.mxu0 0
  %178 = vmatpush.bf16.msra.mxu0 0
  %179 = vmatpush.bf16.msra.mxu0 0
  %180 = vmatpush.bf16.msra.mxu0 %v152
  %181 = vmatpush.bf16.msra.mxu0 %v151
  %182 = vmatmul.bf16.gmra.mxu0 %v172
  %v183 = vpop.f32.mrf.mxu0
  %v184 = vadd.f32 0.0, %v183
  %v185 = vpop.f32.mrf.mxu0
  %v186 = vadd.f32 0.0, %v185
  %187 = vdwg.mxu0
  %v188 = vld [vmem:[%s1] sm:$0xff]
  %v189 = vld [vmem:[%s1 + $0x8] sm:$0x7f]
  %v190 = vpack.c.bf16 %v189, %v188
  %v191 = vpack.c.bf16 %v168, %v166
  %v193 = vsel %vm82, %v190, 0
  %v196 = vand.u32 %v191, %v89
  %198 = vmatpush.bf16.msra.mxu0 0
  %199 = vmatpush.bf16.msra.mxu0 0
  %200 = vmatpush.bf16.msra.mxu0 0
  %201 = vmatpush.bf16.msra.mxu0 0
  %202 = vmatpush.bf16.msra.mxu0 0
  %203 = vmatpush.bf16.msra.mxu0 0
  %204 = vmatpush.bf16.msra.mxu0 0
  %205 = vmatpush.bf16.msra.mxu0 %v196
  %206 = vmatmul.bf16.gmra.mxu0 %v193
  %v207 = vpop.f32.mrf.mxu0
  %v208 = vadd.f32 0.0, %v207
  %v209 = vpop.f32.mrf.mxu0
  %v210 = vadd.f32 0.0, %v209
  %211 = vdwg.mxu0
  %v213 = vperm.slane %v53, 0
  %v215 = vadd.f32 %v213, %v208
  %v216 = vadd.f32 %v213, %v210
  %s217 = scalar_lea.vmem %s1, 16
  %v218 = vld [vmem:[%s217] sm:$0xff]
  %v219 = vld [vmem:[%s217 + $0x8] sm:$0x7f]
  %v220 = vpack.c.bf16 %v219, %v218
  %v221 = vpack.c.bf16 %v186, %v184
  %v223 = vsel %vm82, %v220, 0
  %v226 = vand.u32 %v221, %v89
  %228 = vmatpush.bf16.msra.mxu0 0
  %229 = vmatpush.bf16.msra.mxu0 0
  %230 = vmatpush.bf16.msra.mxu0 0
  %231 = vmatpush.bf16.msra.mxu0 0
  %232 = vmatpush.bf16.msra.mxu0 0
  %233 = vmatpush.bf16.msra.mxu0 0
  %234 = vmatpush.bf16.msra.mxu0 0
  %235 = vmatpush.bf16.msra.mxu0 %v226
  %236 = vmatmul.bf16.gmra.mxu0 %v223
  %v237 = vpop.f32.mrf.mxu0
  %v238 = vadd.f32 0.0, %v237
  %v239 = vpop.f32.mrf.mxu0
  %v240 = vadd.f32 0.0, %v239
  %241 = vdwg.mxu0
  %v242 = vadd.f32 %v215, %v238
  %v243 = vadd.f32 %v216, %v240
  %v244 = vmax.f32 %v242, 0.0
  %v245 = vmax.f32 %v243, 0.0
  %v246 = vadd.f32 %v244, %v39
  %v247 = vadd.f32 %v245, %v40
  %s248 = scalar_lea.vmem %s1, 32
  %v249 = vld [vmem:[%s248] sm:$0xff]
  %v250 = vld [vmem:[%s248 + $0x8] sm:$0x7f]
  %v251 = vpack.c.bf16 %v250, %v249
  %v253 = vsel %vm82, %v251, 0
  %255 = vmatpush.bf16.msra.mxu0 0
  %256 = vmatpush.bf16.msra.mxu0 0
  %257 = vmatpush.bf16.msra.mxu0 0
  %258 = vmatpush.bf16.msra.mxu0 0
  %259 = vmatpush.bf16.msra.mxu0 0
  %260 = vmatpush.bf16.msra.mxu0 0
  %261 = vmatpush.bf16.msra.mxu0 0
  %262 = vmatpush.bf16.msra.mxu0 %v196
  %263 = vmatmul.bf16.gmra.mxu0 %v253
  %v264 = vpop.f32.mrf.mxu0
  %v265 = vadd.f32 0.0, %v264
  %v266 = vpop.f32.mrf.mxu0
  %v267 = vadd.f32 0.0, %v266
  %268 = vdwg.mxu0
  %v269 = vadd.f32 %v213, %v265
  %v270 = vadd.f32 %v213, %v267
  %s271 = scalar_lea.vmem %s1, 48
  %v272 = vld [vmem:[%s271] sm:$0xff]
  %v273 = vld [vmem:[%s271 + $0x8] sm:$0x7f]
  %v274 = vpack.c.bf16 %v273, %v272
  %v276 = vsel %vm82, %v274, 0
  %278 = vmatpush.bf16.msra.mxu0 0
  %279 = vmatpush.bf16.msra.mxu0 0
  %280 = vmatpush.bf16.msra.mxu0 0
  %281 = vmatpush.bf16.msra.mxu0 0
  %282 = vmatpush.bf16.msra.mxu0 0
  %283 = vmatpush.bf16.msra.mxu0 0
  %284 = vmatpush.bf16.msra.mxu0 0
  %285 = vmatpush.bf16.msra.mxu0 %v226
  %286 = vmatmul.bf16.gmra.mxu0 %v276
  %v287 = vpop.f32.mrf.mxu0
  %v288 = vadd.f32 0.0, %v287
  %v289 = vpop.f32.mrf.mxu0
  %v290 = vadd.f32 0.0, %v289
  %291 = vdwg.mxu0
  %v292 = vadd.f32 %v269, %v288
  %v293 = vadd.f32 %v270, %v290
  %v294 = vmax.f32 %v292, 0.0
  %v295 = vmax.f32 %v293, 0.0
  %v296 = vadd.f32 %v294, %v42
  %v297 = vadd.f32 %v295, %v43
  %v298 = vld [vmem:[%s7] sm:$0xff]
  %v299 = vld [vmem:[%s7 + $0x8] sm:$0xff]
  %v300 = vld [vmem:[%s7 + $0x10] sm:$0xff]
  %v301 = vld [vmem:[%s7 + $0x18] sm:$0xff]
  %v302 = vld [vmem:[%s8] sm:$0x1]
  %v303 = vld [vmem:[%s9] sm:$0xff]
  %v304 = vld [vmem:[%s9 + $0x8] sm:$0xff]
  %v305 = vld [vmem:[%s9 + $0x10] sm:$0xff]
  %v306 = vld [vmem:[%s9 + $0x18] sm:$0xff]
  %v307 = vld [vmem:[%s10] sm:$0x1]
  %v308 = vpack.c.bf16 %v247, %v246
  %v309 = vpack.c.bf16 %v299, %v298
  %v310 = vpack.c.bf16 %v301, %v300
  %v312 = vsel %vm59, %v308, 0
  %314 = vmatpush.bf16.msra.mxu0 0
  %315 = vmatpush.bf16.msra.mxu0 0
  %316 = vmatpush.bf16.msra.mxu0 0
  %317 = vmatpush.bf16.msra.mxu0 0
  %318 = vmatpush.bf16.msra.mxu0 0
  %319 = vmatpush.bf16.msra.mxu0 0
  %320 = vmatpush.bf16.msra.mxu0 %v310
  %321 = vmatpush.bf16.msra.mxu0 %v309
  %322 = vmatmul.bf16.gmra.mxu0 %v312
  %v323 = vpop.f32.mrf.mxu0
  %v324 = vadd.f32 0.0, %v323
  %v325 = vpop.f32.mrf.mxu0
  %v326 = vadd.f32 0.0, %v325
  %327 = vdwg.mxu0
  %v328 = vpack.c.bf16 %v326, %v324
  %v330 = vperm.slane %v302, 0
  %v333 = vand.u32 %v328, %v89
  %335 = vmatpush.bf16.msra.mxu0 0
  %336 = vmatpush.bf16.msra.mxu0 0
  %337 = vmatpush.bf16.msra.mxu0 0
  %338 = vmatpush.bf16.msra.mxu0 0
  %339 = vmatpush.bf16.msra.mxu0 0
  %340 = vmatpush.bf16.msra.mxu0 0
  %341 = vmatpush.bf16.msra.mxu0 0
  %342 = vmatpush.bf16.msra.mxu0 %v333
  %343 = vmatmul.bf16.gmra.mxu0 %v84
  %v344 = vpop.f32.mrf.mxu0
  %v345 = vadd.f32 %v330, %v344
  %v346 = vpop.f32.mrf.mxu0
  %v347 = vadd.f32 %v330, %v346
  %348 = vdwg.mxu0
  %v349 = vpack.c.bf16 %v297, %v296
  %v351 = vsel %vm59, %v349, 0
  %353 = vmatpush.bf16.msra.mxu0 0
  %354 = vmatpush.bf16.msra.mxu0 0
  %355 = vmatpush.bf16.msra.mxu0 0
  %356 = vmatpush.bf16.msra.mxu0 0
  %357 = vmatpush.bf16.msra.mxu0 0
  %358 = vmatpush.bf16.msra.mxu0 0
  %359 = vmatpush.bf16.msra.mxu0 %v310
  %360 = vmatpush.bf16.msra.mxu0 %v309
  %361 = vmatmul.bf16.gmra.mxu0 %v351
  %v362 = vpop.f32.mrf.mxu0
  %v363 = vadd.f32 0.0, %v362
  %v364 = vpop.f32.mrf.mxu0
  %v365 = vadd.f32 0.0, %v364
  %366 = vdwg.mxu0
  %v367 = vpack.c.bf16 %v365, %v363
  %v369 = vand.u32 %v367, %v89
  %371 = vmatpush.bf16.msra.mxu0 0
  %372 = vmatpush.bf16.msra.mxu0 0
  %373 = vmatpush.bf16.msra.mxu0 0
  %374 = vmatpush.bf16.msra.mxu0 0
  %375 = vmatpush.bf16.msra.mxu0 0
  %376 = vmatpush.bf16.msra.mxu0 0
  %377 = vmatpush.bf16.msra.mxu0 0
  %378 = vmatpush.bf16.msra.mxu0 %v369
  %379 = vmatmul.bf16.gmra.mxu0 %v131
  %v380 = vpop.f32.mrf.mxu0
  %v381 = vadd.f32 %v330, %v380
  %v382 = vpop.f32.mrf.mxu0
  %v383 = vadd.f32 %v330, %v382
  %384 = vdwg.mxu0
  %v385 = vpack.c.bf16 %v347, %v345
  %v386 = vpack.c.bf16 %v304, %v303
  %v387 = vpack.c.bf16 %v306, %v305
  %v389 = vsel %vm59, %v385, 0
  %391 = vmatpush.bf16.msra.mxu0 0
  %392 = vmatpush.bf16.msra.mxu0 0
  %393 = vmatpush.bf16.msra.mxu0 0
  %394 = vmatpush.bf16.msra.mxu0 0
  %395 = vmatpush.bf16.msra.mxu0 0
  %396 = vmatpush.bf16.msra.mxu0 0
  %397 = vmatpush.bf16.msra.mxu0 %v387
  %398 = vmatpush.bf16.msra.mxu0 %v386
  %399 = vmatmul.bf16.gmra.mxu0 %v389
  %v400 = vpop.f32.mrf.mxu0
  %v401 = vadd.f32 0.0, %v400
  %v402 = vpop.f32.mrf.mxu0
  %v403 = vadd.f32 0.0, %v402
  %404 = vdwg.mxu0
  %v405 = vpack.c.bf16 %v383, %v381
  %v407 = vsel %vm59, %v405, 0
  %409 = vmatpush.bf16.msra.mxu0 0
  %410 = vmatpush.bf16.msra.mxu0 0
  %411 = vmatpush.bf16.msra.mxu0 0
  %412 = vmatpush.bf16.msra.mxu0 0
  %413 = vmatpush.bf16.msra.mxu0 0
  %414 = vmatpush.bf16.msra.mxu0 0
  %415 = vmatpush.bf16.msra.mxu0 %v387
  %416 = vmatpush.bf16.msra.mxu0 %v386
  %417 = vmatmul.bf16.gmra.mxu0 %v407
  %v418 = vpop.f32.mrf.mxu0
  %v419 = vadd.f32 0.0, %v418
  %v420 = vpop.f32.mrf.mxu0
  %v421 = vadd.f32 0.0, %v420
  %422 = vdwg.mxu0
  %v423 = vpack.c.bf16 %v403, %v401
  %v425 = vand.u32 %v423, %v89
  %427 = vmatpush.bf16.msra.mxu0 0
  %428 = vmatpush.bf16.msra.mxu0 0
  %429 = vmatpush.bf16.msra.mxu0 0
  %430 = vmatpush.bf16.msra.mxu0 0
  %431 = vmatpush.bf16.msra.mxu0 0
  %432 = vmatpush.bf16.msra.mxu0 0
  %433 = vmatpush.bf16.msra.mxu0 0
  %434 = vmatpush.bf16.msra.mxu0 %v425
  %435 = vmatmul.bf16.gmra.mxu0 %v193
  %v436 = vpop.f32.mrf.mxu0
  %v437 = vadd.f32 0.0, %v436
  %v438 = vpop.f32.mrf.mxu0
  %v439 = vadd.f32 0.0, %v438
  %440 = vdwg.mxu0
  %v442 = vperm.slane %v307, 0
  %v444 = vadd.f32 %v442, %v437
  %v445 = vadd.f32 %v442, %v439
  %v446 = vpack.c.bf16 %v421, %v419
  %v448 = vand.u32 %v446, %v89
  %450 = vmatpush.bf16.msra.mxu0 0
  %451 = vmatpush.bf16.msra.mxu0 0
  %452 = vmatpush.bf16.msra.mxu0 0
  %453 = vmatpush.bf16.msra.mxu0 0
  %454 = vmatpush.bf16.msra.mxu0 0
  %455 = vmatpush.bf16.msra.mxu0 0
  %456 = vmatpush.bf16.msra.mxu0 0
  %457 = vmatpush.bf16.msra.mxu0 %v448
  %458 = vmatmul.bf16.gmra.mxu0 %v223
  %v459 = vpop.f32.mrf.mxu0
  %v460 = vadd.f32 0.0, %v459
  %v461 = vpop.f32.mrf.mxu0
  %v462 = vadd.f32 0.0, %v461
  %463 = vdwg.mxu0
  %v464 = vadd.f32 %v444, %v460
  %v465 = vadd.f32 %v445, %v462
  %v466 = vmax.f32 %v464, 0.0
  %v467 = vmax.f32 %v465, 0.0
  %v468 = vadd.f32 %v466, %v39
  %v469 = vadd.f32 %v467, %v40
  %470 = vmatpush.bf16.msra.mxu0 0
  %471 = vmatpush.bf16.msra.mxu0 0
  %472 = vmatpush.bf16.msra.mxu0 0
  %473 = vmatpush.bf16.msra.mxu0 0
  %474 = vmatpush.bf16.msra.mxu0 0
  %475 = vmatpush.bf16.msra.mxu0 0
  %476 = vmatpush.bf16.msra.mxu0 0
  %477 = vmatpush.bf16.msra.mxu0 %v425
  %478 = vmatmul.bf16.gmra.mxu0 %v253
  %v479 = vpop.f32.mrf.mxu0
  %v480 = vadd.f32 0.0, %v479
  %v481 = vpop.f32.mrf.mxu0
  %v482 = vadd.f32 0.0, %v481
  %483 = vdwg.mxu0
  %v484 = vadd.f32 %v442, %v480
  %v485 = vadd.f32 %v442, %v482
  %486 = vmatpush.bf16.msra.mxu0 0
  %487 = vmatpush.bf16.msra.mxu0 0
  %488 = vmatpush.bf16.msra.mxu0 0
  %489 = vmatpush.bf16.msra.mxu0 0
  %490 = vmatpush.bf16.msra.mxu0 0
  %491 = vmatpush.bf16.msra.mxu0 0
  %492 = vmatpush.bf16.msra.mxu0 0
  %493 = vmatpush.bf16.msra.mxu0 %v448
  %494 = vmatmul.bf16.gmra.mxu0 %v276
  %v495 = vpop.f32.mrf.mxu0
  %v496 = vadd.f32 0.0, %v495
  %v497 = vpop.f32.mrf.mxu0
  %v498 = vadd.f32 0.0, %v497
  %499 = vdwg.mxu0
  %v500 = vadd.f32 %v484, %v496
  %v501 = vadd.f32 %v485, %v498
  %v502 = vmax.f32 %v500, 0.0
  %v503 = vmax.f32 %v501, 0.0
  %v504 = vadd.f32 %v502, %v42
  %v505 = vadd.f32 %v503, %v43
  %506 = vst.msk [vmem:[%s11] sm:$0xff] %vm59, %v468
  %vm507 = vcmask 260096
  %508 = vst.msk [vmem:[%s11 + $0x8] sm:$0x7f] %vm507, %v469
  %s509 = scalar_lea.vmem %s11, 16
  %510 = vst.msk [vmem:[%s509] sm:$0xff] %vm59, %v504
  %511 = vst.msk [vmem:[%s509 + $0x8] sm:$0x7f] %vm507, %v505
  // Predicated region
  $region46: #{rnn_model_clause_forward.4} parent=0 // pred_check
    _
  $region47: #{rnn_model_clause_forward.4} parent=0 // pred_check_branch
    %513 = sbr.rel (0) target = $region49
  $region48: #{rnn_model_clause_forward.4} parent=0 // pred_region
    _
  $region49: #{rnn_model_clause_forward.4} parent=0 // pred_fallthru
    _
  // Predicated region
  $region50: #{rnn_model_clause_forward.4} parent=0 // pred_check
    _
  $region51: #{rnn_model_clause_forward.4} parent=0 // pred_check_branch
    %515 = sbr.rel (0) target = $region53
  $region52: #{rnn_model_clause_forward.4} parent=0 // pred_region
    _
  $region53: #{rnn_model_clause_forward.4} parent=0 // pred_fallthru
    _

// kernel: rnn_model_clause_forward.5
$region0: #{rnn_model_clause_forward.5}
  #allocation0 [shape = 'u32[]', space=smem, size = 0x4, offset = 0x4, fixed_abs, tag = 'smem constant byte address 0x4 - core index']
  #allocation1 [shape = 'u32[72,128]{1,0:T(1,128)}', space=vmem, size = 0x9000, scoped, tag = 'internal scratch']
  %s0 = inlined_call_operand.vmem [shape: f32[2,16,32], index: 0, kind: input, shape index: {}]
  %s1 = inlined_call_operand.vmem [shape: f32[2,15,32], index: 1, kind: input, shape index: {}]
  %s2 = inlined_call_operand.vmem [shape: f32[32,32], index: 2, kind: input, shape index: {}]
  %s3 = inlined_call_operand.vmem [shape: f32[1,32], index: 3, kind: input, shape index: {}]
  %s4 = inlined_call_operand.vmem [shape: f32[32,32], index: 4, kind: input, shape index: {}]
  %s5 = inlined_call_operand.vmem [shape: f32[1,32], index: 5, kind: input, shape index: {}]
  %s6 = inlined_call_operand.vmem [shape: f32[32,16], index: 6, kind: input, shape index: {}]
  %s7 = inlined_call_operand.vmem [shape: f32[32,16], index: 7, kind: input, shape index: {}]
  %s8 = inlined_call_operand.vmem [shape: f32[1,16], index: 8, kind: input, shape index: {}]
  %s9 = inlined_call_operand.vmem [shape: f32[32,16], index: 9, kind: input, shape index: {}]
  %s10 = inlined_call_operand.vmem [shape: f32[32,16], index: 10, kind: input, shape index: {}]
  %s11 = inlined_call_operand.vmem [shape: f32[1,16], index: 11, kind: input, shape index: {}]
  %s12 = inlined_call_operand.vmem [shape: f32[8,16], index: 12, kind: input, shape index: {}]
  %s13 = inlined_call_operand.vmem [shape: f32[8,16], index: 13, kind: input, shape index: {}]
  %s14 = inlined_call_operand.vmem [shape: f32[8,16], index: 14, kind: input, shape index: {}]
  %s15 = inlined_call_operand.vmem [shape: f32[8,16], index: 15, kind: input, shape index: {}]
  %s16 = inlined_call_operand.vmem [shape: f32[1,8], index: 16, kind: input, shape index: {}]
  %s17 = inlined_call_operand.vmem [shape: f32[2,1,8], index: 17, kind: output, shape index: {}]
  %s18 = sld [smem:[#allocation0]]
  $region101: #{rnn_model_clause_forward.5} parent=0
    _
  %s20 = ssub.s32 1, %s18
  %s21 = scalar_select 0, %s20, %s18
  loop: start=0, step=1, limit=4
  $region2: #{rnn_model_clause_forward.5} parent=0 // loop_pre_header
    _
  $region3: #{rnn_model_clause_forward.5} parent=0 // loop_header
    %s23 = sphi 0, %s27
    %p24 = scmp.ge.s32.totalorder %s23, 4
    %s33 = sphi 0, %s35
    %s36 = sphi 0, %s33
    %s37 = sphi 0, %s36
    %s53 = sphi 0, %s37
    %s59 = sphi 0, %s61
    %s62 = sphi 0, %s59
    %s63 = sphi 0, %s62
    %s79 = sphi 0, %s63
    %s83 = sphi 0, %s83
    %s85 = sphi 0, %s83
    %s86 = sphi 0, %s85
    %s100 = sphi 0, %s86
    %s104 = sphi 0, %s104
    %s106 = sphi 0, %s104
    %s107 = sphi 0, %s106
    %s121 = sphi 0, %s107
    %s125 = sphi 0, %s125
    %s127 = sphi 0, %s125
    %s128 = sphi 0, %s127
    %s142 = sphi 0, %s128
    %s146 = sphi 0, %s146
    %s148 = sphi 0, %s146
    %s149 = sphi 0, %s148
    %s163 = sphi 0, %s149
    %s167 = sphi 0, %s167
    %s169 = sphi 0, %s167
    %s170 = sphi 0, %s169
    %s184 = sphi 0, %s170
    %s188 = sphi 0, %s188
    %s190 = sphi 0, %s188
    %s191 = sphi 0, %s190
    %s205 = sphi 0, %s191
    %s209 = sphi 0, %s209
    %s211 = sphi 0, %s209
    %s212 = sphi 0, %s211
    %s226 = sphi 0, %s212
    %s230 = sphi 0, %s230
    %s232 = sphi 0, %s230
    %s233 = sphi 0, %s232
    %s247 = sphi 0, %s233
    %s251 = sphi 0, %s251
    %s253 = sphi 0, %s251
    %s254 = sphi 0, %s253
    %s268 = sphi 0, %s254
    %s272 = sphi 0, %s272
    %s274 = sphi 0, %s272
    %s275 = sphi 0, %s274
    %s289 = sphi 0, %s275
    %s293 = sphi 0, %s293
    %s295 = sphi 0, %s293
    %s296 = sphi 0, %s295
    %s310 = sphi 0, %s296
    %s314 = sphi 0, %s314
    %s316 = sphi 0, %s314
    %s317 = sphi 0, %s316
    %s331 = sphi 0, %s317
    %s335 = sphi 0, %s335
    %s337 = sphi 0, %s335
    %s338 = sphi 0, %s337
    %s352 = sphi 0, %s338
    %s356 = sphi 0, %s356
    %s358 = sphi 0, %s356
    %s359 = sphi 0, %s358
    %s373 = sphi 0, %s359
    %s377 = sphi 0, %s377
    %s379 = sphi 0, %s377
    %s380 = sphi 0, %s379
    %s394 = sphi 0, %s380
    %s400 = sphi 0, %s402
    %s403 = sphi 0, %s400
    %s404 = sphi 0, %s403
    %s420 = sphi 0, %s404
  $region4: #{rnn_model_clause_forward.5} parent=0 // loop_header_branch
    %26 = sbr.rel (%p24) target = $region8
  $region5: #{rnn_model_clause_forward.5} parent=0 // loop_body
    %s28 = ssub.s32 %s23, 1
    %s29 = ssub.s32 %s23, 2
    %s30 = sadd.s32 %s23, 1
    %s31 = ssub.s32 %s23, %s30
    %p32 = scmp.eq.s32.totalorder %s31, 0
    %s34 = sadd.s32 %s33, 1
    %s35 = scalar_select %p32, %s33, %s34
    %p38 = pneg %p32
    %p39 = scmp.eq.s32.totalorder %s23, 1
    %p40 = por %p38, %p39
    %p41 = scmp.ne.s32.totalorder %s33, %s36
    %p42 = scmp.eq.s32.totalorder %s23, 0
    %p43 = por %p41, %p42
    %p44 = scmp.ne.s32.totalorder %s33, %s36
    %p45 = scmp.eq.s32.totalorder %s28, 1
    %p46 = por %p44, %p45
    %p47 = scmp.ne.s32.totalorder %s36, %s37
    %p48 = scmp.eq.s32.totalorder %s28, 0
    %p49 = por %p47, %p48
    %p50 = scmp.ne.s32.totalorder %s36, %s37
    %p51 = scmp.eq.s32.totalorder %s29, 1
    %p52 = por %p50, %p51
    %p54 = scmp.ne.s32.totalorder %s37, %s53
    %p55 = scmp.eq.s32.totalorder %s29, 0
    %p56 = por %p54, %p55
    %s57 = ssub.s32 %s23, %s30
    %p58 = scmp.eq.s32.totalorder %s57, 0
    %s60 = sadd.s32 %s59, 1
    %s61 = scalar_select %p58, %s59, %s60
    %p64 = pneg %p58
    %p65 = scmp.eq.s32.totalorder %s23, 1
    %p66 = por %p64, %p65
    %p67 = scmp.ne.s32.totalorder %s59, %s62
    %p68 = scmp.eq.s32.totalorder %s23, 0
    %p69 = por %p67, %p68
    %p70 = scmp.ne.s32.totalorder %s59, %s62
    %p71 = scmp.eq.s32.totalorder %s28, 1
    %p72 = por %p70, %p71
    %p73 = scmp.ne.s32.totalorder %s62, %s63
    %p74 = scmp.eq.s32.totalorder %s28, 0
    %p75 = por %p73, %p74
    %p76 = scmp.ne.s32.totalorder %s62, %s63
    %p77 = scmp.eq.s32.totalorder %s29, 1
    %p78 = por %p76, %p77
    %p80 = scmp.ne.s32.totalorder %s63, %s79
    %p81 = scmp.eq.s32.totalorder %s29, 0
    %p82 = por %p80, %p81
    %s84 = sadd.s32 %s83, 1
    %p87 = scmp.eq.s32.totalorder %s23, 1
    %p88 = scmp.ne.s32.totalorder %s83, %s85
    %p89 = scmp.eq.s32.totalorder %s23, 0
    %p90 = por %p88, %p89
    %p91 = scmp.ne.s32.totalorder %s83, %s85
    %p92 = scmp.eq.s32.totalorder %s28, 1
    %p93 = por %p91, %p92
    %p94 = scmp.ne.s32.totalorder %s85, %s86
    %p95 = scmp.eq.s32.totalorder %s28, 0
    %p96 = por %p94, %p95
    %p97 = scmp.ne.s32.totalorder %s85, %s86
    %p98 = scmp.eq.s32.totalorder %s29, 1
    %p99 = por %p97, %p98
    %p101 = scmp.ne.s32.totalorder %s86, %s100
    %p102 = scmp.eq.s32.totalorder %s29, 0
    %p103 = por %p101, %p102
    %s105 = sadd.s32 %s104, 1
    %p108 = scmp.eq.s32.totalorder %s23, 1
    %p109 = scmp.ne.s32.totalorder %s104, %s106
    %p110 = scmp.eq.s32.totalorder %s23, 0
    %p111 = por %p109, %p110
    %p112 = scmp.ne.s32.totalorder %s104, %s106
    %p113 = scmp.eq.s32.totalorder %s28, 1
    %p114 = por %p112, %p113
    %p115 = scmp.ne.s32.totalorder %s106, %s107
    %p116 = scmp.eq.s32.totalorder %s28, 0
    %p117 = por %p115, %p116
    %p118 = scmp.ne.s32.totalorder %s106, %s107
    %p119 = scmp.eq.s32.totalorder %s29, 1
    %p120 = por %p118, %p119
    %p122 = scmp.ne.s32.totalorder %s107, %s121
    %p123 = scmp.eq.s32.totalorder %s29, 0
    %p124 = por %p122, %p123
    %s126 = sadd.s32 %s125, 1
    %p129 = scmp.eq.s32.totalorder %s23, 1
    %p130 = scmp.ne.s32.totalorder %s125, %s127
    %p131 = scmp.eq.s32.totalorder %s23, 0
    %p132 = por %p130, %p131
    %p133 = scmp.ne.s32.totalorder %s125, %s127
    %p134 = scmp.eq.s32.totalorder %s28, 1
    %p135 = por %p133, %p134
    %p136 = scmp.ne.s32.totalorder %s127, %s128
    %p137 = scmp.eq.s32.totalorder %s28, 0
    %p138 = por %p136, %p137
    %p139 = scmp.ne.s32.totalorder %s127, %s128
    %p140 = scmp.eq.s32.totalorder %s29, 1
    %p141 = por %p139, %p140
    %p143 = scmp.ne.s32.totalorder %s128, %s142
    %p144 = scmp.eq.s32.totalorder %s29, 0
    %p145 = por %p143, %p144
    %s147 = sadd.s32 %s146, 1
    %p150 = scmp.eq.s32.totalorder %s23, 1
    %p151 = scmp.ne.s32.totalorder %s146, %s148
    %p152 = scmp.eq.s32.totalorder %s23, 0
    %p153 = por %p151, %p152
    %p154 = scmp.ne.s32.totalorder %s146, %s148
    %p155 = scmp.eq.s32.totalorder %s28, 1
    %p156 = por %p154, %p155
    %p157 = scmp.ne.s32.totalorder %s148, %s149
    %p158 = scmp.eq.s32.totalorder %s28, 0
    %p159 = por %p157, %p158
    %p160 = scmp.ne.s32.totalorder %s148, %s149
    %p161 = scmp.eq.s32.totalorder %s29, 1
    %p162 = por %p160, %p161
    %p164 = scmp.ne.s32.totalorder %s149, %s163
    %p165 = scmp.eq.s32.totalorder %s29, 0
    %p166 = por %p164, %p165
    %s168 = sadd.s32 %s167, 1
    %p171 = scmp.eq.s32.totalorder %s23, 1
    %p172 = scmp.ne.s32.totalorder %s167, %s169
    %p173 = scmp.eq.s32.totalorder %s23, 0
    %p174 = por %p172, %p173
    %p175 = scmp.ne.s32.totalorder %s167, %s169
    %p176 = scmp.eq.s32.totalorder %s28, 1
    %p177 = por %p175, %p176
    %p178 = scmp.ne.s32.totalorder %s169, %s170
    %p179 = scmp.eq.s32.totalorder %s28, 0
    %p180 = por %p178, %p179
    %p181 = scmp.ne.s32.totalorder %s169, %s170
    %p182 = scmp.eq.s32.totalorder %s29, 1
    %p183 = por %p181, %p182
    %p185 = scmp.ne.s32.totalorder %s170, %s184
    %p186 = scmp.eq.s32.totalorder %s29, 0
    %p187 = por %p185, %p186
    %s189 = sadd.s32 %s188, 1
    %p192 = scmp.eq.s32.totalorder %s23, 1
    %p193 = scmp.ne.s32.totalorder %s188, %s190
    %p194 = scmp.eq.s32.totalorder %s23, 0
    %p195 = por %p193, %p194
    %p196 = scmp.ne.s32.totalorder %s188, %s190
    %p197 = scmp.eq.s32.totalorder %s28, 1
    %p198 = por %p196, %p197
    %p199 = scmp.ne.s32.totalorder %s190, %s191
    %p200 = scmp.eq.s32.totalorder %s28, 0
    %p201 = por %p199, %p200
    %p202 = scmp.ne.s32.totalorder %s190, %s191
    %p203 = scmp.eq.s32.totalorder %s29, 1
    %p204 = por %p202, %p203
    %p206 = scmp.ne.s32.totalorder %s191, %s205
    %p207 = scmp.eq.s32.totalorder %s29, 0
    %p208 = por %p206, %p207
    %s210 = sadd.s32 %s209, 1
    %p213 = scmp.eq.s32.totalorder %s23, 1
    %p214 = scmp.ne.s32.totalorder %s209, %s211
    %p215 = scmp.eq.s32.totalorder %s23, 0
    %p216 = por %p214, %p215
    %p217 = scmp.ne.s32.totalorder %s209, %s211
    %p218 = scmp.eq.s32.totalorder %s28, 1
    %p219 = por %p217, %p218
    %p220 = scmp.ne.s32.totalorder %s211, %s212
    %p221 = scmp.eq.s32.totalorder %s28, 0
    %p222 = por %p220, %p221
    %p223 = scmp.ne.s32.totalorder %s211, %s212
    %p224 = scmp.eq.s32.totalorder %s29, 1
    %p225 = por %p223, %p224
    %p227 = scmp.ne.s32.totalorder %s212, %s226
    %p228 = scmp.eq.s32.totalorder %s29, 0
    %p229 = por %p227, %p228
    %s231 = sadd.s32 %s230, 1
    %p234 = scmp.eq.s32.totalorder %s23, 1
    %p235 = scmp.ne.s32.totalorder %s230, %s232
    %p236 = scmp.eq.s32.totalorder %s23, 0
    %p237 = por %p235, %p236
    %p238 = scmp.ne.s32.totalorder %s230, %s232
    %p239 = scmp.eq.s32.totalorder %s28, 1
    %p240 = por %p238, %p239
    %p241 = scmp.ne.s32.totalorder %s232, %s233
    %p242 = scmp.eq.s32.totalorder %s28, 0
    %p243 = por %p241, %p242
    %p244 = scmp.ne.s32.totalorder %s232, %s233
    %p245 = scmp.eq.s32.totalorder %s29, 1
    %p246 = por %p244, %p245
    %p248 = scmp.ne.s32.totalorder %s233, %s247
    %p249 = scmp.eq.s32.totalorder %s29, 0
    %p250 = por %p248, %p249
    %s252 = sadd.s32 %s251, 1
    %p255 = scmp.eq.s32.totalorder %s23, 1
    %p256 = scmp.ne.s32.totalorder %s251, %s253
    %p257 = scmp.eq.s32.totalorder %s23, 0
    %p258 = por %p256, %p257
    %p259 = scmp.ne.s32.totalorder %s251, %s253
    %p260 = scmp.eq.s32.totalorder %s28, 1
    %p261 = por %p259, %p260
    %p262 = scmp.ne.s32.totalorder %s253, %s254
    %p263 = scmp.eq.s32.totalorder %s28, 0
    %p264 = por %p262, %p263
    %p265 = scmp.ne.s32.totalorder %s253, %s254
    %p266 = scmp.eq.s32.totalorder %s29, 1
    %p267 = por %p265, %p266
    %p269 = scmp.ne.s32.totalorder %s254, %s268
    %p270 = scmp.eq.s32.totalorder %s29, 0
    %p271 = por %p269, %p270
    %s273 = sadd.s32 %s272, 1
    %p276 = scmp.eq.s32.totalorder %s23, 1
    %p277 = scmp.ne.s32.totalorder %s272, %s274
    %p278 = scmp.eq.s32.totalorder %s23, 0
    %p279 = por %p277, %p278
    %p280 = scmp.ne.s32.totalorder %s272, %s274
    %p281 = scmp.eq.s32.totalorder %s28, 1
    %p282 = por %p280, %p281
    %p283 = scmp.ne.s32.totalorder %s274, %s275
    %p284 = scmp.eq.s32.totalorder %s28, 0
    %p285 = por %p283, %p284
    %p286 = scmp.ne.s32.totalorder %s274, %s275
    %p287 = scmp.eq.s32.totalorder %s29, 1
    %p288 = por %p286, %p287
    %p290 = scmp.ne.s32.totalorder %s275, %s289
    %p291 = scmp.eq.s32.totalorder %s29, 0
    %p292 = por %p290, %p291
    %s294 = sadd.s32 %s293, 1
    %p297 = scmp.eq.s32.totalorder %s23, 1
    %p298 = scmp.ne.s32.totalorder %s293, %s295
    %p299 = scmp.eq.s32.totalorder %s23, 0
    %p300 = por %p298, %p299
    %p301 = scmp.ne.s32.totalorder %s293, %s295
    %p302 = scmp.eq.s32.totalorder %s28, 1
    %p303 = por %p301, %p302
    %p304 = scmp.ne.s32.totalorder %s295, %s296
    %p305 = scmp.eq.s32.totalorder %s28, 0
    %p306 = por %p304, %p305
    %p307 = scmp.ne.s32.totalorder %s295, %s296
    %p308 = scmp.eq.s32.totalorder %s29, 1
    %p309 = por %p307, %p308
    %p311 = scmp.ne.s32.totalorder %s296, %s310
    %p312 = scmp.eq.s32.totalorder %s29, 0
    %p313 = por %p311, %p312
    %s315 = sadd.s32 %s314, 1
    %p318 = scmp.eq.s32.totalorder %s23, 1
    %p319 = scmp.ne.s32.totalorder %s314, %s316
    %p320 = scmp.eq.s32.totalorder %s23, 0
    %p321 = por %p319, %p320
    %p322 = scmp.ne.s32.totalorder %s314, %s316
    %p323 = scmp.eq.s32.totalorder %s28, 1
    %p324 = por %p322, %p323
    %p325 = scmp.ne.s32.totalorder %s316, %s317
    %p326 = scmp.eq.s32.totalorder %s28, 0
    %p327 = por %p325, %p326
    %p328 = scmp.ne.s32.totalorder %s316, %s317
    %p329 = scmp.eq.s32.totalorder %s29, 1
    %p330 = por %p328, %p329
    %p332 = scmp.ne.s32.totalorder %s317, %s331
    %p333 = scmp.eq.s32.totalorder %s29, 0
    %p334 = por %p332, %p333
    %s336 = sadd.s32 %s335, 1
    %p339 = scmp.eq.s32.totalorder %s23, 1
    %p340 = scmp.ne.s32.totalorder %s335, %s337
    %p341 = scmp.eq.s32.totalorder %s23, 0
    %p342 = por %p340, %p341
    %p343 = scmp.ne.s32.totalorder %s335, %s337
    %p344 = scmp.eq.s32.totalorder %s28, 1
    %p345 = por %p343, %p344
    %p346 = scmp.ne.s32.totalorder %s337, %s338
    %p347 = scmp.eq.s32.totalorder %s28, 0
    %p348 = por %p346, %p347
    %p349 = scmp.ne.s32.totalorder %s337, %s338
    %p350 = scmp.eq.s32.totalorder %s29, 1
    %p351 = por %p349, %p350
    %p353 = scmp.ne.s32.totalorder %s338, %s352
    %p354 = scmp.eq.s32.totalorder %s29, 0
    %p355 = por %p353, %p354
    %s357 = sadd.s32 %s356, 1
    %p360 = scmp.eq.s32.totalorder %s23, 1
    %p361 = scmp.ne.s32.totalorder %s356, %s358
    %p362 = scmp.eq.s32.totalorder %s23, 0
    %p363 = por %p361, %p362
    %p364 = scmp.ne.s32.totalorder %s356, %s358
    %p365 = scmp.eq.s32.totalorder %s28, 1
    %p366 = por %p364, %p365
    %p367 = scmp.ne.s32.totalorder %s358, %s359
    %p368 = scmp.eq.s32.totalorder %s28, 0
    %p369 = por %p367, %p368
    %p370 = scmp.ne.s32.totalorder %s358, %s359
    %p371 = scmp.eq.s32.totalorder %s29, 1
    %p372 = por %p370, %p371
    %p374 = scmp.ne.s32.totalorder %s359, %s373
    %p375 = scmp.eq.s32.totalorder %s29, 0
    %p376 = por %p374, %p375
    %s378 = sadd.s32 %s377, 1
    %p381 = scmp.eq.s32.totalorder %s23, 1
    %p382 = scmp.ne.s32.totalorder %s377, %s379
    %p383 = scmp.eq.s32.totalorder %s23, 0
    %p384 = por %p382, %p383
    %p385 = scmp.ne.s32.totalorder %s377, %s379
    %p386 = scmp.eq.s32.totalorder %s28, 1
    %p387 = por %p385, %p386
    %p388 = scmp.ne.s32.totalorder %s379, %s380
    %p389 = scmp.eq.s32.totalorder %s28, 0
    %p390 = por %p388, %p389
    %p391 = scmp.ne.s32.totalorder %s379, %s380
    %p392 = scmp.eq.s32.totalorder %s29, 1
    %p393 = por %p391, %p392
    %p395 = scmp.ne.s32.totalorder %s380, %s394
    %p396 = scmp.eq.s32.totalorder %s29, 0
    %p397 = por %p395, %p396
    %s398 = ssub.s32 %s23, %s30
    %p399 = scmp.eq.s32.totalorder %s398, 0
    %s401 = sadd.s32 %s400, 1
    %s402 = scalar_select %p399, %s400, %s401
    %p405 = pneg %p399
    %p406 = scmp.eq.s32.totalorder %s23, 1
    %p407 = por %p405, %p406
    %p408 = scmp.ne.s32.totalorder %s400, %s403
    %p409 = scmp.eq.s32.totalorder %s23, 0
    %p410 = por %p408, %p409
    %p411 = scmp.ne.s32.totalorder %s400, %s403
    %p412 = scmp.eq.s32.totalorder %s28, 1
    %p413 = por %p411, %p412
    %p414 = scmp.ne.s32.totalorder %s403, %s404
    %p415 = scmp.eq.s32.totalorder %s28, 0
    %p416 = por %p414, %p415
    %p417 = scmp.ne.s32.totalorder %s403, %s404
    %p418 = scmp.eq.s32.totalorder %s29, 1
    %p419 = por %p417, %p418
    %p421 = scmp.ne.s32.totalorder %s404, %s420
    %p422 = scmp.eq.s32.totalorder %s29, 0
    %p423 = por %p421, %p422
    %p424 = scmp.le.s32.totalorder 1, %s23
    %p425 = scmp.lt.s32.totalorder %s23, 3
    %p426 = pnand %p424, %p425
    %p427 = pneg %p426
    // Predicated region
    $region9: #{rnn_model_clause_forward.5} parent=5 // pred_check
      _
    $region10: #{rnn_model_clause_forward.5} parent=5 // pred_check_branch
      %429 = sbr.rel (%p426) target = $region12
    $region11: #{rnn_model_clause_forward.5} parent=5 // pred_region
      %s430 = ssub.s32 %s23, 1
      // Predicated region
      $region13: #{rnn_model_clause_forward.5} parent=11 // pred_check
        %p431 = pneg %p96
      $region14: #{rnn_model_clause_forward.5} parent=11 // pred_check_branch
        %433 = sbr.rel (%p431) target = $region16
      $region15: #{rnn_model_clause_forward.5} parent=11 // pred_region
        _
      $region16: #{rnn_model_clause_forward.5} parent=11 // pred_fallthru
        _
      // Predicated region
      $region17: #{rnn_model_clause_forward.5} parent=11 // pred_check
        %p434 = pneg %p117
      $region18: #{rnn_model_clause_forward.5} parent=11 // pred_check_branch
        %436 = sbr.rel (%p434) target = $region20
      $region19: #{rnn_model_clause_forward.5} parent=11 // pred_region
        _
      $region20: #{rnn_model_clause_forward.5} parent=11 // pred_fallthru
        _
      // Predicated region
      $region21: #{rnn_model_clause_forward.5} parent=11 // pred_check
        %p437 = pneg %p138
      $region22: #{rnn_model_clause_forward.5} parent=11 // pred_check_branch
        %439 = sbr.rel (%p437) target = $region24
      $region23: #{rnn_model_clause_forward.5} parent=11 // pred_region
        _
      $region24: #{rnn_model_clause_forward.5} parent=11 // pred_fallthru
        _
      // Predicated region
      $region25: #{rnn_model_clause_forward.5} parent=11 // pred_check
        %p440 = pneg %p159
      $region26: #{rnn_model_clause_forward.5} parent=11 // pred_check_branch
        %442 = sbr.rel (%p440) target = $region28
      $region27: #{rnn_model_clause_forward.5} parent=11 // pred_region
        _
      $region28: #{rnn_model_clause_forward.5} parent=11 // pred_fallthru
        _
      // Predicated region
      $region29: #{rnn_model_clause_forward.5} parent=11 // pred_check
        %p443 = pneg %p180
      $region30: #{rnn_model_clause_forward.5} parent=11 // pred_check_branch
        %445 = sbr.rel (%p443) target = $region32
      $region31: #{rnn_model_clause_forward.5} parent=11 // pred_region
        _
      $region32: #{rnn_model_clause_forward.5} parent=11 // pred_fallthru
        _
      // Predicated region
      $region33: #{rnn_model_clause_forward.5} parent=11 // pred_check
        %p446 = pneg %p201
      $region34: #{rnn_model_clause_forward.5} parent=11 // pred_check_branch
        %448 = sbr.rel (%p446) target = $region36
      $region35: #{rnn_model_clause_forward.5} parent=11 // pred_region
        _
      $region36: #{rnn_model_clause_forward.5} parent=11 // pred_fallthru
        _
      // Predicated region
      $region37: #{rnn_model_clause_forward.5} parent=11 // pred_check
        %p449 = pneg %p222
      $region38: #{rnn_model_clause_forward.5} parent=11 // pred_check_branch
        %451 = sbr.rel (%p449) target = $region40
      $region39: #{rnn_model_clause_forward.5} parent=11 // pred_region
        _
      $region40: #{rnn_model_clause_forward.5} parent=11 // pred_fallthru
        _
      // Predicated region
      $region41: #{rnn_model_clause_forward.5} parent=11 // pred_check
        %p452 = pneg %p243
      $region42: #{rnn_model_clause_forward.5} parent=11 // pred_check_branch
        %454 = sbr.rel (%p452) target = $region44
      $region43: #{rnn_model_clause_forward.5} parent=11 // pred_region
        _
      $region44: #{rnn_model_clause_forward.5} parent=11 // pred_fallthru
        _
      // Predicated region
      $region45: #{rnn_model_clause_forward.5} parent=11 // pred_check
        %p455 = pneg %p264
      $region46: #{rnn_model_clause_forward.5} parent=11 // pred_check_branch
        %457 = sbr.rel (%p455) target = $region48
      $region47: #{rnn_model_clause_forward.5} parent=11 // pred_region
        _
      $region48: #{rnn_model_clause_forward.5} parent=11 // pred_fallthru
        _
      // Predicated region
      $region49: #{rnn_model_clause_forward.5} parent=11 // pred_check
        %p458 = pneg %p285
      $region50: #{rnn_model_clause_forward.5} parent=11 // pred_check_branch
        %460 = sbr.rel (%p458) target = $region52
      $region51: #{rnn_model_clause_forward.5} parent=11 // pred_region
        _
      $region52: #{rnn_model_clause_forward.5} parent=11 // pred_fallthru
        _
      // Predicated region
      $region53: #{rnn_model_clause_forward.5} parent=11 // pred_check
        %p461 = pneg %p306
      $region54: #{rnn_model_clause_forward.5} parent=11 // pred_check_branch
        %463 = sbr.rel (%p461) target = $region56
      $region55: #{rnn_model_clause_forward.5} parent=11 // pred_region
        _
      $region56: #{rnn_model_clause_forward.5} parent=11 // pred_fallthru
        _
      // Predicated region
      $region57: #{rnn_model_clause_forward.5} parent=11 // pred_check
        %p464 = pneg %p327
      $region58: #{rnn_model_clause_forward.5} parent=11 // pred_check_branch
        %466 = sbr.rel (%p464) target = $region60
      $region59: #{rnn_model_clause_forward.5} parent=11 // pred_region
        _
      $region60: #{rnn_model_clause_forward.5} parent=11 // pred_fallthru
        _
      // Predicated region
      $region61: #{rnn_model_clause_forward.5} parent=11 // pred_check
        %p467 = pneg %p348
      $region62: #{rnn_model_clause_forward.5} parent=11 // pred_check_branch
        %469 = sbr.rel (%p467) target = $region64
      $region63: #{rnn_model_clause_forward.5} parent=11 // pred_region
        _
      $region64: #{rnn_model_clause_forward.5} parent=11 // pred_fallthru
        _
      // Predicated region
      $region65: #{rnn_model_clause_forward.5} parent=11 // pred_check
        %p470 = pneg %p369
      $region66: #{rnn_model_clause_forward.5} parent=11 // pred_check_branch
        %472 = sbr.rel (%p470) target = $region68
      $region67: #{rnn_model_clause_forward.5} parent=11 // pred_region
        _
      $region68: #{rnn_model_clause_forward.5} parent=11 // pred_fallthru
        _
      // Predicated region
      $region69: #{rnn_model_clause_forward.5} parent=11 // pred_check
        %p473 = pneg %p390
      $region70: #{rnn_model_clause_forward.5} parent=11 // pred_check_branch
        %475 = sbr.rel (%p473) target = $region72
      $region71: #{rnn_model_clause_forward.5} parent=11 // pred_region
        _
      $region72: #{rnn_model_clause_forward.5} parent=11 // pred_fallthru
        _
    $region12: #{rnn_model_clause_forward.5} parent=5 // pred_fallthru
      _
    %p476 = scmp.lt.s32.totalorder %s23, 2
    // Predicated region
    $region73: #{rnn_model_clause_forward.5} parent=5 // pred_check
      %p477 = pneg %p476
    $region74: #{rnn_model_clause_forward.5} parent=5 // pred_check_branch
      %479 = sbr.rel (%p477) target = $region76
    $region75: #{rnn_model_clause_forward.5} parent=5 // pred_region
      // Predicated region
      $region77: #{rnn_model_clause_forward.5} parent=75 // pred_check
        %p480 = pneg %p43
      $region78: #{rnn_model_clause_forward.5} parent=75 // pred_check_branch
        %482 = sbr.rel (%p480) target = $region80
      $region79: #{rnn_model_clause_forward.5} parent=75 // pred_region
        %p483 = scmp.lt.s32.totalorder %s23, 1
        %s484 = scalar_select %p483, %s23, 1
        %s485 = smul.addr %s484, 2
        %s486 = smul.addr %s485, 8
        %s487 = scalar_lea.vmem %s0, %s486
      $region80: #{rnn_model_clause_forward.5} parent=75 // pred_fallthru
        _
      // Predicated region
      $region81: #{rnn_model_clause_forward.5} parent=75 // pred_check
        %p488 = pneg %p69
      $region82: #{rnn_model_clause_forward.5} parent=75 // pred_check_branch
        %490 = sbr.rel (%p488) target = $region84
      $region83: #{rnn_model_clause_forward.5} parent=75 // pred_region
        %p491 = scmp.lt.s32.totalorder %s23, 1
        %s492 = scalar_select %p491, %s23, 1
        %s493 = smul.addr %s492, 2
        %s494 = smul.addr %s493, 8
        %s495 = scalar_lea.vmem %s1, %s494
      $region84: #{rnn_model_clause_forward.5} parent=75 // pred_fallthru
        _
    $region76: #{rnn_model_clause_forward.5} parent=5 // pred_fallthru
      _
    %p496 = scmp.le.s32.totalorder 1, %s23
    %p497 = scmp.lt.s32.totalorder %s23, 3
    %p498 = pnand %p496, %p497
    %p499 = pneg %p498
    // Predicated region
    $region85: #{rnn_model_clause_forward.5} parent=5 // pred_check
      _
    $region86: #{rnn_model_clause_forward.5} parent=5 // pred_check_branch
      %501 = sbr.rel (%p498) target = $region88
    $region87: #{rnn_model_clause_forward.5} parent=5 // pred_region
      %s502 = ssub.s32 %s23, 1
      %p503 = scmp.lt.s32.totalorder %s28, 1
      %s504 = scalar_select %p503, %s28, 1
      %s505 = smul.addr %s504, 2
      %s506 = smul.addr %s505, 8
      %s507 = scalar_lea.vmem %s0, %s506
      %p508 = pneg %p49
      %p509 = pneg %p46
      %p510 = scmp.lt.s32.totalorder %s28, 1
      %s511 = scalar_select %p510, %s28, 1
      %s512 = smul.addr %s511, 2
      %s513 = smul.addr %s512, 8
      %s514 = scalar_lea.vmem %s1, %s513
      %p515 = pneg %p75
      %p516 = pneg %p72
      %p517 = pneg %p96
      %p518 = pneg %p93
      %p519 = pneg %p117
      %p520 = pneg %p114
      %p521 = pneg %p138
      %p522 = pneg %p135
      %p523 = pneg %p159
      %p524 = pneg %p156
      %p525 = pneg %p180
      %p526 = pneg %p177
      %p527 = pneg %p201
      %p528 = pneg %p198
      %p529 = pneg %p222
      %p530 = pneg %p219
      %p531 = pneg %p243
      %p532 = pneg %p240
      %p533 = pneg %p264
      %p534 = pneg %p261
      %p535 = pneg %p285
      %p536 = pneg %p282
      %p537 = pneg %p306
      %p538 = pneg %p303
      %p539 = pneg %p327
      %p540 = pneg %p324
      %p541 = pneg %p348
      %p542 = pneg %p345
      %p543 = pneg %p369
      %p544 = pneg %p366
      %p545 = pneg %p390
      %p546 = pneg %p387
      %p547 = pneg %p416
      %p548 = pneg %p413
      %p549 = scmp.lt.s32.totalorder %s28, 1
      %s550 = scalar_select %p549, %s28, 1
      %s551 = scalar_lea.vmem %s17, %s550
      %p552 = scmp.lt.s32.totalorder %s28, 1
      %s553 = scalar_select %p552, %s28, 1
      %s554 = smul.addr %s553, 2
      %s555 = smul.addr %s554, 8
      %s556 = scalar_lea.vmem %s0, %s555
      %p557 = scmp.lt.s32.totalorder %s28, 1
      %s558 = scalar_select %p557, %s28, 1
      %s559 = smul.addr %s558, 2
      %s560 = smul.addr %s559, 8
      %s561 = scalar_lea.vmem %s1, %s560
      %p562 = scmp.lt.s32.totalorder %s28, 1
      %s563 = scalar_select %p562, %s28, 1
      %s564 = scalar_lea.vmem %s17, %s563
      %v566 = vld [vmem:[%s556] sm:$0xff]
      %v567 = vld [vmem:[%s556 + $0x8] sm:$0xff]
      %v568 = vld [vmem:[%s561] sm:$0xff]
      %v569 = vld [vmem:[%s561 + $0x8] sm:$0x7f]
      %v570 = vld [vmem:[%s2] sm:$0xff]
      %v571 = vld [vmem:[%s2 + $0x8] sm:$0xff]
      %v572 = vld [vmem:[%s2 + $0x10] sm:$0xff]
      %v573 = vld [vmem:[%s2 + $0x18] sm:$0xff]
      %v574 = vpack.c.bf16 %v567, %v566
      %v575 = vpack.c.bf16 %v571, %v570
      %v576 = vpack.c.bf16 %v573, %v572
      %v577 = vld [vmem:[%s3] sm:$0x1]
      %v579 = vperm.slane %v577, 0
      %vm581 = vcmask 261120
      %v583 = vsel %vm581, %v574, 0
      %585 = vmatpush.bf16.msra.mxu0 0
      %586 = vmatpush.bf16.msra.mxu0 0
      %587 = vmatpush.bf16.msra.mxu0 0
      %588 = vmatpush.bf16.msra.mxu0 0
      %589 = vmatpush.bf16.msra.mxu0 0
      %590 = vmatpush.bf16.msra.mxu0 0
      %591 = vmatpush.bf16.msra.mxu0 %v576
      %592 = vmatpush.bf16.msra.mxu0 %v575
      %593 = vmatmul.bf16.gmra.mxu0 %v583
      %v594 = vpop.f32.mrf.mxu0
      %v595 = vadd.f32 %v579, %v594
      %v596 = vpop.f32.mrf.mxu0
      %v597 = vadd.f32 %v579, %v596
      %598 = vdwg.mxu0
      %v599 = vmax.f32 %v595, 0.0
      %v600 = vmax.f32 %v597, 0.0
      %v601 = vld [vmem:[%s4] sm:$0xff]
      %v602 = vld [vmem:[%s4 + $0x8] sm:$0xff]
      %v603 = vld [vmem:[%s4 + $0x10] sm:$0xff]
      %v604 = vld [vmem:[%s4 + $0x18] sm:$0xff]
      %v605 = vpack.c.bf16 %v569, %v568
      %v606 = vpack.c.bf16 %v602, %v601
      %v607 = vpack.c.bf16 %v604, %v603
      %v608 = vld [vmem:[%s5] sm:$0x1]
      %v610 = vperm.slane %v608, 0
      %v613 = vsel %vm581, %v605, 0
      %615 = vmatpush.bf16.msra.mxu0 0
      %616 = vmatpush.bf16.msra.mxu0 0
      %617 = vmatpush.bf16.msra.mxu0 0
      %618 = vmatpush.bf16.msra.mxu0 0
      %619 = vmatpush.bf16.msra.mxu0 0
      %620 = vmatpush.bf16.msra.mxu0 0
      %621 = vmatpush.bf16.msra.mxu0 %v607
      %622 = vmatpush.bf16.msra.mxu0 %v606
      %623 = vmatmul.bf16.gmra.mxu0 %v613
      %v624 = vpop.f32.mrf.mxu0
      %v625 = vadd.f32 %v610, %v624
      %v626 = vpop.f32.mrf.mxu0
      %v627 = vadd.f32 %v610, %v626
      %628 = vdwg.mxu0
      %v629 = vmax.f32 %v625, 0.0
      %v630 = vmax.f32 %v627, 0.0
      %v631 = vpack.c.bf16 %v600, %v599
      %v632 = vpack.c.bf16 %v630, %v629
      %v634 = vsel %vm581, %v631, 0
      %v637 = vsel %vm581, %v632, 0
      %639 = vmatpush.bf16.xpose.msra.mxu0 0
      %640 = vmatpush.bf16.xpose.msra.mxu0 0
      %641 = vmatpush.bf16.xpose.msra.mxu0 0
      %642 = vmatpush.bf16.xpose.msra.mxu0 0
      %643 = vmatpush.bf16.xpose.msra.mxu0 0
      %644 = vmatpush.bf16.xpose.msra.mxu0 0
      %645 = vmatpush.bf16.xpose.msra.mxu0 0
      %646 = vmatpush.bf16.xpose.msra.mxu0 %v637
      %647 = vmatmul.bf16.gmra.mxu0 %v634
      %v648 = vpop.f32.mrf.mxu0
      %v649 = vadd.f32 0.0, %v648
      %v650 = vpop.f32.mrf.mxu0
      %v651 = vadd.f32 0.0, %v650
      %652 = vdwg.mxu0
      %vm653 = vcmask 121856
      %v654 = vsel %vm653, %v649, -inf
      %655 = vmax.xlane.f32.xlu0 %v654
      %v656 = vpop.xlane.xlu0 %655
      %v657 = vsel %vm653, %v651, -inf
      %658 = vmax.xlane.f32.xlu0 %v657
      %v659 = vpop.xlane.xlu0 %658
      %v660 = vsub.f32 %v649, %v656
      %v661 = vsub.f32 %v651, %v659
      %v662 = vmul.f32 %v660, 1.442695
      %v663 = vpow.pop %v662
      %v664 = vmul.f32 %v661, 1.442695
      %v665 = vpow.pop %v664
      %v666 = vsel %vm653, %v663, 0.0
      %667 = vadd.xlane.f32.xlu0 %v666
      %v668 = vpop.xlane.xlu0 %667
      %v669 = vsel %vm653, %v665, 0.0
      %670 = vadd.xlane.f32.xlu0 %v669
      %v671 = vpop.xlane.xlu0 %670
      %v672 = vrcp.pop %v668
      %v673 = vmul.f32 %v668, %v672
      %v674 = vsub.f32 1.0, %v673
      %v675 = vmul.f32 %v672, %v674
      %v676 = vadd.f32 %v672, %v675
      %vm677 = vweird.f32 %v668
      %vm678 = vweird.f32 %v672
      %vm679 = vmor %vm677, %vm678
      %v680 = vsel %vm679, %v672, %v676
      %v681 = vand.u32 2147483647, %v668
      %vm682 = vcmp.eq.f32.partialorder %v681, 8.507059e+37
      %v683 = vand.u32 %v668, 2147483648
      %v684 = vor.u32 1.1754944e-38, %v683
      %v685 = vsel %vm682, %v684, %v680
      %v686 = vmul.f32 %v663, %v685
      %v687 = vrcp.pop %v671
      %v688 = vmul.f32 %v671, %v687
      %v689 = vsub.f32 1.0, %v688
      %v690 = vmul.f32 %v687, %v689
      %v691 = vadd.f32 %v687, %v690
      %vm692 = vweird.f32 %v671
      %vm693 = vweird.f32 %v687
      %vm694 = vmor %vm692, %vm693
      %v695 = vsel %vm694, %v687, %v691
      %v696 = vand.u32 2147483647, %v671
      %vm697 = vcmp.eq.f32.partialorder %v696, 8.507059e+37
      %v698 = vand.u32 %v671, 2147483648
      %v699 = vor.u32 1.1754944e-38, %v698
      %v700 = vsel %vm697, %v699, %v695
      %v701 = vmul.f32 %v665, %v700
      %v702 = vpack.c.bf16 %v701, %v686
      %v704 = vsel %vm653, %v702, 0
      %vm706 = vcmask 1046528
      %vm707 = vcmask 1047552
      %v708 = vsel %vm706, 4294967295, 65535
      %v709 = vsel %vm707, %v708, 0
      %v710 = vand.u32 %v605, %v709
      %712 = vmatpush.bf16.msra.mxu0 0
      %713 = vmatpush.bf16.msra.mxu0 0
      %714 = vmatpush.bf16.msra.mxu0 0
      %715 = vmatpush.bf16.msra.mxu0 0
      %716 = vmatpush.bf16.msra.mxu0 0
      %717 = vmatpush.bf16.msra.mxu0 0
      %718 = vmatpush.bf16.msra.mxu0 0
      %719 = vmatpush.bf16.msra.mxu0 %v710
      %720 = vmatmul.bf16.gmra.mxu0 %v704
      %v721 = vpop.f32.mrf.mxu0
      %v722 = vadd.f32 0.0, %v721
      %v723 = vpop.f32.mrf.mxu0
      %v724 = vadd.f32 0.0, %v723
      %725 = vdwg.mxu0
      %v726 = vld [vmem:[%s6] sm:$0xff]
      %v727 = vld [vmem:[%s6 + $0x8] sm:$0xff]
      %v728 = vld [vmem:[%s6 + $0x10] sm:$0xff]
      %v729 = vld [vmem:[%s6 + $0x18] sm:$0xff]
      %v730 = vpack.c.bf16 %v727, %v726
      %v731 = vpack.c.bf16 %v729, %v728
      %v732 = vld [vmem:[%s7] sm:$0xff]
      %v733 = vld [vmem:[%s7 + $0x8] sm:$0xff]
      %v734 = vld [vmem:[%s7 + $0x10] sm:$0xff]
      %v735 = vld [vmem:[%s7 + $0x18] sm:$0xff]
      %v736 = vpack.c.bf16 %v724, %v722
      %v737 = vpack.c.bf16 %v733, %v732
      %v738 = vpack.c.bf16 %v735, %v734
      %v740 = vsel %vm581, %v736, 0
      %742 = vmatpush.bf16.msra.mxu0 0
      %743 = vmatpush.bf16.msra.mxu0 0
      %744 = vmatpush.bf16.msra.mxu0 0
      %745 = vmatpush.bf16.msra.mxu0 0
      %746 = vmatpush.bf16.msra.mxu0 0
      %747 = vmatpush.bf16.msra.mxu0 0
      %748 = vmatpush.bf16.msra.mxu0 %v738
      %749 = vmatpush.bf16.msra.mxu0 %v737
      %750 = vmatmul.bf16.gmra.mxu0 %v740
      %v751 = vpop.f32.mrf.mxu0
      %v752 = vadd.f32 0.0, %v751
      %v753 = vpop.f32.mrf.mxu0
      %v754 = vadd.f32 0.0, %v753
      %755 = vdwg.mxu0
      %756 = vmatpush.bf16.msra.mxu0 0
      %757 = vmatpush.bf16.msra.mxu0 0
      %758 = vmatpush.bf16.msra.mxu0 0
      %759 = vmatpush.bf16.msra.mxu0 0
      %760 = vmatpush.bf16.msra.mxu0 0
      %761 = vmatpush.bf16.msra.mxu0 0
      %762 = vmatpush.bf16.msra.mxu0 %v731
      %763 = vmatpush.bf16.msra.mxu0 %v730
      %764 = vmatmul.bf16.gmra.mxu0 %v583
      %v765 = vpop.f32.mrf.mxu0
      %v766 = vadd.f32 %v752, %v765
      %v767 = vpop.f32.mrf.mxu0
      %v768 = vadd.f32 %v754, %v767
      %769 = vdwg.mxu0
      %v770 = vld [vmem:[%s8] sm:$0x1]
      %v772 = vperm.slane %v770, 0
      %v774 = vadd.f32 %v766, %v772
      %v775 = vadd.f32 %v768, %v772
      %v776 = vxor.u32 %v774, 2147483648
      %v777 = vxor.u32 %v775, 2147483648
      %v778 = vmul.f32 %v776, 1.442695
      %v779 = vpow.pop %v778
      %v780 = vmul.f32 %v777, 1.442695
      %v781 = vpow.pop %v780
      %v782 = vadd.f32 %v779, 1.0
      %v783 = vadd.f32 %v781, 1.0
      %v784 = vrcp.pop %v782
      %v785 = vmul.f32 %v782, %v784
      %v786 = vsub.f32 1.0, %v785
      %v787 = vmul.f32 %v784, %v786
      %v788 = vadd.f32 %v784, %v787
      %vm789 = vweird.f32 %v782
      %vm790 = vweird.f32 %v784
      %vm791 = vmor %vm789, %vm790
      %v792 = vsel %vm791, %v784, %v788
      %v793 = vand.u32 2147483647, %v782
      %vm794 = vcmp.eq.f32.partialorder %v793, 8.507059e+37
      %v795 = vand.u32 %v782, 2147483648
      %v796 = vor.u32 1.1754944e-38, %v795
      %v797 = vsel %vm794, %v796, %v792
      %v798 = vmul.f32 1.0, %v797
      %v799 = vrcp.pop %v783
      %v800 = vmul.f32 %v783, %v799
      %v801 = vsub.f32 1.0, %v800
      %v802 = vmul.f32 %v799, %v801
      %v803 = vadd.f32 %v799, %v802
      %vm804 = vweird.f32 %v783
      %vm805 = vweird.f32 %v799
      %vm806 = vmor %vm804, %vm805
      %v807 = vsel %vm806, %v799, %v803
      %v808 = vand.u32 2147483647, %v783
      %vm809 = vcmp.eq.f32.partialorder %v808, 8.507059e+37
      %v810 = vand.u32 %v783, 2147483648
      %v811 = vor.u32 1.1754944e-38, %v810
      %v812 = vsel %vm809, %v811, %v807
      %v813 = vmul.f32 1.0, %v812
      %v814 = vld [vmem:[%s9] sm:$0xff]
      %v815 = vld [vmem:[%s9 + $0x8] sm:$0xff]
      %v816 = vld [vmem:[%s9 + $0x10] sm:$0xff]
      %v817 = vld [vmem:[%s9 + $0x18] sm:$0xff]
      %v818 = vpack.c.bf16 %v815, %v814
      %v819 = vpack.c.bf16 %v817, %v816
      %v820 = vld [vmem:[%s10] sm:$0xff]
      %v821 = vld [vmem:[%s10 + $0x8] sm:$0xff]
      %v822 = vld [vmem:[%s10 + $0x10] sm:$0xff]
      %v823 = vld [vmem:[%s10 + $0x18] sm:$0xff]
      %v824 = vpack.c.bf16 %v821, %v820
      %v825 = vpack.c.bf16 %v823, %v822
      %826 = vmatpush.bf16.msra.mxu0 0
      %827 = vmatpush.bf16.msra.mxu0 0
      %828 = vmatpush.bf16.msra.mxu0 0
      %829 = vmatpush.bf16.msra.mxu0 0
      %830 = vmatpush.bf16.msra.mxu0 0
      %831 = vmatpush.bf16.msra.mxu0 0
      %832 = vmatpush.bf16.msra.mxu0 %v825
      %833 = vmatpush.bf16.msra.mxu0 %v824
      %834 = vmatmul.bf16.gmra.mxu0 %v740
      %v835 = vpop.f32.mrf.mxu0
      %v836 = vadd.f32 0.0, %v835
      %v837 = vpop.f32.mrf.mxu0
      %v838 = vadd.f32 0.0, %v837
      %839 = vdwg.mxu0
      %840 = vmatpush.bf16.msra.mxu0 0
      %841 = vmatpush.bf16.msra.mxu0 0
      %842 = vmatpush.bf16.msra.mxu0 0
      %843 = vmatpush.bf16.msra.mxu0 0
      %844 = vmatpush.bf16.msra.mxu0 0
      %845 = vmatpush.bf16.msra.mxu0 0
      %846 = vmatpush.bf16.msra.mxu0 %v819
      %847 = vmatpush.bf16.msra.mxu0 %v818
      %848 = vmatmul.bf16.gmra.mxu0 %v583
      %v849 = vpop.f32.mrf.mxu0
      %v850 = vadd.f32 %v836, %v849
      %v851 = vpop.f32.mrf.mxu0
      %v852 = vadd.f32 %v838, %v851
      %853 = vdwg.mxu0
      %v854 = vld [vmem:[%s11] sm:$0x1]
      %v856 = vperm.slane %v854, 0
      %v858 = vadd.f32 %v850, %v856
      %v859 = vadd.f32 %v852, %v856
      %v860 = vtanh.pop %v858
      %v861 = vtanh.pop %v859
      %v862 = vld [vmem:[%s12] sm:$0xff]
      %v863 = vpack.c.bf16 %v813, %v798
      %v864 = vpack.c.bf16 %v862, %v862
      %v865 = vld [vmem:[%s13] sm:$0xff]
      %v866 = vpack.c.bf16 %v861, %v860
      %v867 = vpack.c.bf16 %v865, %v865
      %vm868 = vcmask 130048
      %v870 = vsel %vm868, %v866, 0
      %v873 = vsel %vm868, %v867, 0
      %875 = vmatpush.bf16.xpose.msra.mxu0 0
      %876 = vmatpush.bf16.xpose.msra.mxu0 0
      %877 = vmatpush.bf16.xpose.msra.mxu0 0
      %878 = vmatpush.bf16.xpose.msra.mxu0 0
      %879 = vmatpush.bf16.xpose.msra.mxu0 0
      %880 = vmatpush.bf16.xpose.msra.mxu0 0
      %881 = vmatpush.bf16.xpose.msra.mxu0 0
      %882 = vmatpush.bf16.xpose.msra.mxu0 %v873
      %883 = vmatmul.bf16.gmra.mxu0 %v870
      %v884 = vpop.f32.mrf.mxu0
      %v885 = vadd.f32 0.0, %v884
      %v886 = vpop.f32.mrf.mxu0
      %v887 = vadd.f32 0.0, %v886
      %888 = vdwg.mxu0
      %v890 = vsel %vm868, %v863, 0
      %v893 = vsel %vm868, %v864, 0
      %895 = vmatpush.bf16.xpose.msra.mxu0 0
      %896 = vmatpush.bf16.xpose.msra.mxu0 0
      %897 = vmatpush.bf16.xpose.msra.mxu0 0
      %898 = vmatpush.bf16.xpose.msra.mxu0 0
      %899 = vmatpush.bf16.xpose.msra.mxu0 0
      %900 = vmatpush.bf16.xpose.msra.mxu0 0
      %901 = vmatpush.bf16.xpose.msra.mxu0 0
      %902 = vmatpush.bf16.xpose.msra.mxu0 %v893
      %903 = vmatmul.bf16.gmra.mxu0 %v890
      %v904 = vpop.f32.mrf.mxu0
      %v905 = vadd.f32 %v885, %v904
      %v906 = vpop.f32.mrf.mxu0
      %v907 = vadd.f32 %v887, %v906
      %908 = vdwg.mxu0
      %vm909 = vcmask 64512
      %v910 = vsel %vm909, %v905, -inf
      %v911 = vsel %vm909, %v907, -inf
      %v912 = vmax.f32 %v910, %v911
      %v913 = vrot.slane %v912, 4
      %v914 = vmax.f32 %v912, %v913
      %v915 = vrot.slane %v914, 2
      %v916 = vmax.f32 %v914, %v915
      %v917 = vrot.slane %v916, 1
      %v918 = vmax.f32 %v916, %v917
      %v919 = vsub.f32 %v905, %v918
      %v920 = vsub.f32 %v907, %v918
      %v921 = vmul.f32 %v919, 1.442695
      %v922 = vpow.pop %v921
      %v923 = vmul.f32 %v920, 1.442695
      %v924 = vpow.pop %v923
      %v925 = vsel %vm909, %v922, 0.0
      %v926 = vsel %vm909, %v924, 0.0
      %v927 = vadd.f32 %v925, %v926
      %v928 = vrot.slane %v927, 4
      %v929 = vadd.f32 %v927, %v928
      %v930 = vrot.slane %v929, 2
      %v931 = vadd.f32 %v929, %v930
      %v932 = vrot.slane %v931, 1
      %v933 = vadd.f32 %v931, %v932
      %v934 = vrcp.pop %v933
      %v935 = vmul.f32 %v933, %v934
      %v936 = vsub.f32 1.0, %v935
      %v937 = vmul.f32 %v934, %v936
      %v938 = vadd.f32 %v934, %v937
      %vm939 = vweird.f32 %v933
      %vm940 = vweird.f32 %v934
      %vm941 = vmor %vm939, %vm940
      %v942 = vsel %vm941, %v934, %v938
      %v943 = vand.u32 2147483647, %v933
      %vm944 = vcmp.eq.f32.partialorder %v943, 8.507059e+37
      %v945 = vand.u32 %v933, 2147483648
      %v946 = vor.u32 1.1754944e-38, %v945
      %v947 = vsel %vm944, %v946, %v942
      %v948 = vmul.f32 %v922, %v947
      %v949 = vmul.f32 %v924, %v947
      %v950 = vld [vmem:[%s14] sm:$0xff]
      %v951 = vpack.c.bf16 %v950, %v950
      %v952 = vld [vmem:[%s15] sm:$0xff]
      %v953 = vpack.c.bf16 %v952, %v952
      %v955 = vsel %vm868, %v953, 0
      %957 = vmatpush.bf16.xpose.msra.mxu0 0
      %958 = vmatpush.bf16.xpose.msra.mxu0 0
      %959 = vmatpush.bf16.xpose.msra.mxu0 0
      %960 = vmatpush.bf16.xpose.msra.mxu0 0
      %961 = vmatpush.bf16.xpose.msra.mxu0 0
      %962 = vmatpush.bf16.xpose.msra.mxu0 0
      %963 = vmatpush.bf16.xpose.msra.mxu0 0
      %964 = vmatpush.bf16.xpose.msra.mxu0 %v955
      %965 = vmatmul.bf16.gmra.mxu0 %v870
      %v966 = vpop.f32.mrf.mxu0
      %v967 = vadd.f32 0.0, %v966
      %v968 = vpop.f32.mrf.mxu0
      %v969 = vadd.f32 0.0, %v968
      %970 = vdwg.mxu0
      %v972 = vsel %vm868, %v951, 0
      %974 = vmatpush.bf16.xpose.msra.mxu0 0
      %975 = vmatpush.bf16.xpose.msra.mxu0 0
      %976 = vmatpush.bf16.xpose.msra.mxu0 0
      %977 = vmatpush.bf16.xpose.msra.mxu0 0
      %978 = vmatpush.bf16.xpose.msra.mxu0 0
      %979 = vmatpush.bf16.xpose.msra.mxu0 0
      %980 = vmatpush.bf16.xpose.msra.mxu0 0
      %981 = vmatpush.bf16.xpose.msra.mxu0 %v972
      %982 = vmatmul.bf16.gmra.mxu0 %v890
      %v983 = vpop.f32.mrf.mxu0
      %v984 = vadd.f32 %v967, %v983
      %v985 = vpop.f32.mrf.mxu0
      %v986 = vadd.f32 %v969, %v985
      %987 = vdwg.mxu0
      %v988 = vmul.f32 %v948, %v984
      %v989 = vmul.f32 %v949, %v986
      %v990 = vsel %vm909, %v988, 0.0
      %v991 = vsel %vm909, %v989, 0.0
      %v992 = vadd.f32 %v990, %v991
      %v993 = vrot.slane %v992, 4
      %v994 = vadd.f32 %v992, %v993
      %v995 = vrot.slane %v994, 2
      %v996 = vadd.f32 %v994, %v995
      %v997 = vrot.slane %v996, 1
      %v998 = vadd.f32 %v996, %v997
      %v999 = vld [vmem:[%s16] sm:$0x1]
      %v1000 = vadd.f32 %v998, %v999
      %vm1001 = vcmask 57344
      %1002 = vst.msk [vmem:[%s564] sm:$0x1] %vm1001, %v1000
      %p1003 = scmp.lt.s32.totalorder %s28, 1
      %s1004 = scalar_select %p1003, %s28, 1
      %s1005 = scalar_lea.vmem %s17, %s1004
      // Predicated region
      $region89: #{rnn_model_clause_forward.5} parent=87 // pred_check
        %p1006 = pneg %p413
      $region90: #{rnn_model_clause_forward.5} parent=87 // pred_check_branch
        %1008 = sbr.rel (%p1006) target = $region92
      $region91: #{rnn_model_clause_forward.5} parent=87 // pred_region
        _
      $region92: #{rnn_model_clause_forward.5} parent=87 // pred_fallthru
        _
    $region88: #{rnn_model_clause_forward.5} parent=5 // pred_fallthru
      _
    %p1009 = scmp.le.s32.totalorder 2, %s23
    // Predicated region
    $region93: #{rnn_model_clause_forward.5} parent=5 // pred_check
      %p1010 = pneg %p1009
    $region94: #{rnn_model_clause_forward.5} parent=5 // pred_check_branch
      %1012 = sbr.rel (%p1010) target = $region96
    $region95: #{rnn_model_clause_forward.5} parent=5 // pred_region
      %s1013 = ssub.s32 %s23, 2
      // Predicated region
      $region97: #{rnn_model_clause_forward.5} parent=95 // pred_check
        %p1014 = pneg %p419
      $region98: #{rnn_model_clause_forward.5} parent=95 // pred_check_branch
        %1016 = sbr.rel (%p1014) target = $region100
      $region99: #{rnn_model_clause_forward.5} parent=95 // pred_region
        %p1017 = scmp.lt.s32.totalorder %s29, 1
        %s1018 = scalar_select %p1017, %s29, 1
        %s1019 = scalar_lea.vmem %s17, %s1018
      $region100: #{rnn_model_clause_forward.5} parent=95 // pred_fallthru
        _
    $region96: #{rnn_model_clause_forward.5} parent=5 // pred_fallthru
      _
  $region6: #{rnn_model_clause_forward.5} parent=0 // loop_footer
    %s27 = sadd.s32 1, %s23
  $region7: #{rnn_model_clause_forward.5} parent=0 // loop_footer_branch
    %22 = sbr.rel target = $region3
  $region8: #{rnn_model_clause_forward.5} parent=0 // loop_exit
    _

// kernel: rnn_model_clause_forward.3
$region0: #{rnn_model_clause_forward.3}
  #allocation0 [shape = 'u32[]', space=smem, size = 0x4, offset = 0x4, fixed_abs, tag = 'smem constant byte address 0x4 - core index']
  #allocation1 [shape = 'u32[72,128]{1,0:T(1,128)}', space=vmem, size = 0x9000, scoped, tag = 'internal scratch']
  %s0 = inlined_call_operand.vmem [shape: f32[16,2,96], index: 0, kind: input, shape index: {}]
  %s1 = inlined_call_operand.vmem [shape: f32[32,96], index: 1, kind: input, shape index: {}]
  %s2 = inlined_call_operand.vmem [shape: f32[1,96], index: 2, kind: input, shape index: {}]
  %s3 = inlined_call_operand.vmem [shape: f32[16,2,32], index: 3, kind: output, shape index: {}]
  %s4 = sld [smem:[#allocation0]]
  $region22: #{rnn_model_clause_forward.3} parent=0
    _
  %s6 = ssub.s32 1, %s4
  %s7 = scalar_select 0, %s6, %s4
  // Predicated region
  $region2: #{rnn_model_clause_forward.3} parent=0 // pred_check
    _
  $region3: #{rnn_model_clause_forward.3} parent=0 // pred_check_branch
    %9 = sbr.rel (0) target = $region5
  $region4: #{rnn_model_clause_forward.3} parent=0 // pred_region
    _
  $region5: #{rnn_model_clause_forward.3} parent=0 // pred_fallthru
    _
  // Predicated region
  $region6: #{rnn_model_clause_forward.3} parent=0 // pred_check
    _
  $region7: #{rnn_model_clause_forward.3} parent=0 // pred_check_branch
    %11 = sbr.rel (0) target = $region9
  $region8: #{rnn_model_clause_forward.3} parent=0 // pred_region
    _
  $region9: #{rnn_model_clause_forward.3} parent=0 // pred_fallthru
    _
  // Predicated region
  $region10: #{rnn_model_clause_forward.3} parent=0 // pred_check
    _
  $region11: #{rnn_model_clause_forward.3} parent=0 // pred_check_branch
    %13 = sbr.rel (0) target = $region13
  $region12: #{rnn_model_clause_forward.3} parent=0 // pred_region
    _
  $region13: #{rnn_model_clause_forward.3} parent=0 // pred_fallthru
    _
  %v15 = vld [vmem:[%s1] sm:$0xff]
  %v16 = vld [vmem:[%s1 + $0x8] sm:$0xff]
  %v17 = vld [vmem:[%s1 + $0x10] sm:$0xff]
  %v18 = vld [vmem:[%s1 + $0x18] sm:$0xff]
  %v19 = vpack.c.bf16 %v16, %v15
  %v20 = vpack.c.bf16 %v18, %v17
  %v21 = vld [vmem:[%s2] sm:$0x1]
  %v22 = vld [vmem:[%s0] sm:$0x3]
  %v24 = vperm.slane %v21, 0
  %vm26 = vcmask 261120
  %v28 = vsel %vm26, 0, 0
  %30 = vmatpush.bf16.msra.mxu0 0
  %31 = vmatpush.bf16.msra.mxu0 0
  %32 = vmatpush.bf16.msra.mxu0 0
  %33 = vmatpush.bf16.msra.mxu0 0
  %34 = vmatpush.bf16.msra.mxu0 0
  %35 = vmatpush.bf16.msra.mxu0 0
  %36 = vmatpush.bf16.msra.mxu0 %v20
  %37 = vmatpush.bf16.msra.mxu0 %v19
  %38 = vmatmul.bf16.gmra.mxu0 %v28
  %v39 = vpop.f32.mrf.mxu0
  %v40 = vadd.f32 %v24, %v39
  %v41 = vpop.f32.mrf.mxu0
  %42 = vdwg.mxu0
  %v43 = vadd.f32 %v22, %v40
  %v44 = vxor.u32 %v43, 2147483648
  %v45 = vmul.f32 %v44, 1.442695
  %v46 = vpow.pop %v45
  %v47 = vadd.f32 %v46, 1.0
  %v48 = vrcp.pop %v47
  %v49 = vmul.f32 %v47, %v48
  %v50 = vsub.f32 1.0, %v49
  %v51 = vmul.f32 %v48, %v50
  %v52 = vadd.f32 %v48, %v51
  %vm53 = vweird.f32 %v47
  %vm54 = vweird.f32 %v48
  %vm55 = vmor %vm53, %vm54
  %v56 = vsel %vm55, %v48, %v52
  %v57 = vand.u32 2147483647, %v47
  %vm58 = vcmp.eq.f32.partialorder %v57, 8.507059e+37
  %v59 = vand.u32 %v47, 2147483648
  %v60 = vor.u32 1.1754944e-38, %v59
  %v61 = vsel %vm58, %v60, %v56
  %v62 = vmul.f32 1.0, %v61
  %64 = vrot.lane.b32.xlu0 %v40, 64
  %v65 = vpop.permute.xlu0 %64
  %v67 = vmul.f32 %v62, %v65
  %69 = vrot.lane.b32.xlu0 %v67, 64
  %v70 = vpop.permute.xlu0 %69
  %v72 = vadd.f32 %v22, %v70
  %v73 = vtanh.pop %v72
  %v74 = vsub.f32 1.0, %v62
  %76 = vrot.lane.b32.xlu0 %v73, 96
  %v77 = vpop.permute.xlu0 %76
  %v79 = vmul.f32 %v74, %v77
  %v80 = vmul.f32 %v62, 0.0
  %v81 = vadd.f32 %v79, %v80
  %83 = vrot.lane.b32.xlu0 %v81, 96
  %v84 = vpop.permute.xlu0 %83
  %vm86 = vcmask 254976
  %87 = vst.msk [vmem:[%s3] sm:$0x3] %vm86, %v84
  %s88 = scalar_lea.vmem %s0, 2
  %v89 = vld [vmem:[%s88] sm:$0x3]
  %v90 = vpack.c.bf16 %v81, %v81
  %92 = vrot.lane.b32.xlu0 %v90, 96
  %v93 = vpop.permute.xlu0 %92
  %v95 = vsel %vm26, %v93, 0
  %97 = vmatpush.bf16.msra.mxu0 0
  %98 = vmatpush.bf16.msra.mxu0 0
  %99 = vmatpush.bf16.msra.mxu0 0
  %100 = vmatpush.bf16.msra.mxu0 0
  %101 = vmatpush.bf16.msra.mxu0 0
  %102 = vmatpush.bf16.msra.mxu0 0
  %103 = vmatpush.bf16.msra.mxu0 %v20
  %104 = vmatpush.bf16.msra.mxu0 %v19
  %105 = vmatmul.bf16.gmra.mxu0 %v95
  %v106 = vpop.f32.mrf.mxu0
  %v107 = vadd.f32 %v24, %v106
  %v108 = vpop.f32.mrf.mxu0
  %109 = vdwg.mxu0
  %v110 = vadd.f32 %v89, %v107
  %v111 = vxor.u32 %v110, 2147483648
  %v112 = vmul.f32 %v111, 1.442695
  %v113 = vpow.pop %v112
  %v114 = vadd.f32 %v113, 1.0
  %v115 = vrcp.pop %v114
  %v116 = vmul.f32 %v114, %v115
  %v117 = vsub.f32 1.0, %v116
  %v118 = vmul.f32 %v115, %v117
  %v119 = vadd.f32 %v115, %v118
  %vm120 = vweird.f32 %v114
  %vm121 = vweird.f32 %v115
  %vm122 = vmor %vm120, %vm121
  %v123 = vsel %vm122, %v115, %v119
  %v124 = vand.u32 2147483647, %v114
  %vm125 = vcmp.eq.f32.partialorder %v124, 8.507059e+37
  %v126 = vand.u32 %v114, 2147483648
  %v127 = vor.u32 1.1754944e-38, %v126
  %v128 = vsel %vm125, %v127, %v123
  %v129 = vmul.f32 1.0, %v128
  %131 = vrot.lane.b32.xlu0 %v107, 64
  %v132 = vpop.permute.xlu0 %131
  %v134 = vmul.f32 %v129, %v132
  %136 = vrot.lane.b32.xlu0 %v134, 64
  %v137 = vpop.permute.xlu0 %136
  %v139 = vadd.f32 %v89, %v137
  %v140 = vtanh.pop %v139
  %v141 = vsub.f32 1.0, %v129
  %143 = vrot.lane.b32.xlu0 %v140, 96
  %v144 = vpop.permute.xlu0 %143
  %v146 = vmul.f32 %v141, %v144
  %v147 = vmul.f32 %v129, %v81
  %v148 = vadd.f32 %v146, %v147
  %150 = vrot.lane.b32.xlu0 %v148, 96
  %v151 = vpop.permute.xlu0 %150
  %s153 = scalar_lea.vmem %s3, 2
  %154 = vst.msk [vmem:[%s153] sm:$0x3] %vm86, %v151
  %s155 = scalar_lea.vmem %s0, 4
  %v156 = vld [vmem:[%s155] sm:$0x3]
  %v157 = vpack.c.bf16 %v148, %v148
  %159 = vrot.lane.b32.xlu0 %v157, 96
  %v160 = vpop.permute.xlu0 %159
  %v162 = vsel %vm26, %v160, 0
  %164 = vmatpush.bf16.msra.mxu0 0
  %165 = vmatpush.bf16.msra.mxu0 0
  %166 = vmatpush.bf16.msra.mxu0 0
  %167 = vmatpush.bf16.msra.mxu0 0
  %168 = vmatpush.bf16.msra.mxu0 0
  %169 = vmatpush.bf16.msra.mxu0 0
  %170 = vmatpush.bf16.msra.mxu0 %v20
  %171 = vmatpush.bf16.msra.mxu0 %v19
  %172 = vmatmul.bf16.gmra.mxu0 %v162
  %v173 = vpop.f32.mrf.mxu0
  %v174 = vadd.f32 %v24, %v173
  %v175 = vpop.f32.mrf.mxu0
  %176 = vdwg.mxu0
  %v177 = vadd.f32 %v156, %v174
  %v178 = vxor.u32 %v177, 2147483648
  %v179 = vmul.f32 %v178, 1.442695
  %v180 = vpow.pop %v179
  %v181 = vadd.f32 %v180, 1.0
  %v182 = vrcp.pop %v181
  %v183 = vmul.f32 %v181, %v182
  %v184 = vsub.f32 1.0, %v183
  %v185 = vmul.f32 %v182, %v184
  %v186 = vadd.f32 %v182, %v185
  %vm187 = vweird.f32 %v181
  %vm188 = vweird.f32 %v182
  %vm189 = vmor %vm187, %vm188
  %v190 = vsel %vm189, %v182, %v186
  %v191 = vand.u32 2147483647, %v181
  %vm192 = vcmp.eq.f32.partialorder %v191, 8.507059e+37
  %v193 = vand.u32 %v181, 2147483648
  %v194 = vor.u32 1.1754944e-38, %v193
  %v195 = vsel %vm192, %v194, %v190
  %v196 = vmul.f32 1.0, %v195
  %198 = vrot.lane.b32.xlu0 %v174, 64
  %v199 = vpop.permute.xlu0 %198
  %v201 = vmul.f32 %v196, %v199
  %203 = vrot.lane.b32.xlu0 %v201, 64
  %v204 = vpop.permute.xlu0 %203
  %v206 = vadd.f32 %v156, %v204
  %v207 = vtanh.pop %v206
  %v208 = vsub.f32 1.0, %v196
  %210 = vrot.lane.b32.xlu0 %v207, 96
  %v211 = vpop.permute.xlu0 %210
  %v213 = vmul.f32 %v208, %v211
  %v214 = vmul.f32 %v196, %v148
  %v215 = vadd.f32 %v213, %v214
  %217 = vrot.lane.b32.xlu0 %v215, 96
  %v218 = vpop.permute.xlu0 %217
  %s220 = scalar_lea.vmem %s3, 4
  %221 = vst.msk [vmem:[%s220] sm:$0x3] %vm86, %v218
  %s222 = scalar_lea.vmem %s0, 6
  %v223 = vld [vmem:[%s222] sm:$0x3]
  %v224 = vpack.c.bf16 %v215, %v215
  %226 = vrot.lane.b32.xlu0 %v224, 96
  %v227 = vpop.permute.xlu0 %226
  %v229 = vsel %vm26, %v227, 0
  %231 = vmatpush.bf16.msra.mxu0 0
  %232 = vmatpush.bf16.msra.mxu0 0
  %233 = vmatpush.bf16.msra.mxu0 0
  %234 = vmatpush.bf16.msra.mxu0 0
  %235 = vmatpush.bf16.msra.mxu0 0
  %236 = vmatpush.bf16.msra.mxu0 0
  %237 = vmatpush.bf16.msra.mxu0 %v20
  %238 = vmatpush.bf16.msra.mxu0 %v19
  %239 = vmatmul.bf16.gmra.mxu0 %v229
  %v240 = vpop.f32.mrf.mxu0
  %v241 = vadd.f32 %v24, %v240
  %v242 = vpop.f32.mrf.mxu0
  %243 = vdwg.mxu0
  %v244 = vadd.f32 %v223, %v241
  %v245 = vxor.u32 %v244, 2147483648
  %v246 = vmul.f32 %v245, 1.442695
  %v247 = vpow.pop %v246
  %v248 = vadd.f32 %v247, 1.0
  %v249 = vrcp.pop %v248
  %v250 = vmul.f32 %v248, %v249
  %v251 = vsub.f32 1.0, %v250
  %v252 = vmul.f32 %v249, %v251
  %v253 = vadd.f32 %v249, %v252
  %vm254 = vweird.f32 %v248
  %vm255 = vweird.f32 %v249
  %vm256 = vmor %vm254, %vm255
  %v257 = vsel %vm256, %v249, %v253
  %v258 = vand.u32 2147483647, %v248
  %vm259 = vcmp.eq.f32.partialorder %v258, 8.507059e+37
  %v260 = vand.u32 %v248, 2147483648
  %v261 = vor.u32 1.1754944e-38, %v260
  %v262 = vsel %vm259, %v261, %v257
  %v263 = vmul.f32 1.0, %v262
  %265 = vrot.lane.b32.xlu0 %v241, 64
  %v266 = vpop.permute.xlu0 %265
  %v268 = vmul.f32 %v263, %v266
  %270 = vrot.lane.b32.xlu0 %v268, 64
  %v271 = vpop.permute.xlu0 %270
  %v273 = vadd.f32 %v223, %v271
  %v274 = vtanh.pop %v273
  %v275 = vsub.f32 1.0, %v263
  %277 = vrot.lane.b32.xlu0 %v274, 96
  %v278 = vpop.permute.xlu0 %277
  %v280 = vmul.f32 %v275, %v278
  %v281 = vmul.f32 %v263, %v215
  %v282 = vadd.f32 %v280, %v281
  %284 = vrot.lane.b32.xlu0 %v282, 96
  %v285 = vpop.permute.xlu0 %284
  %s287 = scalar_lea.vmem %s3, 6
  %288 = vst.msk [vmem:[%s287] sm:$0x3] %vm86, %v285
  %s289 = scalar_lea.vmem %s0, 8
  %v290 = vld [vmem:[%s289] sm:$0x3]
  %v291 = vpack.c.bf16 %v282, %v282
  %293 = vrot.lane.b32.xlu0 %v291, 96
  %v294 = vpop.permute.xlu0 %293
  %v296 = vsel %vm26, %v294, 0
  %298 = vmatpush.bf16.msra.mxu0 0
  %299 = vmatpush.bf16.msra.mxu0 0
  %300 = vmatpush.bf16.msra.mxu0 0
  %301 = vmatpush.bf16.msra.mxu0 0
  %302 = vmatpush.bf16.msra.mxu0 0
  %303 = vmatpush.bf16.msra.mxu0 0
  %304 = vmatpush.bf16.msra.mxu0 %v20
  %305 = vmatpush.bf16.msra.mxu0 %v19
  %306 = vmatmul.bf16.gmra.mxu0 %v296
  %v307 = vpop.f32.mrf.mxu0
  %v308 = vadd.f32 %v24, %v307
  %v309 = vpop.f32.mrf.mxu0
  %310 = vdwg.mxu0
  %v311 = vadd.f32 %v290, %v308
  %v312 = vxor.u32 %v311, 2147483648
  %v313 = vmul.f32 %v312, 1.442695
  %v314 = vpow.pop %v313
  %v315 = vadd.f32 %v314, 1.0
  %v316 = vrcp.pop %v315
  %v317 = vmul.f32 %v315, %v316
  %v318 = vsub.f32 1.0, %v317
  %v319 = vmul.f32 %v316, %v318
  %v320 = vadd.f32 %v316, %v319
  %vm321 = vweird.f32 %v315
  %vm322 = vweird.f32 %v316
  %vm323 = vmor %vm321, %vm322
  %v324 = vsel %vm323, %v316, %v320
  %v325 = vand.u32 2147483647, %v315
  %vm326 = vcmp.eq.f32.partialorder %v325, 8.507059e+37
  %v327 = vand.u32 %v315, 2147483648
  %v328 = vor.u32 1.1754944e-38, %v327
  %v329 = vsel %vm326, %v328, %v324
  %v330 = vmul.f32 1.0, %v329
  %332 = vrot.lane.b32.xlu0 %v308, 64
  %v333 = vpop.permute.xlu0 %332
  %v335 = vmul.f32 %v330, %v333
  %337 = vrot.lane.b32.xlu0 %v335, 64
  %v338 = vpop.permute.xlu0 %337
  %v340 = vadd.f32 %v290, %v338
  %v341 = vtanh.pop %v340
  %v342 = vsub.f32 1.0, %v330
  %344 = vrot.lane.b32.xlu0 %v341, 96
  %v345 = vpop.permute.xlu0 %344
  %v347 = vmul.f32 %v342, %v345
  %v348 = vmul.f32 %v330, %v282
  %v349 = vadd.f32 %v347, %v348
  %351 = vrot.lane.b32.xlu0 %v349, 96
  %v352 = vpop.permute.xlu0 %351
  %s354 = scalar_lea.vmem %s3, 8
  %355 = vst.msk [vmem:[%s354] sm:$0x3] %vm86, %v352
  %s356 = scalar_lea.vmem %s0, 10
  %v357 = vld [vmem:[%s356] sm:$0x3]
  %v358 = vpack.c.bf16 %v349, %v349
  %360 = vrot.lane.b32.xlu0 %v358, 96
  %v361 = vpop.permute.xlu0 %360
  %v363 = vsel %vm26, %v361, 0
  %365 = vmatpush.bf16.msra.mxu0 0
  %366 = vmatpush.bf16.msra.mxu0 0
  %367 = vmatpush.bf16.msra.mxu0 0
  %368 = vmatpush.bf16.msra.mxu0 0
  %369 = vmatpush.bf16.msra.mxu0 0
  %370 = vmatpush.bf16.msra.mxu0 0
  %371 = vmatpush.bf16.msra.mxu0 %v20
  %372 = vmatpush.bf16.msra.mxu0 %v19
  %373 = vmatmul.bf16.gmra.mxu0 %v363
  %v374 = vpop.f32.mrf.mxu0
  %v375 = vadd.f32 %v24, %v374
  %v376 = vpop.f32.mrf.mxu0
  %377 = vdwg.mxu0
  %v378 = vadd.f32 %v357, %v375
  %v379 = vxor.u32 %v378, 2147483648
  %v380 = vmul.f32 %v379, 1.442695
  %v381 = vpow.pop %v380
  %v382 = vadd.f32 %v381, 1.0
  %v383 = vrcp.pop %v382
  %v384 = vmul.f32 %v382, %v383
  %v385 = vsub.f32 1.0, %v384
  %v386 = vmul.f32 %v383, %v385
  %v387 = vadd.f32 %v383, %v386
  %vm388 = vweird.f32 %v382
  %vm389 = vweird.f32 %v383
  %vm390 = vmor %vm388, %vm389
  %v391 = vsel %vm390, %v383, %v387
  %v392 = vand.u32 2147483647, %v382
  %vm393 = vcmp.eq.f32.partialorder %v392, 8.507059e+37
  %v394 = vand.u32 %v382, 2147483648
  %v395 = vor.u32 1.1754944e-38, %v394
  %v396 = vsel %vm393, %v395, %v391
  %v397 = vmul.f32 1.0, %v396
  %399 = vrot.lane.b32.xlu0 %v375, 64
  %v400 = vpop.permute.xlu0 %399
  %v402 = vmul.f32 %v397, %v400
  %404 = vrot.lane.b32.xlu0 %v402, 64
  %v405 = vpop.permute.xlu0 %404
  %v407 = vadd.f32 %v357, %v405
  %v408 = vtanh.pop %v407
  %v409 = vsub.f32 1.0, %v397
  %411 = vrot.lane.b32.xlu0 %v408, 96
  %v412 = vpop.permute.xlu0 %411
  %v414 = vmul.f32 %v409, %v412
  %v415 = vmul.f32 %v397, %v349
  %v416 = vadd.f32 %v414, %v415
  %418 = vrot.lane.b32.xlu0 %v416, 96
  %v419 = vpop.permute.xlu0 %418
  %s421 = scalar_lea.vmem %s3, 10
  %422 = vst.msk [vmem:[%s421] sm:$0x3] %vm86, %v419
  %s423 = scalar_lea.vmem %s0, 12
  %v424 = vld [vmem:[%s423] sm:$0x3]
  %v425 = vpack.c.bf16 %v416, %v416
  %427 = vrot.lane.b32.xlu0 %v425, 96
  %v428 = vpop.permute.xlu0 %427
  %v430 = vsel %vm26, %v428, 0
  %432 = vmatpush.bf16.msra.mxu0 0
  %433 = vmatpush.bf16.msra.mxu0 0
  %434 = vmatpush.bf16.msra.mxu0 0
  %435 = vmatpush.bf16.msra.mxu0 0
  %436 = vmatpush.bf16.msra.mxu0 0
  %437 = vmatpush.bf16.msra.mxu0 0
  %438 = vmatpush.bf16.msra.mxu0 %v20
  %439 = vmatpush.bf16.msra.mxu0 %v19
  %440 = vmatmul.bf16.gmra.mxu0 %v430
  %v441 = vpop.f32.mrf.mxu0
  %v442 = vadd.f32 %v24, %v441
  %v443 = vpop.f32.mrf.mxu0
  %444 = vdwg.mxu0
  %v445 = vadd.f32 %v424, %v442
  %v446 = vxor.u32 %v445, 2147483648
  %v447 = vmul.f32 %v446, 1.442695
  %v448 = vpow.pop %v447
  %v449 = vadd.f32 %v448, 1.0
  %v450 = vrcp.pop %v449
  %v451 = vmul.f32 %v449, %v450
  %v452 = vsub.f32 1.0, %v451
  %v453 = vmul.f32 %v450, %v452
  %v454 = vadd.f32 %v450, %v453
  %vm455 = vweird.f32 %v449
  %vm456 = vweird.f32 %v450
  %vm457 = vmor %vm455, %vm456
  %v458 = vsel %vm457, %v450, %v454
  %v459 = vand.u32 2147483647, %v449
  %vm460 = vcmp.eq.f32.partialorder %v459, 8.507059e+37
  %v461 = vand.u32 %v449, 2147483648
  %v462 = vor.u32 1.1754944e-38, %v461
  %v463 = vsel %vm460, %v462, %v458
  %v464 = vmul.f32 1.0, %v463
  %466 = vrot.lane.b32.xlu0 %v442, 64
  %v467 = vpop.permute.xlu0 %466
  %v469 = vmul.f32 %v464, %v467
  %471 = vrot.lane.b32.xlu0 %v469, 64
  %v472 = vpop.permute.xlu0 %471
  %v474 = vadd.f32 %v424, %v472
  %v475 = vtanh.pop %v474
  %v476 = vsub.f32 1.0, %v464
  %478 = vrot.lane.b32.xlu0 %v475, 96
  %v479 = vpop.permute.xlu0 %478
  %v481 = vmul.f32 %v476, %v479
  %v482 = vmul.f32 %v464, %v416
  %v483 = vadd.f32 %v481, %v482
  %485 = vrot.lane.b32.xlu0 %v483, 96
  %v486 = vpop.permute.xlu0 %485
  %s488 = scalar_lea.vmem %s3, 12
  %489 = vst.msk [vmem:[%s488] sm:$0x3] %vm86, %v486
  %s490 = scalar_lea.vmem %s0, 14
  %v491 = vld [vmem:[%s490] sm:$0x3]
  %v492 = vpack.c.bf16 %v483, %v483
  %494 = vrot.lane.b32.xlu0 %v492, 96
  %v495 = vpop.permute.xlu0 %494
  %v497 = vsel %vm26, %v495, 0
  %499 = vmatpush.bf16.msra.mxu0 0
  %500 = vmatpush.bf16.msra.mxu0 0
  %501 = vmatpush.bf16.msra.mxu0 0
  %502 = vmatpush.bf16.msra.mxu0 0
  %503 = vmatpush.bf16.msra.mxu0 0
  %504 = vmatpush.bf16.msra.mxu0 0
  %505 = vmatpush.bf16.msra.mxu0 %v20
  %506 = vmatpush.bf16.msra.mxu0 %v19
  %507 = vmatmul.bf16.gmra.mxu0 %v497
  %v508 = vpop.f32.mrf.mxu0
  %v509 = vadd.f32 %v24, %v508
  %v510 = vpop.f32.mrf.mxu0
  %511 = vdwg.mxu0
  %v512 = vadd.f32 %v491, %v509
  %v513 = vxor.u32 %v512, 2147483648
  %v514 = vmul.f32 %v513, 1.442695
  %v515 = vpow.pop %v514
  %v516 = vadd.f32 %v515, 1.0
  %v517 = vrcp.pop %v516
  %v518 = vmul.f32 %v516, %v517
  %v519 = vsub.f32 1.0, %v518
  %v520 = vmul.f32 %v517, %v519
  %v521 = vadd.f32 %v517, %v520
  %vm522 = vweird.f32 %v516
  %vm523 = vweird.f32 %v517
  %vm524 = vmor %vm522, %vm523
  %v525 = vsel %vm524, %v517, %v521
  %v526 = vand.u32 2147483647, %v516
  %vm527 = vcmp.eq.f32.partialorder %v526, 8.507059e+37
  %v528 = vand.u32 %v516, 2147483648
  %v529 = vor.u32 1.1754944e-38, %v528
  %v530 = vsel %vm527, %v529, %v525
  %v531 = vmul.f32 1.0, %v530
  %533 = vrot.lane.b32.xlu0 %v509, 64
  %v534 = vpop.permute.xlu0 %533
  %v536 = vmul.f32 %v531, %v534
  %538 = vrot.lane.b32.xlu0 %v536, 64
  %v539 = vpop.permute.xlu0 %538
  %v541 = vadd.f32 %v491, %v539
  %v542 = vtanh.pop %v541
  %v543 = vsub.f32 1.0, %v531
  %545 = vrot.lane.b32.xlu0 %v542, 96
  %v546 = vpop.permute.xlu0 %545
  %v548 = vmul.f32 %v543, %v546
  %v549 = vmul.f32 %v531, %v483
  %v550 = vadd.f32 %v548, %v549
  %552 = vrot.lane.b32.xlu0 %v550, 96
  %v553 = vpop.permute.xlu0 %552
  %s555 = scalar_lea.vmem %s3, 14
  %556 = vst.msk [vmem:[%s555] sm:$0x3] %vm86, %v553
  %s557 = scalar_lea.vmem %s0, 16
  %v558 = vld [vmem:[%s557] sm:$0x3]
  %v559 = vpack.c.bf16 %v550, %v550
  %561 = vrot.lane.b32.xlu0 %v559, 96
  %v562 = vpop.permute.xlu0 %561
  %v564 = vsel %vm26, %v562, 0
  %566 = vmatpush.bf16.msra.mxu0 0
  %567 = vmatpush.bf16.msra.mxu0 0
  %568 = vmatpush.bf16.msra.mxu0 0
  %569 = vmatpush.bf16.msra.mxu0 0
  %570 = vmatpush.bf16.msra.mxu0 0
  %571 = vmatpush.bf16.msra.mxu0 0
  %572 = vmatpush.bf16.msra.mxu0 %v20
  %573 = vmatpush.bf16.msra.mxu0 %v19
  %574 = vmatmul.bf16.gmra.mxu0 %v564
  %v575 = vpop.f32.mrf.mxu0
  %v576 = vadd.f32 %v24, %v575
  %v577 = vpop.f32.mrf.mxu0
  %578 = vdwg.mxu0
  %v579 = vadd.f32 %v558, %v576
  %v580 = vxor.u32 %v579, 2147483648
  %v581 = vmul.f32 %v580, 1.442695
  %v582 = vpow.pop %v581
  %v583 = vadd.f32 %v582, 1.0
  %v584 = vrcp.pop %v583
  %v585 = vmul.f32 %v583, %v584
  %v586 = vsub.f32 1.0, %v585
  %v587 = vmul.f32 %v584, %v586
  %v588 = vadd.f32 %v584, %v587
  %vm589 = vweird.f32 %v583
  %vm590 = vweird.f32 %v584
  %vm591 = vmor %vm589, %vm590
  %v592 = vsel %vm591, %v584, %v588
  %v593 = vand.u32 2147483647, %v583
  %vm594 = vcmp.eq.f32.partialorder %v593, 8.507059e+37
  %v595 = vand.u32 %v583, 2147483648
  %v596 = vor.u32 1.1754944e-38, %v595
  %v597 = vsel %vm594, %v596, %v592
  %v598 = vmul.f32 1.0, %v597
  %600 = vrot.lane.b32.xlu0 %v576, 64
  %v601 = vpop.permute.xlu0 %600
  %v603 = vmul.f32 %v598, %v601
  %605 = vrot.lane.b32.xlu0 %v603, 64
  %v606 = vpop.permute.xlu0 %605
  %v608 = vadd.f32 %v558, %v606
  %v609 = vtanh.pop %v608
  %v610 = vsub.f32 1.0, %v598
  %612 = vrot.lane.b32.xlu0 %v609, 96
  %v613 = vpop.permute.xlu0 %612
  %v615 = vmul.f32 %v610, %v613
  %v616 = vmul.f32 %v598, %v550
  %v617 = vadd.f32 %v615, %v616
  %619 = vrot.lane.b32.xlu0 %v617, 96
  %v620 = vpop.permute.xlu0 %619
  %s622 = scalar_lea.vmem %s3, 16
  %623 = vst.msk [vmem:[%s622] sm:$0x3] %vm86, %v620
  %s624 = scalar_lea.vmem %s0, 18
  %v625 = vld [vmem:[%s624] sm:$0x3]
  %v626 = vpack.c.bf16 %v617, %v617
  %628 = vrot.lane.b32.xlu0 %v626, 96
  %v629 = vpop.permute.xlu0 %628
  %v631 = vsel %vm26, %v629, 0
  %633 = vmatpush.bf16.msra.mxu0 0
  %634 = vmatpush.bf16.msra.mxu0 0
  %635 = vmatpush.bf16.msra.mxu0 0
  %636 = vmatpush.bf16.msra.mxu0 0
  %637 = vmatpush.bf16.msra.mxu0 0
  %638 = vmatpush.bf16.msra.mxu0 0
  %639 = vmatpush.bf16.msra.mxu0 %v20
  %640 = vmatpush.bf16.msra.mxu0 %v19
  %641 = vmatmul.bf16.gmra.mxu0 %v631
  %v642 = vpop.f32.mrf.mxu0
  %v643 = vadd.f32 %v24, %v642
  %v644 = vpop.f32.mrf.mxu0
  %645 = vdwg.mxu0
  %v646 = vadd.f32 %v625, %v643
  %v647 = vxor.u32 %v646, 2147483648
  %v648 = vmul.f32 %v647, 1.442695
  %v649 = vpow.pop %v648
  %v650 = vadd.f32 %v649, 1.0
  %v651 = vrcp.pop %v650
  %v652 = vmul.f32 %v650, %v651
  %v653 = vsub.f32 1.0, %v652
  %v654 = vmul.f32 %v651, %v653
  %v655 = vadd.f32 %v651, %v654
  %vm656 = vweird.f32 %v650
  %vm657 = vweird.f32 %v651
  %vm658 = vmor %vm656, %vm657
  %v659 = vsel %vm658, %v651, %v655
  %v660 = vand.u32 2147483647, %v650
  %vm661 = vcmp.eq.f32.partialorder %v660, 8.507059e+37
  %v662 = vand.u32 %v650, 2147483648
  %v663 = vor.u32 1.1754944e-38, %v662
  %v664 = vsel %vm661, %v663, %v659
  %v665 = vmul.f32 1.0, %v664
  %667 = vrot.lane.b32.xlu0 %v643, 64
  %v668 = vpop.permute.xlu0 %667
  %v670 = vmul.f32 %v665, %v668
  %672 = vrot.lane.b32.xlu0 %v670, 64
  %v673 = vpop.permute.xlu0 %672
  %v675 = vadd.f32 %v625, %v673
  %v676 = vtanh.pop %v675
  %v677 = vsub.f32 1.0, %v665
  %679 = vrot.lane.b32.xlu0 %v676, 96
  %v680 = vpop.permute.xlu0 %679
  %v682 = vmul.f32 %v677, %v680
  %v683 = vmul.f32 %v665, %v617
  %v684 = vadd.f32 %v682, %v683
  %686 = vrot.lane.b32.xlu0 %v684, 96
  %v687 = vpop.permute.xlu0 %686
  %s689 = scalar_lea.vmem %s3, 18
  %690 = vst.msk [vmem:[%s689] sm:$0x3] %vm86, %v687
  %s691 = scalar_lea.vmem %s0, 20
  %v692 = vld [vmem:[%s691] sm:$0x3]
  %v693 = vpack.c.bf16 %v684, %v684
  %695 = vrot.lane.b32.xlu0 %v693, 96
  %v696 = vpop.permute.xlu0 %695
  %v698 = vsel %vm26, %v696, 0
  %700 = vmatpush.bf16.msra.mxu0 0
  %701 = vmatpush.bf16.msra.mxu0 0
  %702 = vmatpush.bf16.msra.mxu0 0
  %703 = vmatpush.bf16.msra.mxu0 0
  %704 = vmatpush.bf16.msra.mxu0 0
  %705 = vmatpush.bf16.msra.mxu0 0
  %706 = vmatpush.bf16.msra.mxu0 %v20
  %707 = vmatpush.bf16.msra.mxu0 %v19
  %708 = vmatmul.bf16.gmra.mxu0 %v698
  %v709 = vpop.f32.mrf.mxu0
  %v710 = vadd.f32 %v24, %v709
  %v711 = vpop.f32.mrf.mxu0
  %712 = vdwg.mxu0
  %v713 = vadd.f32 %v692, %v710
  %v714 = vxor.u32 %v713, 2147483648
  %v715 = vmul.f32 %v714, 1.442695
  %v716 = vpow.pop %v715
  %v717 = vadd.f32 %v716, 1.0
  %v718 = vrcp.pop %v717
  %v719 = vmul.f32 %v717, %v718
  %v720 = vsub.f32 1.0, %v719
  %v721 = vmul.f32 %v718, %v720
  %v722 = vadd.f32 %v718, %v721
  %vm723 = vweird.f32 %v717
  %vm724 = vweird.f32 %v718
  %vm725 = vmor %vm723, %vm724
  %v726 = vsel %vm725, %v718, %v722
  %v727 = vand.u32 2147483647, %v717
  %vm728 = vcmp.eq.f32.partialorder %v727, 8.507059e+37
  %v729 = vand.u32 %v717, 2147483648
  %v730 = vor.u32 1.1754944e-38, %v729
  %v731 = vsel %vm728, %v730, %v726
  %v732 = vmul.f32 1.0, %v731
  %734 = vrot.lane.b32.xlu0 %v710, 64
  %v735 = vpop.permute.xlu0 %734
  %v737 = vmul.f32 %v732, %v735
  %739 = vrot.lane.b32.xlu0 %v737, 64
  %v740 = vpop.permute.xlu0 %739
  %v742 = vadd.f32 %v692, %v740
  %v743 = vtanh.pop %v742
  %v744 = vsub.f32 1.0, %v732
  %746 = vrot.lane.b32.xlu0 %v743, 96
  %v747 = vpop.permute.xlu0 %746
  %v749 = vmul.f32 %v744, %v747
  %v750 = vmul.f32 %v732, %v684
  %v751 = vadd.f32 %v749, %v750
  %753 = vrot.lane.b32.xlu0 %v751, 96
  %v754 = vpop.permute.xlu0 %753
  %s756 = scalar_lea.vmem %s3, 20
  %757 = vst.msk [vmem:[%s756] sm:$0x3] %vm86, %v754
  %s758 = scalar_lea.vmem %s0, 22
  %v759 = vld [vmem:[%s758] sm:$0x3]
  %v760 = vpack.c.bf16 %v751, %v751
  %762 = vrot.lane.b32.xlu0 %v760, 96
  %v763 = vpop.permute.xlu0 %762
  %v765 = vsel %vm26, %v763, 0
  %767 = vmatpush.bf16.msra.mxu0 0
  %768 = vmatpush.bf16.msra.mxu0 0
  %769 = vmatpush.bf16.msra.mxu0 0
  %770 = vmatpush.bf16.msra.mxu0 0
  %771 = vmatpush.bf16.msra.mxu0 0
  %772 = vmatpush.bf16.msra.mxu0 0
  %773 = vmatpush.bf16.msra.mxu0 %v20
  %774 = vmatpush.bf16.msra.mxu0 %v19
  %775 = vmatmul.bf16.gmra.mxu0 %v765
  %v776 = vpop.f32.mrf.mxu0
  %v777 = vadd.f32 %v24, %v776
  %v778 = vpop.f32.mrf.mxu0
  %779 = vdwg.mxu0
  %v780 = vadd.f32 %v759, %v777
  %v781 = vxor.u32 %v780, 2147483648
  %v782 = vmul.f32 %v781, 1.442695
  %v783 = vpow.pop %v782
  %v784 = vadd.f32 %v783, 1.0
  %v785 = vrcp.pop %v784
  %v786 = vmul.f32 %v784, %v785
  %v787 = vsub.f32 1.0, %v786
  %v788 = vmul.f32 %v785, %v787
  %v789 = vadd.f32 %v785, %v788
  %vm790 = vweird.f32 %v784
  %vm791 = vweird.f32 %v785
  %vm792 = vmor %vm790, %vm791
  %v793 = vsel %vm792, %v785, %v789
  %v794 = vand.u32 2147483647, %v784
  %vm795 = vcmp.eq.f32.partialorder %v794, 8.507059e+37
  %v796 = vand.u32 %v784, 2147483648
  %v797 = vor.u32 1.1754944e-38, %v796
  %v798 = vsel %vm795, %v797, %v793
  %v799 = vmul.f32 1.0, %v798
  %801 = vrot.lane.b32.xlu0 %v777, 64
  %v802 = vpop.permute.xlu0 %801
  %v804 = vmul.f32 %v799, %v802
  %806 = vrot.lane.b32.xlu0 %v804, 64
  %v807 = vpop.permute.xlu0 %806
  %v809 = vadd.f32 %v759, %v807
  %v810 = vtanh.pop %v809
  %v811 = vsub.f32 1.0, %v799
  %813 = vrot.lane.b32.xlu0 %v810, 96
  %v814 = vpop.permute.xlu0 %813
  %v816 = vmul.f32 %v811, %v814
  %v817 = vmul.f32 %v799, %v751
  %v818 = vadd.f32 %v816, %v817
  %820 = vrot.lane.b32.xlu0 %v818, 96
  %v821 = vpop.permute.xlu0 %820
  %s823 = scalar_lea.vmem %s3, 22
  %824 = vst.msk [vmem:[%s823] sm:$0x3] %vm86, %v821
  %s825 = scalar_lea.vmem %s0, 24
  %v826 = vld [vmem:[%s825] sm:$0x3]
  %v827 = vpack.c.bf16 %v818, %v818
  %829 = vrot.lane.b32.xlu0 %v827, 96
  %v830 = vpop.permute.xlu0 %829
  %v832 = vsel %vm26, %v830, 0
  %834 = vmatpush.bf16.msra.mxu0 0
  %835 = vmatpush.bf16.msra.mxu0 0
  %836 = vmatpush.bf16.msra.mxu0 0
  %837 = vmatpush.bf16.msra.mxu0 0
  %838 = vmatpush.bf16.msra.mxu0 0
  %839 = vmatpush.bf16.msra.mxu0 0
  %840 = vmatpush.bf16.msra.mxu0 %v20
  %841 = vmatpush.bf16.msra.mxu0 %v19
  %842 = vmatmul.bf16.gmra.mxu0 %v832
  %v843 = vpop.f32.mrf.mxu0
  %v844 = vadd.f32 %v24, %v843
  %v845 = vpop.f32.mrf.mxu0
  %846 = vdwg.mxu0
  %v847 = vadd.f32 %v826, %v844
  %v848 = vxor.u32 %v847, 2147483648
  %v849 = vmul.f32 %v848, 1.442695
  %v850 = vpow.pop %v849
  %v851 = vadd.f32 %v850, 1.0
  %v852 = vrcp.pop %v851
  %v853 = vmul.f32 %v851, %v852
  %v854 = vsub.f32 1.0, %v853
  %v855 = vmul.f32 %v852, %v854
  %v856 = vadd.f32 %v852, %v855
  %vm857 = vweird.f32 %v851
  %vm858 = vweird.f32 %v852
  %vm859 = vmor %vm857, %vm858
  %v860 = vsel %vm859, %v852, %v856
  %v861 = vand.u32 2147483647, %v851
  %vm862 = vcmp.eq.f32.partialorder %v861, 8.507059e+37
  %v863 = vand.u32 %v851, 2147483648
  %v864 = vor.u32 1.1754944e-38, %v863
  %v865 = vsel %vm862, %v864, %v860
  %v866 = vmul.f32 1.0, %v865
  %868 = vrot.lane.b32.xlu0 %v844, 64
  %v869 = vpop.permute.xlu0 %868
  %v871 = vmul.f32 %v866, %v869
  %873 = vrot.lane.b32.xlu0 %v871, 64
  %v874 = vpop.permute.xlu0 %873
  %v876 = vadd.f32 %v826, %v874
  %v877 = vtanh.pop %v876
  %v878 = vsub.f32 1.0, %v866
  %880 = vrot.lane.b32.xlu0 %v877, 96
  %v881 = vpop.permute.xlu0 %880
  %v883 = vmul.f32 %v878, %v881
  %v884 = vmul.f32 %v866, %v818
  %v885 = vadd.f32 %v883, %v884
  %887 = vrot.lane.b32.xlu0 %v885, 96
  %v888 = vpop.permute.xlu0 %887
  %s890 = scalar_lea.vmem %s3, 24
  %891 = vst.msk [vmem:[%s890] sm:$0x3] %vm86, %v888
  %s892 = scalar_lea.vmem %s0, 26
  %v893 = vld [vmem:[%s892] sm:$0x3]
  %v894 = vpack.c.bf16 %v885, %v885
  %896 = vrot.lane.b32.xlu0 %v894, 96
  %v897 = vpop.permute.xlu0 %896
  %v899 = vsel %vm26, %v897, 0
  %901 = vmatpush.bf16.msra.mxu0 0
  %902 = vmatpush.bf16.msra.mxu0 0
  %903 = vmatpush.bf16.msra.mxu0 0
  %904 = vmatpush.bf16.msra.mxu0 0
  %905 = vmatpush.bf16.msra.mxu0 0
  %906 = vmatpush.bf16.msra.mxu0 0
  %907 = vmatpush.bf16.msra.mxu0 %v20
  %908 = vmatpush.bf16.msra.mxu0 %v19
  %909 = vmatmul.bf16.gmra.mxu0 %v899
  %v910 = vpop.f32.mrf.mxu0
  %v911 = vadd.f32 %v24, %v910
  %v912 = vpop.f32.mrf.mxu0
  %913 = vdwg.mxu0
  %v914 = vadd.f32 %v893, %v911
  %v915 = vxor.u32 %v914, 2147483648
  %v916 = vmul.f32 %v915, 1.442695
  %v917 = vpow.pop %v916
  %v918 = vadd.f32 %v917, 1.0
  %v919 = vrcp.pop %v918
  %v920 = vmul.f32 %v918, %v919
  %v921 = vsub.f32 1.0, %v920
  %v922 = vmul.f32 %v919, %v921
  %v923 = vadd.f32 %v919, %v922
  %vm924 = vweird.f32 %v918
  %vm925 = vweird.f32 %v919
  %vm926 = vmor %vm924, %vm925
  %v927 = vsel %vm926, %v919, %v923
  %v928 = vand.u32 2147483647, %v918
  %vm929 = vcmp.eq.f32.partialorder %v928, 8.507059e+37
  %v930 = vand.u32 %v918, 2147483648
  %v931 = vor.u32 1.1754944e-38, %v930
  %v932 = vsel %vm929, %v931, %v927
  %v933 = vmul.f32 1.0, %v932
  %935 = vrot.lane.b32.xlu0 %v911, 64
  %v936 = vpop.permute.xlu0 %935
  %v938 = vmul.f32 %v933, %v936
  %940 = vrot.lane.b32.xlu0 %v938, 64
  %v941 = vpop.permute.xlu0 %940
  %v943 = vadd.f32 %v893, %v941
  %v944 = vtanh.pop %v943
  %v945 = vsub.f32 1.0, %v933
  %947 = vrot.lane.b32.xlu0 %v944, 96
  %v948 = vpop.permute.xlu0 %947
  %v950 = vmul.f32 %v945, %v948
  %v951 = vmul.f32 %v933, %v885
  %v952 = vadd.f32 %v950, %v951
  %954 = vrot.lane.b32.xlu0 %v952, 96
  %v955 = vpop.permute.xlu0 %954
  %s957 = scalar_lea.vmem %s3, 26
  %958 = vst.msk [vmem:[%s957] sm:$0x3] %vm86, %v955
  %s959 = scalar_lea.vmem %s0, 28
  %v960 = vld [vmem:[%s959] sm:$0x3]
  %v961 = vpack.c.bf16 %v952, %v952
  %963 = vrot.lane.b32.xlu0 %v961, 96
  %v964 = vpop.permute.xlu0 %963
  %v966 = vsel %vm26, %v964, 0
  %968 = vmatpush.bf16.msra.mxu0 0
  %969 = vmatpush.bf16.msra.mxu0 0
  %970 = vmatpush.bf16.msra.mxu0 0
  %971 = vmatpush.bf16.msra.mxu0 0
  %972 = vmatpush.bf16.msra.mxu0 0
  %973 = vmatpush.bf16.msra.mxu0 0
  %974 = vmatpush.bf16.msra.mxu0 %v20
  %975 = vmatpush.bf16.msra.mxu0 %v19
  %976 = vmatmul.bf16.gmra.mxu0 %v966
  %v977 = vpop.f32.mrf.mxu0
  %v978 = vadd.f32 %v24, %v977
  %v979 = vpop.f32.mrf.mxu0
  %980 = vdwg.mxu0
  %v981 = vadd.f32 %v960, %v978
  %v982 = vxor.u32 %v981, 2147483648
  %v983 = vmul.f32 %v982, 1.442695
  %v984 = vpow.pop %v983
  %v985 = vadd.f32 %v984, 1.0
  %v986 = vrcp.pop %v985
  %v987 = vmul.f32 %v985, %v986
  %v988 = vsub.f32 1.0, %v987
  %v989 = vmul.f32 %v986, %v988
  %v990 = vadd.f32 %v986, %v989
  %vm991 = vweird.f32 %v985
  %vm992 = vweird.f32 %v986
  %vm993 = vmor %vm991, %vm992
  %v994 = vsel %vm993, %v986, %v990
  %v995 = vand.u32 2147483647, %v985
  %vm996 = vcmp.eq.f32.partialorder %v995, 8.507059e+37
  %v997 = vand.u32 %v985, 2147483648
  %v998 = vor.u32 1.1754944e-38, %v997
  %v999 = vsel %vm996, %v998, %v994
  %v1000 = vmul.f32 1.0, %v999
  %1002 = vrot.lane.b32.xlu0 %v978, 64
  %v1003 = vpop.permute.xlu0 %1002
  %v1005 = vmul.f32 %v1000, %v1003
  %1007 = vrot.lane.b32.xlu0 %v1005, 64
  %v1008 = vpop.permute.xlu0 %1007
  %v1010 = vadd.f32 %v960, %v1008
  %v1011 = vtanh.pop %v1010
  %v1012 = vsub.f32 1.0, %v1000
  %1014 = vrot.lane.b32.xlu0 %v1011, 96
  %v1015 = vpop.permute.xlu0 %1014
  %v1017 = vmul.f32 %v1012, %v1015
  %v1018 = vmul.f32 %v1000, %v952
  %v1019 = vadd.f32 %v1017, %v1018
  %1021 = vrot.lane.b32.xlu0 %v1019, 96
  %v1022 = vpop.permute.xlu0 %1021
  %s1024 = scalar_lea.vmem %s3, 28
  %1025 = vst.msk [vmem:[%s1024] sm:$0x3] %vm86, %v1022
  %s1026 = scalar_lea.vmem %s0, 30
  %v1027 = vld [vmem:[%s1026] sm:$0x3]
  %v1028 = vpack.c.bf16 %v1019, %v1019
  %1030 = vrot.lane.b32.xlu0 %v1028, 96
  %v1031 = vpop.permute.xlu0 %1030
  %v1033 = vsel %vm26, %v1031, 0
  %1035 = vmatpush.bf16.msra.mxu0 0
  %1036 = vmatpush.bf16.msra.mxu0 0
  %1037 = vmatpush.bf16.msra.mxu0 0
  %1038 = vmatpush.bf16.msra.mxu0 0
  %1039 = vmatpush.bf16.msra.mxu0 0
  %1040 = vmatpush.bf16.msra.mxu0 0
  %1041 = vmatpush.bf16.msra.mxu0 %v20
  %1042 = vmatpush.bf16.msra.mxu0 %v19
  %1043 = vmatmul.bf16.gmra.mxu0 %v1033
  %v1044 = vpop.f32.mrf.mxu0
  %v1045 = vadd.f32 %v24, %v1044
  %v1046 = vpop.f32.mrf.mxu0
  %1047 = vdwg.mxu0
  %v1048 = vadd.f32 %v1027, %v1045
  %v1049 = vxor.u32 %v1048, 2147483648
  %v1050 = vmul.f32 %v1049, 1.442695
  %v1051 = vpow.pop %v1050
  %v1052 = vadd.f32 %v1051, 1.0
  %v1053 = vrcp.pop %v1052
  %v1054 = vmul.f32 %v1052, %v1053
  %v1055 = vsub.f32 1.0, %v1054
  %v1056 = vmul.f32 %v1053, %v1055
  %v1057 = vadd.f32 %v1053, %v1056
  %vm1058 = vweird.f32 %v1052
  %vm1059 = vweird.f32 %v1053
  %vm1060 = vmor %vm1058, %vm1059
  %v1061 = vsel %vm1060, %v1053, %v1057
  %v1062 = vand.u32 2147483647, %v1052
  %vm1063 = vcmp.eq.f32.partialorder %v1062, 8.507059e+37
  %v1064 = vand.u32 %v1052, 2147483648
  %v1065 = vor.u32 1.1754944e-38, %v1064
  %v1066 = vsel %vm1063, %v1065, %v1061
  %v1067 = vmul.f32 1.0, %v1066
  %1069 = vrot.lane.b32.xlu0 %v1045, 64
  %v1070 = vpop.permute.xlu0 %1069
  %v1072 = vmul.f32 %v1067, %v1070
  %1074 = vrot.lane.b32.xlu0 %v1072, 64
  %v1075 = vpop.permute.xlu0 %1074
  %v1077 = vadd.f32 %v1027, %v1075
  %v1078 = vtanh.pop %v1077
  %v1079 = vsub.f32 1.0, %v1067
  %1081 = vrot.lane.b32.xlu0 %v1078, 96
  %v1082 = vpop.permute.xlu0 %1081
  %v1084 = vmul.f32 %v1079, %v1082
  %v1085 = vmul.f32 %v1067, %v1019
  %v1086 = vadd.f32 %v1084, %v1085
  %1088 = vrot.lane.b32.xlu0 %v1086, 96
  %v1089 = vpop.permute.xlu0 %1088
  %s1091 = scalar_lea.vmem %s3, 30
  %1092 = vst.msk [vmem:[%s1091] sm:$0x3] %vm86, %v1089
  // Predicated region
  $region14: #{rnn_model_clause_forward.3} parent=0 // pred_check
    _
  $region15: #{rnn_model_clause_forward.3} parent=0 // pred_check_branch
    %1094 = sbr.rel (0) target = $region17
  $region16: #{rnn_model_clause_forward.3} parent=0 // pred_region
    _
  $region17: #{rnn_model_clause_forward.3} parent=0 // pred_fallthru
    _
  // Predicated region
  $region18: #{rnn_model_clause_forward.3} parent=0 // pred_check
    _
  $region19: #{rnn_model_clause_forward.3} parent=0 // pred_check_branch
    %1096 = sbr.rel (0) target = $region21
  $region20: #{rnn_model_clause_forward.3} parent=0 // pred_region
    _
  $region21: #{rnn_model_clause_forward.3} parent=0 // pred_fallthru
    _

</llo_original>
